<compile_context>
chip_gen: v6e
topology: v6e:2x2x1
jax: 0.10.0
libtpu: 0.0.40
codegen_flags: <defaults>
</compile_context>

<pallas_src>
import functools

import jax
import jax.numpy as jnp
from jax import lax
from jax.experimental import pallas as pl
from jax.experimental.pallas import tpu as pltpu


def _round_up(x, m):
    return (x + m - 1) // m * m


# ------------------------------ fused kernel --------------------------------

def _encoder_kernel(x_ref, w1_ref, b1_ref, w2_ref, b2_ref, wk_ref, bfc_ref,
                    mu_ref, sigma_ref, h1pad_ref, *, dims):
    """Fused ConvolutionalEncoderSmall forward (single invocation, no grid).

    x_ref     : (B, Hp, Wp, C1p)      f32  zero-padded NHWC input
    w1_ref    : (9, C1p, N1)          bf16 conv1 taps  [kh*3+kw, cin, cout]
    b1_ref    : (1, N1)               f32
    w2_ref    : (9, N1, N2)           bf16 conv2 taps
    b2_ref    : (1, N2)               f32
    wk_ref    : (S, N2, 2L)           bf16 fused fc_mu|fc_sigma (flatten-permuted)
    bfc_ref   : (1, 2L)               f32
    mu_ref    : (B, L)                f32  output
    sigma_ref : (B, L)                f32  output
    h1pad_ref : (B, Ho1+2, W2p, N1)   f32  scratch: zero-padded conv1 output
    """
    ho1, wo1, w1_read, ho2, wo2, w2_read = dims
    B = x_ref.shape[0]
    n1 = w1_ref.shape[-1]
    n2 = w2_ref.shape[-1]
    lat2 = wk_ref.shape[-1]
    lat = lat2 // 2
    f32 = jnp.float32
    bf16 = jnp.bfloat16

    def conv3x3_s2_relu(src_ref, w_ref, bias, ho, wo_read):
        """3x3 / stride-2 conv + bias + ReLU as 9 accumulated MXU dots.

        src_ref is a zero-padded NHWC ref; the tap (kh, kw) for output pixel
        (oh, ow) lives at padded coords (2*oh + kh, 2*ow + kw), i.e. a
        stride-2 slice starting at (kh, kw).  `wo_read` may be rounded up to
        a multiple of 8 (extra output columns only read zero padding and are
        discarded by the caller) so every reshape keeps 8-aligned sublanes.
        """
        cin = src_ref.shape[-1]
        cout = w_ref.shape[-1]
        m = B * ho * wo_read
        acc = jnp.zeros((m, cout), f32)
        for kh in range(3):
            for kw in range(3):
                tap = src_ref[:, pl.ds(kh, ho, 2), pl.ds(kw, wo_read, 2), :]
                tap = tap.reshape(m, cin).astype(bf16)
                acc = acc + jnp.dot(tap, w_ref[kh * 3 + kw],
                                    preferred_element_type=f32)
        return jnp.maximum(acc + bias, 0.0)          # f32 epilogue

    # ---- conv1 + ReLU -------------------------------------------------------
    h1 = conv3x3_s2_relu(x_ref, w1_ref, b1_ref[...], ho1, w1_read)
    h1 = h1.reshape(B, ho1, w1_read, n1)[:, :, :wo1, :]       # drop over-read

    # ---- stage conv1 output into a zero-padded scratch (conv2's "pad=1") ---
    h1pad_ref[...] = jnp.zeros_like(h1pad_ref)
    h1pad_ref[:, 1:ho1 + 1, 1:wo1 + 1, :] = h1

    # ---- conv2 + ReLU -------------------------------------------------------
    h2 = conv3x3_s2_relu(h1pad_ref, w2_ref, b2_ref[...], ho2, w2_read)
    h2 = h2.reshape(B, ho2, w2_read, n2).astype(bf16)

    # ---- flatten + fused fc_mu | fc_sigma -----------------------------------
    # torch's NCHW .view(B, -1) ordering is pre-folded into wk, so we simply
    # accumulate one (B, N2) x (N2, 2L) dot per real spatial position.
    z = jnp.zeros((B, lat2), f32)
    for oh in range(ho2):
        for ow in range(wo2):
            z = z + jnp.dot(h2[:, oh, ow, :], wk_ref[oh * wo2 + ow],
                            preferred_element_type=f32)
    z = z + bfc_ref[...]
    mu_ref[...] = z[:, :lat]
    sigma_ref[...] = jnp.logaddexp(z[:, lat:], 0.0)           # stable softplus


# --------------------------- parameter preparation --------------------------

def prepare_params(params, input_shape, hidden_channels, latent_dims):
    """One-time parameter prep (hoisted out of the per-call graph):
    conv weights -> (9, Cin_pad, Cout_pad) bf16 tap matrices; FC weights ->
    fused mu|sigma, flatten-permuted (S, C2_pad, 2L) bf16; biases -> f32 rows."""
    C, H, W = input_shape
    ho2, wo2 = H // 4, W // 4
    S = ho2 * wo2
    n_h = hidden_channels
    c2 = 2 * n_h
    L = latent_dims
    c1p = _round_up(C, 8)
    n1p = _round_up(n_h, 8)
    n2p = _round_up(c2, 8)

    def conv_taps(w, b, cin_pad, cout_pad):
        o, cin = w.shape[0], w.shape[1]
        wt = jnp.transpose(w, (2, 3, 1, 0)).reshape(9, cin, o)  # [tap, cin, cout]
        wt = jnp.pad(wt, ((0, 0), (0, cin_pad - cin), (0, cout_pad - o)))
        bt = jnp.pad(b, (0, cout_pad - o)).reshape(1, cout_pad)
        return wt.astype(jnp.bfloat16), bt.astype(jnp.float32)

    w1, b1 = conv_taps(params["conv1_w"], params["conv1_b"], c1p, n1p)
    w2, b2 = conv_taps(params["conv2_w"], params["conv2_b"], n1p, n2p)

    # Fused fc_mu|fc_sigma with torch's NCHW flatten order folded in:
    # torch feature index f = c*S + s  ->  wk[s, c, l].
    wcat = jnp.concatenate([params["fc_mu_w"], params["fc_sigma_w"]], axis=0)
    wk = wcat.reshape(2 * L, c2, S).transpose(2, 1, 0)          # (S, c2, 2L)
    wk = jnp.pad(wk, ((0, 0), (0, n2p - c2), (0, 0))).astype(jnp.bfloat16)
    bfc = jnp.concatenate([params["fc_mu_b"], params["fc_sigma_b"]])
    bfc = bfc.reshape(1, 2 * L).astype(jnp.float32)

    return {"w1": w1, "b1": b1, "w2": w2, "b2": b2, "wk": wk, "bfc": bfc}


# ------------------------------ forward wrapper ------------------------------

def make_encoder_forward(input_shape, hidden_channels, latent_dims):
    C, H, W = input_shape
    assert H % 4 == 0 and W % 4 == 0, "spatial dims must be divisible by 4"
    ho1, wo1 = H // 2, W // 2
    ho2, wo2 = H // 4, W // 4
    w1_read = _round_up(wo1, 8)          # over-read widths keep sublanes 8-aligned
    w2_read = _round_up(wo2, 8)
    c1p = _round_up(C, 8)
    n1p = _round_up(hidden_channels, 8)

    hp = H + 2                            # zero-padded input extents
    wp = max(W + 2, 2 * w1_read + 1)
    s_h = ho1 + 2                         # zero-padded conv1-output extents
    s_w = max(wo1 + 2, 2 * w2_read + 1)

    dims = (ho1, wo1, w1_read, ho2, wo2, w2_read)
    kernel = functools.partial(_encoder_kernel, dims=dims)
    vmem = pl.BlockSpec(memory_space=pltpu.MemorySpace.VMEM)

    def forward(kparams, x):
        B = x.shape[0]
        # NCHW -> zero-padded NHWC (spatial pad=1 for the conv, channel pad to
        # a multiple of 8 so every MXU contraction is 8-aligned).
        x_nhwc = jnp.transpose(x, (0, 2, 3, 1)).astype(jnp.float32)
        x_pad = jnp.pad(x_nhwc, ((0, 0), (1, hp - H - 1), (1, wp - W - 1),
                                 (0, c1p - C)))
        mu, sigma = pl.pallas_call(
            kernel,
            out_shape=(jax.ShapeDtypeStruct((B, latent_dims), jnp.float32),
                       jax.ShapeDtypeStruct((B, latent_dims), jnp.float32)),
            in_specs=[vmem] * 7,
            out_specs=(vmem, vmem),
            scratch_shapes=[pltpu.VMEM((B, s_h, s_w, n1p), jnp.float32)],
        )(x_pad, kparams["w1"], kparams["b1"], kparams["w2"], kparams["b2"],
          kparams["wk"], kparams["bfc"])
        return mu, sigma

    return forward


# --------------------------- reference / init / main ------------------------

def reference_forward(params, x):
    """Pure-JAX (lax.conv) reference of the same module for validation."""
    dn = ("NCHW", "OIHW", "NCHW")
    h = lax.conv_general_dilated(x, params["conv1_w"], (2, 2),
                                 ((1, 1), (1, 1)), dimension_numbers=dn)
    h = jax.nn.relu(h + params["conv1_b"][None, :, None, None])
    h = lax.conv_general_dilated(h, params["conv2_w"], (2, 2),
                                 ((1, 1), (1, 1)), dimension_numbers=dn)
    h = jax.nn.relu(h + params["conv2_b"][None, :, None, None])
    flat = h.reshape(x.shape[0], -1)
    mu = flat @ params["fc_mu_w"].T + params["fc_mu_b"]
    sigma = jax.nn.softplus(flat @ params["fc_sigma_w"].T + params["fc_sigma_b"])
    return mu, sigma


def init_params(key, input_shape, hidden_channels, latent_dims):
    """Deterministic PyTorch-style (uniform +/- 1/sqrt(fan_in)) init."""
    C, H, W = input_shape
    feat = hidden_channels * 2 * (H // 4) * (W // 4)
    ks = jax.random.split(key, 8)

    def u(k, shape, fan_in):
        bound = 1.0 / jnp.sqrt(fan_in)
        return jax.random.uniform(k, shape, jnp.float32, -bound, bound)

    return {
        "conv1_w": u(ks[0], (hidden_channels, C, 3, 3), C * 9),
        "conv1_b": u(ks[1], (hidden_channels,), C * 9),
        "conv2_w": u(ks[2], (hidden_channels * 2, hidden_channels, 3, 3),
                     hidden_channels * 9),
        "conv2_b": u(ks[3], (hidden_channels * 2,), hidden_channels * 9),
        "fc_mu_w": u(ks[4], (latent_dims, feat), feat),
        "fc_mu_b": u(ks[5], (latent_dims,), feat),
        "fc_sigma_w": u(ks[6], (latent_dims, feat), feat),
        "fc_sigma_b": u(ks[7], (latent_dims,), feat),
    }


if __name__ == "__main__":
    key = jax.random.PRNGKey(0)
    k_param, k_x = jax.random.split(key)

    batch = 2
    input_shape = [4, 16, 16]            # (C, H, W)
    hidden_channels = 8
    latent_dims = 32

    params = init_params(k_param, input_shape, hidden_channels, latent_dims)
    x = jax.random.normal(k_x, (batch, *input_shape), dtype=jnp.float32)

    kparams = prepare_params(params, input_shape, hidden_channels, latent_dims)
    forward = jax.jit(make_encoder_forward(input_shape, hidden_channels,
                                           latent_dims))
    mu, sigma = forward(kparams, x)
    jax.block_until_ready((mu, sigma))

    assert mu.shape == (batch, latent_dims)
    assert sigma.shape == (batch, latent_dims)

    mu_ref, sigma_ref = reference_forward(params, x)
    assert jnp.allclose(mu, mu_ref, rtol=5e-2, atol=5e-2), (
        "mu mismatch, max abs err = %.3e"
        % float(jnp.max(jnp.abs(mu - mu_ref))))
    assert jnp.allclose(sigma, sigma_ref, rtol=5e-2, atol=5e-2), (
        "sigma mismatch, max abs err = %.3e"
        % float(jnp.max(jnp.abs(sigma - sigma_ref))))
    assert bool(jnp.all(sigma > 0.0))

    print("KERNEL_OK")
</pallas_src>

<mosaic_0001>
module attributes {stable_mosaic.version = 11 : i64} {
  func.func @_encoder_kernel(%arg0: memref<2x18x18x8xf32, #tpu.memory_space<vmem>>, %arg1: memref<9x8x8xbf16, #tpu.memory_space<vmem>>, %arg2: memref<1x8xf32, #tpu.memory_space<vmem>>, %arg3: memref<9x8x16xbf16, #tpu.memory_space<vmem>>, %arg4: memref<1x16xf32, #tpu.memory_space<vmem>>, %arg5: memref<16x16x64xbf16, #tpu.memory_space<vmem>>, %arg6: memref<1x64xf32, #tpu.memory_space<vmem>>, %arg7: memref<2x32xf32, #tpu.memory_space<vmem>>, %arg8: memref<2x32xf32, #tpu.memory_space<vmem>>, %arg9: memref<2x10x17x8xf32, #tpu.memory_space<vmem>>) attributes {dimension_semantics = [], scalar_prefetch = 0 : i64, scratch_operands = 1 : i64, tpu.core_type = #tpu.core_type<tc>} {
    %c0 = arith.constant 0 : index
    %c0_0 = arith.constant 0 : index
    %0 = vector.load %arg2[%c0, %c0_0] : memref<1x8xf32, #tpu.memory_space<vmem>>, vector<1x8xf32>
    %cst = arith.constant 0.000000e+00 : f32
    %1 = vector.broadcast %cst : f32 to vector<128x8xf32>
    %c0_1 = arith.constant 0 : index
    %c0_2 = arith.constant 0 : index
    %c0_3 = arith.constant 0 : index
    %c0_4 = arith.constant 0 : index
    %2 = tpu.strided_load %arg0[%c0_1, %c0_2, %c0_3, %c0_4] {strides = array<i32: 1, 2, 2, 1>} : memref<2x18x18x8xf32, #tpu.memory_space<vmem>>, vector<2x8x8x8xf32>
    %3 = vector.shape_cast %2 : vector<2x8x8x8xf32> to vector<128x8xf32>
    %4 = arith.truncf %3 : vector<128x8xf32> to vector<128x8xbf16>
    %c0_5 = arith.constant 0 : index
    %c0_6 = arith.constant 0 : index
    %c0_7 = arith.constant 0 : index
    %5 = vector.load %arg1[%c0_5, %c0_6, %c0_7] : memref<9x8x8xbf16, #tpu.memory_space<vmem>>, vector<1x8x8xbf16>
    %6 = vector.shape_cast %5 : vector<1x8x8xbf16> to vector<8x8xbf16>
    %cst_8 = arith.constant dense<0.000000e+00> : vector<128x8xf32>
    %7 = tpu.matmul %4, %6, %cst_8 {dimension_numbers = #tpu.dot_dimension_numbers<[1], [0], [0], [1], [0, 0, 1, 1], [], []>} : vector<128x8xbf16>, vector<8x8xbf16>, vector<128x8xf32> -> vector<128x8xf32>
    %8 = arith.addf %1, %7 : vector<128x8xf32>
    %c0_9 = arith.constant 0 : index
    %c0_10 = arith.constant 0 : index
    %c1 = arith.constant 1 : index
    %c0_11 = arith.constant 0 : index
    %9 = tpu.strided_load %arg0[%c0_9, %c0_10, %c1, %c0_11] {strides = array<i32: 1, 2, 2, 1>} : memref<2x18x18x8xf32, #tpu.memory_space<vmem>>, vector<2x8x8x8xf32>
    %10 = vector.shape_cast %9 : vector<2x8x8x8xf32> to vector<128x8xf32>
    %11 = arith.truncf %10 : vector<128x8xf32> to vector<128x8xbf16>
    %c1_12 = arith.constant 1 : index
    %c0_13 = arith.constant 0 : index
    %c0_14 = arith.constant 0 : index
    %12 = vector.load %arg1[%c1_12, %c0_13, %c0_14] : memref<9x8x8xbf16, #tpu.memory_space<vmem>>, vector<1x8x8xbf16>
    %13 = vector.shape_cast %12 : vector<1x8x8xbf16> to vector<8x8xbf16>
    %cst_15 = arith.constant dense<0.000000e+00> : vector<128x8xf32>
    %14 = tpu.matmul %11, %13, %cst_15 {dimension_numbers = #tpu.dot_dimension_numbers<[1], [0], [0], [1], [0, 0, 1, 1], [], []>} : vector<128x8xbf16>, vector<8x8xbf16>, vector<128x8xf32> -> vector<128x8xf32>
    %15 = arith.addf %8, %14 : vector<128x8xf32>
    %c0_16 = arith.constant 0 : index
    %c0_17 = arith.constant 0 : index
    %c2 = arith.constant 2 : index
    %c0_18 = arith.constant 0 : index
    %16 = tpu.strided_load %arg0[%c0_16, %c0_17, %c2, %c0_18] {strides = array<i32: 1, 2, 2, 1>} : memref<2x18x18x8xf32, #tpu.memory_space<vmem>>, vector<2x8x8x8xf32>
    %17 = vector.shape_cast %16 : vector<2x8x8x8xf32> to vector<128x8xf32>
    %18 = arith.truncf %17 : vector<128x8xf32> to vector<128x8xbf16>
    %c2_19 = arith.constant 2 : index
    %c0_20 = arith.constant 0 : index
    %c0_21 = arith.constant 0 : index
    %19 = vector.load %arg1[%c2_19, %c0_20, %c0_21] : memref<9x8x8xbf16, #tpu.memory_space<vmem>>, vector<1x8x8xbf16>
    %20 = vector.shape_cast %19 : vector<1x8x8xbf16> to vector<8x8xbf16>
    %cst_22 = arith.constant dense<0.000000e+00> : vector<128x8xf32>
    %21 = tpu.matmul %18, %20, %cst_22 {dimension_numbers = #tpu.dot_dimension_numbers<[1], [0], [0], [1], [0, 0, 1, 1], [], []>} : vector<128x8xbf16>, vector<8x8xbf16>, vector<128x8xf32> -> vector<128x8xf32>
    %22 = arith.addf %15, %21 : vector<128x8xf32>
    %c0_23 = arith.constant 0 : index
    %c1_24 = arith.constant 1 : index
    %c0_25 = arith.constant 0 : index
    %c0_26 = arith.constant 0 : index
    %23 = tpu.strided_load %arg0[%c0_23, %c1_24, %c0_25, %c0_26] {strides = array<i32: 1, 2, 2, 1>} : memref<2x18x18x8xf32, #tpu.memory_space<vmem>>, vector<2x8x8x8xf32>
    %24 = vector.shape_cast %23 : vector<2x8x8x8xf32> to vector<128x8xf32>
    %25 = arith.truncf %24 : vector<128x8xf32> to vector<128x8xbf16>
    %c3 = arith.constant 3 : index
    %c0_27 = arith.constant 0 : index
    %c0_28 = arith.constant 0 : index
    %26 = vector.load %arg1[%c3, %c0_27, %c0_28] : memref<9x8x8xbf16, #tpu.memory_space<vmem>>, vector<1x8x8xbf16>
    %27 = vector.shape_cast %26 : vector<1x8x8xbf16> to vector<8x8xbf16>
    %cst_29 = arith.constant dense<0.000000e+00> : vector<128x8xf32>
    %28 = tpu.matmul %25, %27, %cst_29 {dimension_numbers = #tpu.dot_dimension_numbers<[1], [0], [0], [1], [0, 0, 1, 1], [], []>} : vector<128x8xbf16>, vector<8x8xbf16>, vector<128x8xf32> -> vector<128x8xf32>
    %29 = arith.addf %22, %28 : vector<128x8xf32>
    %c0_30 = arith.constant 0 : index
    %c1_31 = arith.constant 1 : index
    %c1_32 = arith.constant 1 : index
    %c0_33 = arith.constant 0 : index
    %30 = tpu.strided_load %arg0[%c0_30, %c1_31, %c1_32, %c0_33] {strides = array<i32: 1, 2, 2, 1>} : memref<2x18x18x8xf32, #tpu.memory_space<vmem>>, vector<2x8x8x8xf32>
    %31 = vector.shape_cast %30 : vector<2x8x8x8xf32> to vector<128x8xf32>
    %32 = arith.truncf %31 : vector<128x8xf32> to vector<128x8xbf16>
    %c4 = arith.constant 4 : index
    %c0_34 = arith.constant 0 : index
    %c0_35 = arith.constant 0 : index
    %33 = vector.load %arg1[%c4, %c0_34, %c0_35] : memref<9x8x8xbf16, #tpu.memory_space<vmem>>, vector<1x8x8xbf16>
    %34 = vector.shape_cast %33 : vector<1x8x8xbf16> to vector<8x8xbf16>
    %cst_36 = arith.constant dense<0.000000e+00> : vector<128x8xf32>
    %35 = tpu.matmul %32, %34, %cst_36 {dimension_numbers = #tpu.dot_dimension_numbers<[1], [0], [0], [1], [0, 0, 1, 1], [], []>} : vector<128x8xbf16>, vector<8x8xbf16>, vector<128x8xf32> -> vector<128x8xf32>
    %36 = arith.addf %29, %35 : vector<128x8xf32>
    %c0_37 = arith.constant 0 : index
    %c1_38 = arith.constant 1 : index
    %c2_39 = arith.constant 2 : index
    %c0_40 = arith.constant 0 : index
    %37 = tpu.strided_load %arg0[%c0_37, %c1_38, %c2_39, %c0_40] {strides = array<i32: 1, 2, 2, 1>} : memref<2x18x18x8xf32, #tpu.memory_space<vmem>>, vector<2x8x8x8xf32>
    %38 = vector.shape_cast %37 : vector<2x8x8x8xf32> to vector<128x8xf32>
    %39 = arith.truncf %38 : vector<128x8xf32> to vector<128x8xbf16>
    %c5 = arith.constant 5 : index
    %c0_41 = arith.constant 0 : index
    %c0_42 = arith.constant 0 : index
    %40 = vector.load %arg1[%c5, %c0_41, %c0_42] : memref<9x8x8xbf16, #tpu.memory_space<vmem>>, vector<1x8x8xbf16>
    %41 = vector.shape_cast %40 : vector<1x8x8xbf16> to vector<8x8xbf16>
    %cst_43 = arith.constant dense<0.000000e+00> : vector<128x8xf32>
    %42 = tpu.matmul %39, %41, %cst_43 {dimension_numbers = #tpu.dot_dimension_numbers<[1], [0], [0], [1], [0, 0, 1, 1], [], []>} : vector<128x8xbf16>, vector<8x8xbf16>, vector<128x8xf32> -> vector<128x8xf32>
    %43 = arith.addf %36, %42 : vector<128x8xf32>
    %c0_44 = arith.constant 0 : index
    %c2_45 = arith.constant 2 : index
    %c0_46 = arith.constant 0 : index
    %c0_47 = arith.constant 0 : index
    %44 = tpu.strided_load %arg0[%c0_44, %c2_45, %c0_46, %c0_47] {strides = array<i32: 1, 2, 2, 1>} : memref<2x18x18x8xf32, #tpu.memory_space<vmem>>, vector<2x8x8x8xf32>
    %45 = vector.shape_cast %44 : vector<2x8x8x8xf32> to vector<128x8xf32>
    %46 = arith.truncf %45 : vector<128x8xf32> to vector<128x8xbf16>
    %c6 = arith.constant 6 : index
    %c0_48 = arith.constant 0 : index
    %c0_49 = arith.constant 0 : index
    %47 = vector.load %arg1[%c6, %c0_48, %c0_49] : memref<9x8x8xbf16, #tpu.memory_space<vmem>>, vector<1x8x8xbf16>
    %48 = vector.shape_cast %47 : vector<1x8x8xbf16> to vector<8x8xbf16>
    %cst_50 = arith.constant dense<0.000000e+00> : vector<128x8xf32>
    %49 = tpu.matmul %46, %48, %cst_50 {dimension_numbers = #tpu.dot_dimension_numbers<[1], [0], [0], [1], [0, 0, 1, 1], [], []>} : vector<128x8xbf16>, vector<8x8xbf16>, vector<128x8xf32> -> vector<128x8xf32>
    %50 = arith.addf %43, %49 : vector<128x8xf32>
    %c0_51 = arith.constant 0 : index
    %c2_52 = arith.constant 2 : index
    %c1_53 = arith.constant 1 : index
    %c0_54 = arith.constant 0 : index
    %51 = tpu.strided_load %arg0[%c0_51, %c2_52, %c1_53, %c0_54] {strides = array<i32: 1, 2, 2, 1>} : memref<2x18x18x8xf32, #tpu.memory_space<vmem>>, vector<2x8x8x8xf32>
    %52 = vector.shape_cast %51 : vector<2x8x8x8xf32> to vector<128x8xf32>
    %53 = arith.truncf %52 : vector<128x8xf32> to vector<128x8xbf16>
    %c7 = arith.constant 7 : index
    %c0_55 = arith.constant 0 : index
    %c0_56 = arith.constant 0 : index
    %54 = vector.load %arg1[%c7, %c0_55, %c0_56] : memref<9x8x8xbf16, #tpu.memory_space<vmem>>, vector<1x8x8xbf16>
    %55 = vector.shape_cast %54 : vector<1x8x8xbf16> to vector<8x8xbf16>
    %cst_57 = arith.constant dense<0.000000e+00> : vector<128x8xf32>
    %56 = tpu.matmul %53, %55, %cst_57 {dimension_numbers = #tpu.dot_dimension_numbers<[1], [0], [0], [1], [0, 0, 1, 1], [], []>} : vector<128x8xbf16>, vector<8x8xbf16>, vector<128x8xf32> -> vector<128x8xf32>
    %57 = arith.addf %50, %56 : vector<128x8xf32>
    %c0_58 = arith.constant 0 : index
    %c2_59 = arith.constant 2 : index
    %c2_60 = arith.constant 2 : index
    %c0_61 = arith.constant 0 : index
    %58 = tpu.strided_load %arg0[%c0_58, %c2_59, %c2_60, %c0_61] {strides = array<i32: 1, 2, 2, 1>} : memref<2x18x18x8xf32, #tpu.memory_space<vmem>>, vector<2x8x8x8xf32>
    %59 = vector.shape_cast %58 : vector<2x8x8x8xf32> to vector<128x8xf32>
    %60 = arith.truncf %59 : vector<128x8xf32> to vector<128x8xbf16>
    %c8 = arith.constant 8 : index
    %c0_62 = arith.constant 0 : index
    %c0_63 = arith.constant 0 : index
    %61 = vector.load %arg1[%c8, %c0_62, %c0_63] : memref<9x8x8xbf16, #tpu.memory_space<vmem>>, vector<1x8x8xbf16>
    %62 = vector.shape_cast %61 : vector<1x8x8xbf16> to vector<8x8xbf16>
    %cst_64 = arith.constant dense<0.000000e+00> : vector<128x8xf32>
    %63 = tpu.matmul %60, %62, %cst_64 {dimension_numbers = #tpu.dot_dimension_numbers<[1], [0], [0], [1], [0, 0, 1, 1], [], []>} : vector<128x8xbf16>, vector<8x8xbf16>, vector<128x8xf32> -> vector<128x8xf32>
    %64 = arith.addf %57, %63 : vector<128x8xf32>
    %65 = vector.broadcast %0 : vector<1x8xf32> to vector<128x8xf32>
    %66 = arith.addf %64, %65 : vector<128x8xf32>
    %cst_65 = arith.constant 0.000000e+00 : f32
    %67 = vector.broadcast %cst_65 : f32 to vector<128x8xf32>
    %68 = arith.maximumf %66, %67 : vector<128x8xf32>
    %69 = vector.shape_cast %68 : vector<128x8xf32> to vector<2x8x8x8xf32>
    %cst_66 = arith.constant 0.000000e+00 : f32
    %70 = vector.broadcast %cst_66 : f32 to vector<2x10x17x8xf32>
    %c0_67 = arith.constant 0 : index
    %c0_68 = arith.constant 0 : index
    %c0_69 = arith.constant 0 : index
    %c0_70 = arith.constant 0 : index
    %71 = vector.load %arg9[%c0_67, %c0_68, %c0_69, %c0_70] : memref<2x10x17x8xf32, #tpu.memory_space<vmem>>, vector<2x10x17x8xf32>
    tpu.vector_store %arg9[%c0_67, %c0_68, %c0_69, %c0_70], %70 {strides = array<i32>} : memref<2x10x17x8xf32, #tpu.memory_space<vmem>>, vector<2x10x17x8xf32>,
    %c0_71 = arith.constant 0 : index
    %c1_72 = arith.constant 1 : index
    %c1_73 = arith.constant 1 : index
    %c0_74 = arith.constant 0 : index
    %72 = vector.load %arg9[%c0_71, %c1_72, %c1_73, %c0_74] : memref<2x10x17x8xf32, #tpu.memory_space<vmem>>, vector<2x8x8x8xf32>
    tpu.vector_store %arg9[%c0_71, %c1_72, %c1_73, %c0_74], %69 {strides = array<i32>} : memref<2x10x17x8xf32, #tpu.memory_space<vmem>>, vector<2x8x8x8xf32>,
    %c0_75 = arith.constant 0 : index
    %c0_76 = arith.constant 0 : index
    %73 = vector.load %arg4[%c0_75, %c0_76] : memref<1x16xf32, #tpu.memory_space<vmem>>, vector<1x16xf32>
    %cst_77 = arith.constant 0.000000e+00 : f32
    %74 = vector.broadcast %cst_77 : f32 to vector<64x16xf32>
    %c0_78 = arith.constant 0 : index
    %c0_79 = arith.constant 0 : index
    %c0_80 = arith.constant 0 : index
    %c0_81 = arith.constant 0 : index
    %75 = tpu.strided_load %arg9[%c0_78, %c0_79, %c0_80, %c0_81] {strides = array<i32: 1, 2, 2, 1>} : memref<2x10x17x8xf32, #tpu.memory_space<vmem>>, vector<2x4x8x8xf32>
    %76 = vector.shape_cast %75 : vector<2x4x8x8xf32> to vector<64x8xf32>
    %77 = arith.truncf %76 : vector<64x8xf32> to vector<64x8xbf16>
    %c0_82 = arith.constant 0 : index
    %c0_83 = arith.constant 0 : index
    %c0_84 = arith.constant 0 : index
    %78 = vector.load %arg3[%c0_82, %c0_83, %c0_84] : memref<9x8x16xbf16, #tpu.memory_space<vmem>>, vector<1x8x16xbf16>
    %79 = vector.shape_cast %78 : vector<1x8x16xbf16> to vector<8x16xbf16>
    %cst_85 = arith.constant dense<0.000000e+00> : vector<64x16xf32>
    %80 = tpu.matmul %77, %79, %cst_85 {dimension_numbers = #tpu.dot_dimension_numbers<[1], [0], [0], [1], [0, 0, 1, 1], [], []>} : vector<64x8xbf16>, vector<8x16xbf16>, vector<64x16xf32> -> vector<64x16xf32>
    %81 = arith.addf %74, %80 : vector<64x16xf32>
    %c0_86 = arith.constant 0 : index
    %c0_87 = arith.constant 0 : index
    %c1_88 = arith.constant 1 : index
    %c0_89 = arith.constant 0 : index
    %82 = tpu.strided_load %arg9[%c0_86, %c0_87, %c1_88, %c0_89] {strides = array<i32: 1, 2, 2, 1>} : memref<2x10x17x8xf32, #tpu.memory_space<vmem>>, vector<2x4x8x8xf32>
    %83 = vector.shape_cast %82 : vector<2x4x8x8xf32> to vector<64x8xf32>
    %84 = arith.truncf %83 : vector<64x8xf32> to vector<64x8xbf16>
    %c1_90 = arith.constant 1 : index
    %c0_91 = arith.constant 0 : index
    %c0_92 = arith.constant 0 : index
    %85 = vector.load %arg3[%c1_90, %c0_91, %c0_92] : memref<9x8x16xbf16, #tpu.memory_space<vmem>>, vector<1x8x16xbf16>
    %86 = vector.shape_cast %85 : vector<1x8x16xbf16> to vector<8x16xbf16>
    %cst_93 = arith.constant dense<0.000000e+00> : vector<64x16xf32>
    %87 = tpu.matmul %84, %86, %cst_93 {dimension_numbers = #tpu.dot_dimension_numbers<[1], [0], [0], [1], [0, 0, 1, 1], [], []>} : vector<64x8xbf16>, vector<8x16xbf16>, vector<64x16xf32> -> vector<64x16xf32>
    %88 = arith.addf %81, %87 : vector<64x16xf32>
    %c0_94 = arith.constant 0 : index
    %c0_95 = arith.constant 0 : index
    %c2_96 = arith.constant 2 : index
    %c0_97 = arith.constant 0 : index
    %89 = tpu.strided_load %arg9[%c0_94, %c0_95, %c2_96, %c0_97] {strides = array<i32: 1, 2, 2, 1>} : memref<2x10x17x8xf32, #tpu.memory_space<vmem>>, vector<2x4x8x8xf32>
    %90 = vector.shape_cast %89 : vector<2x4x8x8xf32> to vector<64x8xf32>
    %91 = arith.truncf %90 : vector<64x8xf32> to vector<64x8xbf16>
    %c2_98 = arith.constant 2 : index
    %c0_99 = arith.constant 0 : index
    %c0_100 = arith.constant 0 : index
    %92 = vector.load %arg3[%c2_98, %c0_99, %c0_100] : memref<9x8x16xbf16, #tpu.memory_space<vmem>>, vector<1x8x16xbf16>
    %93 = vector.shape_cast %92 : vector<1x8x16xbf16> to vector<8x16xbf16>
    %cst_101 = arith.constant dense<0.000000e+00> : vector<64x16xf32>
    %94 = tpu.matmul %91, %93, %cst_101 {dimension_numbers = #tpu.dot_dimension_numbers<[1], [0], [0], [1], [0, 0, 1, 1], [], []>} : vector<64x8xbf16>, vector<8x16xbf16>, vector<64x16xf32> -> vector<64x16xf32>
    %95 = arith.addf %88, %94 : vector<64x16xf32>
    %c0_102 = arith.constant 0 : index
    %c1_103 = arith.constant 1 : index
    %c0_104 = arith.constant 0 : index
    %c0_105 = arith.constant 0 : index
    %96 = tpu.strided_load %arg9[%c0_102, %c1_103, %c0_104, %c0_105] {strides = array<i32: 1, 2, 2, 1>} : memref<2x10x17x8xf32, #tpu.memory_space<vmem>>, vector<2x4x8x8xf32>
    %97 = vector.shape_cast %96 : vector<2x4x8x8xf32> to vector<64x8xf32>
    %98 = arith.truncf %97 : vector<64x8xf32> to vector<64x8xbf16>
    %c3_106 = arith.constant 3 : index
    %c0_107 = arith.constant 0 : index
    %c0_108 = arith.constant 0 : index
    %99 = vector.load %arg3[%c3_106, %c0_107, %c0_108] : memref<9x8x16xbf16, #tpu.memory_space<vmem>>, vector<1x8x16xbf16>
    %100 = vector.shape_cast %99 : vector<1x8x16xbf16> to vector<8x16xbf16>
    %cst_109 = arith.constant dense<0.000000e+00> : vector<64x16xf32>
    %101 = tpu.matmul %98, %100, %cst_109 {dimension_numbers = #tpu.dot_dimension_numbers<[1], [0], [0], [1], [0, 0, 1, 1], [], []>} : vector<64x8xbf16>, vector<8x16xbf16>, vector<64x16xf32> -> vector<64x16xf32>
    %102 = arith.addf %95, %101 : vector<64x16xf32>
    %c0_110 = arith.constant 0 : index
    %c1_111 = arith.constant 1 : index
    %c1_112 = arith.constant 1 : index
    %c0_113 = arith.constant 0 : index
    %103 = tpu.strided_load %arg9[%c0_110, %c1_111, %c1_112, %c0_113] {strides = array<i32: 1, 2, 2, 1>} : memref<2x10x17x8xf32, #tpu.memory_space<vmem>>, vector<2x4x8x8xf32>
    %104 = vector.shape_cast %103 : vector<2x4x8x8xf32> to vector<64x8xf32>
    %105 = arith.truncf %104 : vector<64x8xf32> to vector<64x8xbf16>
    %c4_114 = arith.constant 4 : index
    %c0_115 = arith.constant 0 : index
    %c0_116 = arith.constant 0 : index
    %106 = vector.load %arg3[%c4_114, %c0_115, %c0_116] : memref<9x8x16xbf16, #tpu.memory_space<vmem>>, vector<1x8x16xbf16>
    %107 = vector.shape_cast %106 : vector<1x8x16xbf16> to vector<8x16xbf16>
    %cst_117 = arith.constant dense<0.000000e+00> : vector<64x16xf32>
    %108 = tpu.matmul %105, %107, %cst_117 {dimension_numbers = #tpu.dot_dimension_numbers<[1], [0], [0], [1], [0, 0, 1, 1], [], []>} : vector<64x8xbf16>, vector<8x16xbf16>, vector<64x16xf32> -> vector<64x16xf32>
    %109 = arith.addf %102, %108 : vector<64x16xf32>
    %c0_118 = arith.constant 0 : index
    %c1_119 = arith.constant 1 : index
    %c2_120 = arith.constant 2 : index
    %c0_121 = arith.constant 0 : index
    %110 = tpu.strided_load %arg9[%c0_118, %c1_119, %c2_120, %c0_121] {strides = array<i32: 1, 2, 2, 1>} : memref<2x10x17x8xf32, #tpu.memory_space<vmem>>, vector<2x4x8x8xf32>
    %111 = vector.shape_cast %110 : vector<2x4x8x8xf32> to vector<64x8xf32>
    %112 = arith.truncf %111 : vector<64x8xf32> to vector<64x8xbf16>
    %c5_122 = arith.constant 5 : index
    %c0_123 = arith.constant 0 : index
    %c0_124 = arith.constant 0 : index
    %113 = vector.load %arg3[%c5_122, %c0_123, %c0_124] : memref<9x8x16xbf16, #tpu.memory_space<vmem>>, vector<1x8x16xbf16>
    %114 = vector.shape_cast %113 : vector<1x8x16xbf16> to vector<8x16xbf16>
    %cst_125 = arith.constant dense<0.000000e+00> : vector<64x16xf32>
    %115 = tpu.matmul %112, %114, %cst_125 {dimension_numbers = #tpu.dot_dimension_numbers<[1], [0], [0], [1], [0, 0, 1, 1], [], []>} : vector<64x8xbf16>, vector<8x16xbf16>, vector<64x16xf32> -> vector<64x16xf32>
    %116 = arith.addf %109, %115 : vector<64x16xf32>
    %c0_126 = arith.constant 0 : index
    %c2_127 = arith.constant 2 : index
    %c0_128 = arith.constant 0 : index
    %c0_129 = arith.constant 0 : index
    %117 = tpu.strided_load %arg9[%c0_126, %c2_127, %c0_128, %c0_129] {strides = array<i32: 1, 2, 2, 1>} : memref<2x10x17x8xf32, #tpu.memory_space<vmem>>, vector<2x4x8x8xf32>
    %118 = vector.shape_cast %117 : vector<2x4x8x8xf32> to vector<64x8xf32>
    %119 = arith.truncf %118 : vector<64x8xf32> to vector<64x8xbf16>
    %c6_130 = arith.constant 6 : index
    %c0_131 = arith.constant 0 : index
    %c0_132 = arith.constant 0 : index
    %120 = vector.load %arg3[%c6_130, %c0_131, %c0_132] : memref<9x8x16xbf16, #tpu.memory_space<vmem>>, vector<1x8x16xbf16>
    %121 = vector.shape_cast %120 : vector<1x8x16xbf16> to vector<8x16xbf16>
    %cst_133 = arith.constant dense<0.000000e+00> : vector<64x16xf32>
    %122 = tpu.matmul %119, %121, %cst_133 {dimension_numbers = #tpu.dot_dimension_numbers<[1], [0], [0], [1], [0, 0, 1, 1], [], []>} : vector<64x8xbf16>, vector<8x16xbf16>, vector<64x16xf32> -> vector<64x16xf32>
    %123 = arith.addf %116, %122 : vector<64x16xf32>
    %c0_134 = arith.constant 0 : index
    %c2_135 = arith.constant 2 : index
    %c1_136 = arith.constant 1 : index
    %c0_137 = arith.constant 0 : index
    %124 = tpu.strided_load %arg9[%c0_134, %c2_135, %c1_136, %c0_137] {strides = array<i32: 1, 2, 2, 1>} : memref<2x10x17x8xf32, #tpu.memory_space<vmem>>, vector<2x4x8x8xf32>
    %125 = vector.shape_cast %124 : vector<2x4x8x8xf32> to vector<64x8xf32>
    %126 = arith.truncf %125 : vector<64x8xf32> to vector<64x8xbf16>
    %c7_138 = arith.constant 7 : index
    %c0_139 = arith.constant 0 : index
    %c0_140 = arith.constant 0 : index
    %127 = vector.load %arg3[%c7_138, %c0_139, %c0_140] : memref<9x8x16xbf16, #tpu.memory_space<vmem>>, vector<1x8x16xbf16>
    %128 = vector.shape_cast %127 : vector<1x8x16xbf16> to vector<8x16xbf16>
    %cst_141 = arith.constant dense<0.000000e+00> : vector<64x16xf32>
    %129 = tpu.matmul %126, %128, %cst_141 {dimension_numbers = #tpu.dot_dimension_numbers<[1], [0], [0], [1], [0, 0, 1, 1], [], []>} : vector<64x8xbf16>, vector<8x16xbf16>, vector<64x16xf32> -> vector<64x16xf32>
    %130 = arith.addf %123, %129 : vector<64x16xf32>
    %c0_142 = arith.constant 0 : index
    %c2_143 = arith.constant 2 : index
    %c2_144 = arith.constant 2 : index
    %c0_145 = arith.constant 0 : index
    %131 = tpu.strided_load %arg9[%c0_142, %c2_143, %c2_144, %c0_145] {strides = array<i32: 1, 2, 2, 1>} : memref<2x10x17x8xf32, #tpu.memory_space<vmem>>, vector<2x4x8x8xf32>
    %132 = vector.shape_cast %131 : vector<2x4x8x8xf32> to vector<64x8xf32>
    %133 = arith.truncf %132 : vector<64x8xf32> to vector<64x8xbf16>
    %c8_146 = arith.constant 8 : index
    %c0_147 = arith.constant 0 : index
    %c0_148 = arith.constant 0 : index
    %134 = vector.load %arg3[%c8_146, %c0_147, %c0_148] : memref<9x8x16xbf16, #tpu.memory_space<vmem>>, vector<1x8x16xbf16>
    %135 = vector.shape_cast %134 : vector<1x8x16xbf16> to vector<8x16xbf16>
    %cst_149 = arith.constant dense<0.000000e+00> : vector<64x16xf32>
    %136 = tpu.matmul %133, %135, %cst_149 {dimension_numbers = #tpu.dot_dimension_numbers<[1], [0], [0], [1], [0, 0, 1, 1], [], []>} : vector<64x8xbf16>, vector<8x16xbf16>, vector<64x16xf32> -> vector<64x16xf32>
    %137 = arith.addf %130, %136 : vector<64x16xf32>
    %138 = vector.broadcast %73 : vector<1x16xf32> to vector<64x16xf32>
    %139 = arith.addf %137, %138 : vector<64x16xf32>
    %cst_150 = arith.constant 0.000000e+00 : f32
    %140 = vector.broadcast %cst_150 : f32 to vector<64x16xf32>
    %141 = arith.maximumf %139, %140 : vector<64x16xf32>
    %142 = vector.shape_cast %141 : vector<64x16xf32> to vector<2x4x8x16xf32>
    %143 = arith.truncf %142 : vector<2x4x8x16xf32> to vector<2x4x8x16xbf16>
    %cst_151 = arith.constant 0.000000e+00 : f32
    %144 = vector.broadcast %cst_151 : f32 to vector<2x64xf32>
    %145 = vector.extract_strided_slice %143 {offsets = [0, 0, 0, 0], sizes = [2, 1, 1, 16], strides = [1, 1, 1, 1]} : vector<2x4x8x16xbf16> to vector<2x1x1x16xbf16>
    %146 = vector.shape_cast %145 : vector<2x1x1x16xbf16> to vector<2x16xbf16>
    %c0_152 = arith.constant 0 : index
    %c0_153 = arith.constant 0 : index
    %c0_154 = arith.constant 0 : index
    %147 = vector.load %arg5[%c0_152, %c0_153, %c0_154] : memref<16x16x64xbf16, #tpu.memory_space<vmem>>, vector<1x16x64xbf16>
    %148 = vector.shape_cast %147 : vector<1x16x64xbf16> to vector<16x64xbf16>
    %cst_155 = arith.constant dense<0.000000e+00> : vector<2x64xf32>
    %149 = tpu.matmul %146, %148, %cst_155 {dimension_numbers = #tpu.dot_dimension_numbers<[1], [0], [0], [1], [0, 0, 1, 1], [], []>} : vector<2x16xbf16>, vector<16x64xbf16>, vector<2x64xf32> -> vector<2x64xf32>
    %150 = arith.addf %144, %149 : vector<2x64xf32>
    %151 = vector.extract_strided_slice %143 {offsets = [0, 0, 1, 0], sizes = [2, 1, 1, 16], strides = [1, 1, 1, 1]} : vector<2x4x8x16xbf16> to vector<2x1x1x16xbf16>
    %152 = vector.shape_cast %151 : vector<2x1x1x16xbf16> to vector<2x16xbf16>
    %c1_156 = arith.constant 1 : index
    %c0_157 = arith.constant 0 : index
    %c0_158 = arith.constant 0 : index
    %153 = vector.load %arg5[%c1_156, %c0_157, %c0_158] : memref<16x16x64xbf16, #tpu.memory_space<vmem>>, vector<1x16x64xbf16>
    %154 = vector.shape_cast %153 : vector<1x16x64xbf16> to vector<16x64xbf16>
    %cst_159 = arith.constant dense<0.000000e+00> : vector<2x64xf32>
    %155 = tpu.matmul %152, %154, %cst_159 {dimension_numbers = #tpu.dot_dimension_numbers<[1], [0], [0], [1], [0, 0, 1, 1], [], []>} : vector<2x16xbf16>, vector<16x64xbf16>, vector<2x64xf32> -> vector<2x64xf32>
    %156 = arith.addf %150, %155 : vector<2x64xf32>
    %157 = vector.extract_strided_slice %143 {offsets = [0, 0, 2, 0], sizes = [2, 1, 1, 16], strides = [1, 1, 1, 1]} : vector<2x4x8x16xbf16> to vector<2x1x1x16xbf16>
    %158 = vector.shape_cast %157 : vector<2x1x1x16xbf16> to vector<2x16xbf16>
    %c2_160 = arith.constant 2 : index
    %c0_161 = arith.constant 0 : index
    %c0_162 = arith.constant 0 : index
    %159 = vector.load %arg5[%c2_160, %c0_161, %c0_162] : memref<16x16x64xbf16, #tpu.memory_space<vmem>>, vector<1x16x64xbf16>
    %160 = vector.shape_cast %159 : vector<1x16x64xbf16> to vector<16x64xbf16>
    %cst_163 = arith.constant dense<0.000000e+00> : vector<2x64xf32>
    %161 = tpu.matmul %158, %160, %cst_163 {dimension_numbers = #tpu.dot_dimension_numbers<[1], [0], [0], [1], [0, 0, 1, 1], [], []>} : vector<2x16xbf16>, vector<16x64xbf16>, vector<2x64xf32> -> vector<2x64xf32>
    %162 = arith.addf %156, %161 : vector<2x64xf32>
    %163 = vector.extract_strided_slice %143 {offsets = [0, 0, 3, 0], sizes = [2, 1, 1, 16], strides = [1, 1, 1, 1]} : vector<2x4x8x16xbf16> to vector<2x1x1x16xbf16>
    %164 = vector.shape_cast %163 : vector<2x1x1x16xbf16> to vector<2x16xbf16>
    %c3_164 = arith.constant 3 : index
    %c0_165 = arith.constant 0 : index
    %c0_166 = arith.constant 0 : index
    %165 = vector.load %arg5[%c3_164, %c0_165, %c0_166] : memref<16x16x64xbf16, #tpu.memory_space<vmem>>, vector<1x16x64xbf16>
    %166 = vector.shape_cast %165 : vector<1x16x64xbf16> to vector<16x64xbf16>
    %cst_167 = arith.constant dense<0.000000e+00> : vector<2x64xf32>
    %167 = tpu.matmul %164, %166, %cst_167 {dimension_numbers = #tpu.dot_dimension_numbers<[1], [0], [0], [1], [0, 0, 1, 1], [], []>} : vector<2x16xbf16>, vector<16x64xbf16>, vector<2x64xf32> -> vector<2x64xf32>
    %168 = arith.addf %162, %167 : vector<2x64xf32>
    %169 = vector.extract_strided_slice %143 {offsets = [0, 1, 0, 0], sizes = [2, 1, 1, 16], strides = [1, 1, 1, 1]} : vector<2x4x8x16xbf16> to vector<2x1x1x16xbf16>
    %170 = vector.shape_cast %169 : vector<2x1x1x16xbf16> to vector<2x16xbf16>
    %c4_168 = arith.constant 4 : index
    %c0_169 = arith.constant 0 : index
    %c0_170 = arith.constant 0 : index
    %171 = vector.load %arg5[%c4_168, %c0_169, %c0_170] : memref<16x16x64xbf16, #tpu.memory_space<vmem>>, vector<1x16x64xbf16>
    %172 = vector.shape_cast %171 : vector<1x16x64xbf16> to vector<16x64xbf16>
    %cst_171 = arith.constant dense<0.000000e+00> : vector<2x64xf32>
    %173 = tpu.matmul %170, %172, %cst_171 {dimension_numbers = #tpu.dot_dimension_numbers<[1], [0], [0], [1], [0, 0, 1, 1], [], []>} : vector<2x16xbf16>, vector<16x64xbf16>, vector<2x64xf32> -> vector<2x64xf32>
    %174 = arith.addf %168, %173 : vector<2x64xf32>
    %175 = vector.extract_strided_slice %143 {offsets = [0, 1, 1, 0], sizes = [2, 1, 1, 16], strides = [1, 1, 1, 1]} : vector<2x4x8x16xbf16> to vector<2x1x1x16xbf16>
    %176 = vector.shape_cast %175 : vector<2x1x1x16xbf16> to vector<2x16xbf16>
    %c5_172 = arith.constant 5 : index
    %c0_173 = arith.constant 0 : index
    %c0_174 = arith.constant 0 : index
    %177 = vector.load %arg5[%c5_172, %c0_173, %c0_174] : memref<16x16x64xbf16, #tpu.memory_space<vmem>>, vector<1x16x64xbf16>
    %178 = vector.shape_cast %177 : vector<1x16x64xbf16> to vector<16x64xbf16>
    %cst_175 = arith.constant dense<0.000000e+00> : vector<2x64xf32>
    %179 = tpu.matmul %176, %178, %cst_175 {dimension_numbers = #tpu.dot_dimension_numbers<[1], [0], [0], [1], [0, 0, 1, 1], [], []>} : vector<2x16xbf16>, vector<16x64xbf16>, vector<2x64xf32> -> vector<2x64xf32>
    %180 = arith.addf %174, %179 : vector<2x64xf32>
    %181 = vector.extract_strided_slice %143 {offsets = [0, 1, 2, 0], sizes = [2, 1, 1, 16], strides = [1, 1, 1, 1]} : vector<2x4x8x16xbf16> to vector<2x1x1x16xbf16>
    %182 = vector.shape_cast %181 : vector<2x1x1x16xbf16> to vector<2x16xbf16>
    %c6_176 = arith.constant 6 : index
    %c0_177 = arith.constant 0 : index
    %c0_178 = arith.constant 0 : index
    %183 = vector.load %arg5[%c6_176, %c0_177, %c0_178] : memref<16x16x64xbf16, #tpu.memory_space<vmem>>, vector<1x16x64xbf16>
    %184 = vector.shape_cast %183 : vector<1x16x64xbf16> to vector<16x64xbf16>
    %cst_179 = arith.constant dense<0.000000e+00> : vector<2x64xf32>
    %185 = tpu.matmul %182, %184, %cst_179 {dimension_numbers = #tpu.dot_dimension_numbers<[1], [0], [0], [1], [0, 0, 1, 1], [], []>} : vector<2x16xbf16>, vector<16x64xbf16>, vector<2x64xf32> -> vector<2x64xf32>
    %186 = arith.addf %180, %185 : vector<2x64xf32>
    %187 = vector.extract_strided_slice %143 {offsets = [0, 1, 3, 0], sizes = [2, 1, 1, 16], strides = [1, 1, 1, 1]} : vector<2x4x8x16xbf16> to vector<2x1x1x16xbf16>
    %188 = vector.shape_cast %187 : vector<2x1x1x16xbf16> to vector<2x16xbf16>
    %c7_180 = arith.constant 7 : index
    %c0_181 = arith.constant 0 : index
    %c0_182 = arith.constant 0 : index
    %189 = vector.load %arg5[%c7_180, %c0_181, %c0_182] : memref<16x16x64xbf16, #tpu.memory_space<vmem>>, vector<1x16x64xbf16>
    %190 = vector.shape_cast %189 : vector<1x16x64xbf16> to vector<16x64xbf16>
    %cst_183 = arith.constant dense<0.000000e+00> : vector<2x64xf32>
    %191 = tpu.matmul %188, %190, %cst_183 {dimension_numbers = #tpu.dot_dimension_numbers<[1], [0], [0], [1], [0, 0, 1, 1], [], []>} : vector<2x16xbf16>, vector<16x64xbf16>, vector<2x64xf32> -> vector<2x64xf32>
    %192 = arith.addf %186, %191 : vector<2x64xf32>
    %193 = vector.extract_strided_slice %143 {offsets = [0, 2, 0, 0], sizes = [2, 1, 1, 16], strides = [1, 1, 1, 1]} : vector<2x4x8x16xbf16> to vector<2x1x1x16xbf16>
    %194 = vector.shape_cast %193 : vector<2x1x1x16xbf16> to vector<2x16xbf16>
    %c8_184 = arith.constant 8 : index
    %c0_185 = arith.constant 0 : index
    %c0_186 = arith.constant 0 : index
    %195 = vector.load %arg5[%c8_184, %c0_185, %c0_186] : memref<16x16x64xbf16, #tpu.memory_space<vmem>>, vector<1x16x64xbf16>
    %196 = vector.shape_cast %195 : vector<1x16x64xbf16> to vector<16x64xbf16>
    %cst_187 = arith.constant dense<0.000000e+00> : vector<2x64xf32>
    %197 = tpu.matmul %194, %196, %cst_187 {dimension_numbers = #tpu.dot_dimension_numbers<[1], [0], [0], [1], [0, 0, 1, 1], [], []>} : vector<2x16xbf16>, vector<16x64xbf16>, vector<2x64xf32> -> vector<2x64xf32>
    %198 = arith.addf %192, %197 : vector<2x64xf32>
    %199 = vector.extract_strided_slice %143 {offsets = [0, 2, 1, 0], sizes = [2, 1, 1, 16], strides = [1, 1, 1, 1]} : vector<2x4x8x16xbf16> to vector<2x1x1x16xbf16>
    %200 = vector.shape_cast %199 : vector<2x1x1x16xbf16> to vector<2x16xbf16>
    %c9 = arith.constant 9 : index
    %c0_188 = arith.constant 0 : index
    %c0_189 = arith.constant 0 : index
    %201 = vector.load %arg5[%c9, %c0_188, %c0_189] : memref<16x16x64xbf16, #tpu.memory_space<vmem>>, vector<1x16x64xbf16>
    %202 = vector.shape_cast %201 : vector<1x16x64xbf16> to vector<16x64xbf16>
    %cst_190 = arith.constant dense<0.000000e+00> : vector<2x64xf32>
    %203 = tpu.matmul %200, %202, %cst_190 {dimension_numbers = #tpu.dot_dimension_numbers<[1], [0], [0], [1], [0, 0, 1, 1], [], []>} : vector<2x16xbf16>, vector<16x64xbf16>, vector<2x64xf32> -> vector<2x64xf32>
    %204 = arith.addf %198, %203 : vector<2x64xf32>
    %205 = vector.extract_strided_slice %143 {offsets = [0, 2, 2, 0], sizes = [2, 1, 1, 16], strides = [1, 1, 1, 1]} : vector<2x4x8x16xbf16> to vector<2x1x1x16xbf16>
    %206 = vector.shape_cast %205 : vector<2x1x1x16xbf16> to vector<2x16xbf16>
    %c10 = arith.constant 10 : index
    %c0_191 = arith.constant 0 : index
    %c0_192 = arith.constant 0 : index
    %207 = vector.load %arg5[%c10, %c0_191, %c0_192] : memref<16x16x64xbf16, #tpu.memory_space<vmem>>, vector<1x16x64xbf16>
    %208 = vector.shape_cast %207 : vector<1x16x64xbf16> to vector<16x64xbf16>
    %cst_193 = arith.constant dense<0.000000e+00> : vector<2x64xf32>
    %209 = tpu.matmul %206, %208, %cst_193 {dimension_numbers = #tpu.dot_dimension_numbers<[1], [0], [0], [1], [0, 0, 1, 1], [], []>} : vector<2x16xbf16>, vector<16x64xbf16>, vector<2x64xf32> -> vector<2x64xf32>
    %210 = arith.addf %204, %209 : vector<2x64xf32>
    %211 = vector.extract_strided_slice %143 {offsets = [0, 2, 3, 0], sizes = [2, 1, 1, 16], strides = [1, 1, 1, 1]} : vector<2x4x8x16xbf16> to vector<2x1x1x16xbf16>
    %212 = vector.shape_cast %211 : vector<2x1x1x16xbf16> to vector<2x16xbf16>
    %c11 = arith.constant 11 : index
    %c0_194 = arith.constant 0 : index
    %c0_195 = arith.constant 0 : index
    %213 = vector.load %arg5[%c11, %c0_194, %c0_195] : memref<16x16x64xbf16, #tpu.memory_space<vmem>>, vector<1x16x64xbf16>
    %214 = vector.shape_cast %213 : vector<1x16x64xbf16> to vector<16x64xbf16>
    %cst_196 = arith.constant dense<0.000000e+00> : vector<2x64xf32>
    %215 = tpu.matmul %212, %214, %cst_196 {dimension_numbers = #tpu.dot_dimension_numbers<[1], [0], [0], [1], [0, 0, 1, 1], [], []>} : vector<2x16xbf16>, vector<16x64xbf16>, vector<2x64xf32> -> vector<2x64xf32>
    %216 = arith.addf %210, %215 : vector<2x64xf32>
    %217 = vector.extract_strided_slice %143 {offsets = [0, 3, 0, 0], sizes = [2, 1, 1, 16], strides = [1, 1, 1, 1]} : vector<2x4x8x16xbf16> to vector<2x1x1x16xbf16>
    %218 = vector.shape_cast %217 : vector<2x1x1x16xbf16> to vector<2x16xbf16>
    %c12 = arith.constant 12 : index
    %c0_197 = arith.constant 0 : index
    %c0_198 = arith.constant 0 : index
    %219 = vector.load %arg5[%c12, %c0_197, %c0_198] : memref<16x16x64xbf16, #tpu.memory_space<vmem>>, vector<1x16x64xbf16>
    %220 = vector.shape_cast %219 : vector<1x16x64xbf16> to vector<16x64xbf16>
    %cst_199 = arith.constant dense<0.000000e+00> : vector<2x64xf32>
    %221 = tpu.matmul %218, %220, %cst_199 {dimension_numbers = #tpu.dot_dimension_numbers<[1], [0], [0], [1], [0, 0, 1, 1], [], []>} : vector<2x16xbf16>, vector<16x64xbf16>, vector<2x64xf32> -> vector<2x64xf32>
    %222 = arith.addf %216, %221 : vector<2x64xf32>
    %223 = vector.extract_strided_slice %143 {offsets = [0, 3, 1, 0], sizes = [2, 1, 1, 16], strides = [1, 1, 1, 1]} : vector<2x4x8x16xbf16> to vector<2x1x1x16xbf16>
    %224 = vector.shape_cast %223 : vector<2x1x1x16xbf16> to vector<2x16xbf16>
    %c13 = arith.constant 13 : index
    %c0_200 = arith.constant 0 : index
    %c0_201 = arith.constant 0 : index
    %225 = vector.load %arg5[%c13, %c0_200, %c0_201] : memref<16x16x64xbf16, #tpu.memory_space<vmem>>, vector<1x16x64xbf16>
    %226 = vector.shape_cast %225 : vector<1x16x64xbf16> to vector<16x64xbf16>
    %cst_202 = arith.constant dense<0.000000e+00> : vector<2x64xf32>
    %227 = tpu.matmul %224, %226, %cst_202 {dimension_numbers = #tpu.dot_dimension_numbers<[1], [0], [0], [1], [0, 0, 1, 1], [], []>} : vector<2x16xbf16>, vector<16x64xbf16>, vector<2x64xf32> -> vector<2x64xf32>
    %228 = arith.addf %222, %227 : vector<2x64xf32>
    %229 = vector.extract_strided_slice %143 {offsets = [0, 3, 2, 0], sizes = [2, 1, 1, 16], strides = [1, 1, 1, 1]} : vector<2x4x8x16xbf16> to vector<2x1x1x16xbf16>
    %230 = vector.shape_cast %229 : vector<2x1x1x16xbf16> to vector<2x16xbf16>
    %c14 = arith.constant 14 : index
    %c0_203 = arith.constant 0 : index
    %c0_204 = arith.constant 0 : index
    %231 = vector.load %arg5[%c14, %c0_203, %c0_204] : memref<16x16x64xbf16, #tpu.memory_space<vmem>>, vector<1x16x64xbf16>
    %232 = vector.shape_cast %231 : vector<1x16x64xbf16> to vector<16x64xbf16>
    %cst_205 = arith.constant dense<0.000000e+00> : vector<2x64xf32>
    %233 = tpu.matmul %230, %232, %cst_205 {dimension_numbers = #tpu.dot_dimension_numbers<[1], [0], [0], [1], [0, 0, 1, 1], [], []>} : vector<2x16xbf16>, vector<16x64xbf16>, vector<2x64xf32> -> vector<2x64xf32>
    %234 = arith.addf %228, %233 : vector<2x64xf32>
    %235 = vector.extract_strided_slice %143 {offsets = [0, 3, 3, 0], sizes = [2, 1, 1, 16], strides = [1, 1, 1, 1]} : vector<2x4x8x16xbf16> to vector<2x1x1x16xbf16>
    %236 = vector.shape_cast %235 : vector<2x1x1x16xbf16> to vector<2x16xbf16>
    %c15 = arith.constant 15 : index
    %c0_206 = arith.constant 0 : index
    %c0_207 = arith.constant 0 : index
    %237 = vector.load %arg5[%c15, %c0_206, %c0_207] : memref<16x16x64xbf16, #tpu.memory_space<vmem>>, vector<1x16x64xbf16>
    %238 = vector.shape_cast %237 : vector<1x16x64xbf16> to vector<16x64xbf16>
    %cst_208 = arith.constant dense<0.000000e+00> : vector<2x64xf32>
    %239 = tpu.matmul %236, %238, %cst_208 {dimension_numbers = #tpu.dot_dimension_numbers<[1], [0], [0], [1], [0, 0, 1, 1], [], []>} : vector<2x16xbf16>, vector<16x64xbf16>, vector<2x64xf32> -> vector<2x64xf32>
    %240 = arith.addf %234, %239 : vector<2x64xf32>
    %c0_209 = arith.constant 0 : index
    %c0_210 = arith.constant 0 : index
    %241 = vector.load %arg6[%c0_209, %c0_210] : memref<1x64xf32, #tpu.memory_space<vmem>>, vector<1x64xf32>
    %242 = vector.broadcast %241 : vector<1x64xf32> to vector<2x64xf32>
    %243 = arith.addf %240, %242 : vector<2x64xf32>
    %244 = vector.extract_strided_slice %243 {offsets = [0, 0], sizes = [2, 32], strides = [1, 1]} : vector<2x64xf32> to vector<2x32xf32>
    %c0_211 = arith.constant 0 : index
    %c0_212 = arith.constant 0 : index
    %245 = vector.load %arg7[%c0_211, %c0_212] : memref<2x32xf32, #tpu.memory_space<vmem>>, vector<2x32xf32>
    tpu.vector_store %arg7[%c0_211, %c0_212], %244 {strides = array<i32>} : memref<2x32xf32, #tpu.memory_space<vmem>>, vector<2x32xf32>,
    %246 = vector.extract_strided_slice %243 {offsets = [0, 32], sizes = [2, 32], strides = [1, 1]} : vector<2x64xf32> to vector<2x32xf32>
    %cst_213 = arith.constant 0.000000e+00 : f32
    %247 = vector.broadcast %cst_213 : f32 to vector<2x32xf32>
    %248 = arith.maximumf %246, %247 : vector<2x32xf32>
    %249 = vector.broadcast %cst_213 : f32 to vector<2x32xf32>
    %250 = arith.subf %246, %249 : vector<2x32xf32>
    %251 = arith.cmpf one, %250, %250 : vector<2x32xf32>
    %252 = vector.broadcast %cst_213 : f32 to vector<2x32xf32>
    %253 = arith.addf %246, %252 : vector<2x32xf32>
    %254 = math.absf %250 : vector<2x32xf32>
    %cst_214 = arith.constant 0.000000e+00 : f32
    %255 = vector.broadcast %cst_214 : f32 to vector<2x32xf32>
    %256 = arith.subf %255, %254 : vector<2x32xf32>
    %257 = math.exp %256 : vector<2x32xf32>
    %258 = math.log1p %257 : vector<2x32xf32>
    %259 = arith.addf %248, %258 : vector<2x32xf32>
    %260 = arith.select %251, %253, %259 : vector<2x32xi1>, vector<2x32xf32>
    %c0_215 = arith.constant 0 : index
    %c0_216 = arith.constant 0 : index
    %261 = vector.load %arg8[%c0_215, %c0_216] : memref<2x32xf32, #tpu.memory_space<vmem>>, vector<2x32xf32>
    tpu.vector_store %arg8[%c0_215, %c0_216], %260 {strides = array<i32>} : memref<2x32xf32, #tpu.memory_space<vmem>>, vector<2x32xf32>,
    return
  }
}

</mosaic_0001>

<llo_original>
// kernel: forward.1
$region0: #{forward.1}
  #allocation0 [shape = 'u32[]', space=smem, size = 0x4, offset = 0x4, fixed_abs, tag = 'smem constant byte address 0x4 - core index']
  #allocation1 [shape = 'u32[144,128]{1,0:T(1,128)}', space=vmem, size = 0x12000, scoped, tag = 'internal scratch']
  #allocation2 [shape = 'f32[2,10,17,8]{3,2,1,0:T(8,128)}', space=vmem, size = 0x3c000, scoped, tag = 'scratch operand']
  %s0 = inlined_call_operand.vmem [shape: f32[2,18,18,8], index: 0, kind: input, shape index: {}]
  %s1 = inlined_call_operand.vmem [shape: bf16[9,8,8], index: 1, kind: input, shape index: {}]
  %s2 = inlined_call_operand.vmem [shape: f32[1,8], index: 2, kind: input, shape index: {}]
  %s3 = inlined_call_operand.vmem [shape: bf16[9,8,16], index: 3, kind: input, shape index: {}]
  %s4 = inlined_call_operand.vmem [shape: f32[1,16], index: 4, kind: input, shape index: {}]
  %s5 = inlined_call_operand.vmem [shape: bf16[16,16,64], index: 5, kind: input, shape index: {}]
  %s6 = inlined_call_operand.vmem [shape: f32[1,64], index: 6, kind: input, shape index: {}]
  %s7 = inlined_call_operand.hbm [shape: f32[2,32], index: 7, kind: output, shape index: {0}]
  %s8 = inlined_call_operand.hbm [shape: f32[2,32], index: 8, kind: output, shape index: {1}]
  %9 = xla_tuple %s7, %s8
  %s10 = sld [smem:[#allocation0]]
  $region46: #{forward.1} parent=0
    _
  %s12 = ssub.s32 1, %s10
  %s13 = scalar_select 0, %s12, %s10
  $region1: #{forward.1} parent=0
    #allocation3 [shape = 'u8[1024]{0}', space=vmem, size = 0x400, scoped, tag = 'output window, operand 0, single buffered']
    #allocation4 [shape = 's32[1]{0}', space=sflag, size = 0x4, scoped, tag = 'scoped memory for forward.1']
    #allocation5 [shape = 'u8[1024]{0}', space=vmem, size = 0x400, scoped, tag = 'output window, operand 1, single buffered']
    #allocation6 [shape = 's32[1]{0}', space=sflag, size = 0x4, scoped, tag = 'scoped memory for forward.1']
    %14 = vsyncpa [#allocation4], 0
    %15 = vsyncpa [#allocation6], 0
    // Predicated region
    $region2: #{forward.1} parent=1 // pred_check
      _
    $region3: #{forward.1} parent=1 // pred_check_branch
      %17 = sbr.rel (0) target = $region5
    $region4: #{forward.1} parent=1 // pred_region
      _
    $region5: #{forward.1} parent=1 // pred_fallthru
      _
    // Predicated region
    $region6: #{forward.1} parent=1 // pred_check
      _
    $region7: #{forward.1} parent=1 // pred_check_branch
      %19 = sbr.rel (0) target = $region9
    $region8: #{forward.1} parent=1 // pred_region
      _
    $region9: #{forward.1} parent=1 // pred_fallthru
      _
    // Predicated region
    $region10: #{forward.1} parent=1 // pred_check
      _
    $region11: #{forward.1} parent=1 // pred_check_branch
      %21 = sbr.rel (0) target = $region13
    $region12: #{forward.1} parent=1 // pred_region
      _
    $region13: #{forward.1} parent=1 // pred_fallthru
      _
    // Predicated region
    $region14: #{forward.1} parent=1 // pred_check
      _
    $region15: #{forward.1} parent=1 // pred_check_branch
      %23 = sbr.rel (0) target = $region17
    $region16: #{forward.1} parent=1 // pred_region
      _
    $region17: #{forward.1} parent=1 // pred_fallthru
      _
    // Predicated region
    $region18: #{forward.1} parent=1 // pred_check
      _
    $region19: #{forward.1} parent=1 // pred_check_branch
      %25 = sbr.rel (0) target = $region21
    $region20: #{forward.1} parent=1 // pred_region
      _
    $region21: #{forward.1} parent=1 // pred_fallthru
      _
    // Predicated region
    $region22: #{forward.1} parent=1 // pred_check
      _
    $region23: #{forward.1} parent=1 // pred_check_branch
      %27 = sbr.rel (0) target = $region25
    $region24: #{forward.1} parent=1 // pred_region
      _
    $region25: #{forward.1} parent=1 // pred_fallthru
      _
    // Predicated region
    $region26: #{forward.1} parent=1 // pred_check
      _
    $region27: #{forward.1} parent=1 // pred_check_branch
      %29 = sbr.rel (0) target = $region29
    $region28: #{forward.1} parent=1 // pred_region
      _
    $region29: #{forward.1} parent=1 // pred_fallthru
      _
    %v31 = vld [vmem:[%s2] sm:$0x1]
    %v32 = vld [vmem:[%s0] ss:$2 sm:$0xff]
    %s33 = scalar_lea.vmem %s0, 48
    %v34 = vld [vmem:[%s33] ss:$2 sm:$0xff]
    %s35 = scalar_lea.vmem %s0, 96
    %v36 = vld [vmem:[%s35] ss:$2 sm:$0xff]
    %s37 = scalar_lea.vmem %s0, 144
    %v38 = vld [vmem:[%s37] ss:$2 sm:$0xff]
    %s39 = scalar_lea.vmem %s0, 192
    %v40 = vld [vmem:[%s39] ss:$2 sm:$0xff]
    %s41 = scalar_lea.vmem %s0, 240
    %v42 = vld [vmem:[%s41] ss:$2 sm:$0xff]
    %s43 = scalar_lea.vmem %s0, 288
    %v44 = vld [vmem:[%s43] ss:$2 sm:$0xff]
    %s45 = scalar_lea.vmem %s0, 336
    %v46 = vld [vmem:[%s45] ss:$2 sm:$0xff]
    %s47 = scalar_lea.vmem %s0, 432
    %v48 = vld [vmem:[%s47] ss:$2 sm:$0xff]
    %s49 = scalar_lea.vmem %s0, 480
    %v50 = vld [vmem:[%s49] ss:$2 sm:$0xff]
    %s51 = scalar_lea.vmem %s0, 528
    %v52 = vld [vmem:[%s51] ss:$2 sm:$0xff]
    %s53 = scalar_lea.vmem %s0, 576
    %v54 = vld [vmem:[%s53] ss:$2 sm:$0xff]
    %s55 = scalar_lea.vmem %s0, 624
    %v56 = vld [vmem:[%s55] ss:$2 sm:$0xff]
    %s57 = scalar_lea.vmem %s0, 672
    %v58 = vld [vmem:[%s57] ss:$2 sm:$0xff]
    %s59 = scalar_lea.vmem %s0, 720
    %v60 = vld [vmem:[%s59] ss:$2 sm:$0xff]
    %s61 = scalar_lea.vmem %s0, 768
    %v62 = vld [vmem:[%s61] ss:$2 sm:$0xff]
    %v63 = vpack.c.bf16 %v34, %v32
    %v64 = vpack.c.bf16 %v38, %v36
    %v65 = vpack.c.bf16 %v42, %v40
    %v66 = vpack.c.bf16 %v46, %v44
    %v67 = vpack.c.bf16 %v50, %v48
    %v68 = vpack.c.bf16 %v54, %v52
    %v69 = vpack.c.bf16 %v58, %v56
    %v70 = vpack.c.bf16 %v62, %v60
    %v71 = vld [vmem:[%s1] sm:$0xf]
    %s72 = scalar_lea.vmem %s0, 1
    %v73 = vld [vmem:[%s72] ss:$2 sm:$0xff]
    %s74 = scalar_lea.vmem %s0, 49
    %v75 = vld [vmem:[%s74] ss:$2 sm:$0xff]
    %s76 = scalar_lea.vmem %s0, 97
    %v77 = vld [vmem:[%s76] ss:$2 sm:$0xff]
    %s78 = scalar_lea.vmem %s0, 145
    %v79 = vld [vmem:[%s78] ss:$2 sm:$0xff]
    %s80 = scalar_lea.vmem %s0, 193
    %v81 = vld [vmem:[%s80] ss:$2 sm:$0xff]
    %s82 = scalar_lea.vmem %s0, 241
    %v83 = vld [vmem:[%s82] ss:$2 sm:$0xff]
    %s84 = scalar_lea.vmem %s0, 289
    %v85 = vld [vmem:[%s84] ss:$2 sm:$0xff]
    %s86 = scalar_lea.vmem %s0, 337
    %v87 = vld [vmem:[%s86] ss:$2 sm:$0xff]
    %s88 = scalar_lea.vmem %s0, 433
    %v89 = vld [vmem:[%s88] ss:$2 sm:$0xff]
    %s90 = scalar_lea.vmem %s0, 481
    %v91 = vld [vmem:[%s90] ss:$2 sm:$0xff]
    %s92 = scalar_lea.vmem %s0, 529
    %v93 = vld [vmem:[%s92] ss:$2 sm:$0xff]
    %s94 = scalar_lea.vmem %s0, 577
    %v95 = vld [vmem:[%s94] ss:$2 sm:$0xff]
    %s96 = scalar_lea.vmem %s0, 625
    %v97 = vld [vmem:[%s96] ss:$2 sm:$0xff]
    %s98 = scalar_lea.vmem %s0, 673
    %v99 = vld [vmem:[%s98] ss:$2 sm:$0xff]
    %s100 = scalar_lea.vmem %s0, 721
    %v101 = vld [vmem:[%s100] ss:$2 sm:$0xff]
    %s102 = scalar_lea.vmem %s0, 769
    %v103 = vld [vmem:[%s102] ss:$2 sm:$0xff]
    %v104 = vpack.c.bf16 %v75, %v73
    %v105 = vpack.c.bf16 %v79, %v77
    %v106 = vpack.c.bf16 %v83, %v81
    %v107 = vpack.c.bf16 %v87, %v85
    %v108 = vpack.c.bf16 %v91, %v89
    %v109 = vpack.c.bf16 %v95, %v93
    %v110 = vpack.c.bf16 %v99, %v97
    %v111 = vpack.c.bf16 %v103, %v101
    %s112 = scalar_lea.vmem %s1, 4
    %v113 = vld [vmem:[%s112] sm:$0xf]
    %vm114 = vcmask 64512
    %v116 = vsel %vm114, %v104, 0
    %v119 = vsel %vm114, %v105, 0
    %v122 = vsel %vm114, %v106, 0
    %v125 = vsel %vm114, %v107, 0
    %v128 = vsel %vm114, %v108, 0
    %v131 = vsel %vm114, %v109, 0
    %v134 = vsel %vm114, %v110, 0
    %v137 = vsel %vm114, %v111, 0
    %vm139 = vcmask 1043456
    %v141 = vsel %vm139, %v113, 0
    %143 = vmatprep.subr.bf16.mxu0 0
    %144 = vmatpush1.bf16.msra.mxu0 0
    %145 = vmatprep.subr.bf16.mxu0 0
    %146 = vmatpush1.bf16.msra.mxu0 0
    %147 = vmatprep.subr.bf16.mxu0 0
    %148 = vmatpush1.bf16.msra.mxu0 0
    %149 = vmatprep.subr.bf16.mxu0 0
    %150 = vmatpush1.bf16.msra.mxu0 0
    %151 = vmatprep.subr.bf16.mxu0 0
    %152 = vmatpush1.bf16.msra.mxu0 0
    %153 = vmatprep.subr.bf16.mxu0 0
    %154 = vmatpush1.bf16.msra.mxu0 0
    %155 = vmatprep.subr.bf16.mxu0 0
    %156 = vmatpush1.bf16.msra.mxu0 0
    %157 = vmatprep.subr.bf16.mxu0 0
    %158 = vmatpush1.bf16.msra.mxu0 %v141
    %159 = vmatprep.subr.bf16.mxu0 0
    %160 = vmatpush2.bf16.msra.mxu0 0
    %161 = vmatprep.subr.bf16.mxu0 0
    %162 = vmatpush2.bf16.msra.mxu0 0
    %163 = vmatprep.subr.bf16.mxu0 0
    %164 = vmatpush2.bf16.msra.mxu0 0
    %165 = vmatprep.subr.bf16.mxu0 0
    %166 = vmatpush2.bf16.msra.mxu0 0
    %167 = vmatprep.subr.bf16.mxu0 0
    %168 = vmatpush2.bf16.msra.mxu0 0
    %169 = vmatprep.subr.bf16.mxu0 0
    %170 = vmatpush2.bf16.msra.mxu0 0
    %171 = vmatprep.subr.bf16.mxu0 0
    %172 = vmatpush2.bf16.msra.mxu0 0
    %173 = vmatprep.subr.bf16.mxu0 0
    %174 = vmatpush2.bf16.msra.mxu0 0
    %175 = vmatprep.mubr.bf16.mxu0 0
    %176 = vmatmul.mubr.bf16.gmra.mxu0 %v116
    %v177 = vpop.f32.mrf.mxu0
    %v178 = vadd.f32 0.0, %v177
    %v179 = vpop.f32.mrf.mxu0
    %v180 = vpop.f32.mrf.mxu0
    %v181 = vadd.f32 0.0, %v180
    %v182 = vpop.f32.mrf.mxu0
    %183 = vmatprep.mubr.bf16.mxu0 0
    %184 = vmatmul.mubr.bf16.gmra.mxu0 %v119
    %v185 = vpop.f32.mrf.mxu0
    %v186 = vadd.f32 0.0, %v185
    %v187 = vpop.f32.mrf.mxu0
    %v188 = vpop.f32.mrf.mxu0
    %v189 = vadd.f32 0.0, %v188
    %v190 = vpop.f32.mrf.mxu0
    %191 = vmatprep.mubr.bf16.mxu0 0
    %192 = vmatmul.mubr.bf16.gmra.mxu0 %v122
    %v193 = vpop.f32.mrf.mxu0
    %v194 = vadd.f32 0.0, %v193
    %v195 = vpop.f32.mrf.mxu0
    %v196 = vpop.f32.mrf.mxu0
    %v197 = vadd.f32 0.0, %v196
    %v198 = vpop.f32.mrf.mxu0
    %199 = vmatprep.mubr.bf16.mxu0 0
    %200 = vmatmul.mubr.bf16.gmra.mxu0 %v125
    %v201 = vpop.f32.mrf.mxu0
    %v202 = vadd.f32 0.0, %v201
    %v203 = vpop.f32.mrf.mxu0
    %v204 = vpop.f32.mrf.mxu0
    %v205 = vadd.f32 0.0, %v204
    %v206 = vpop.f32.mrf.mxu0
    %207 = vmatprep.mubr.bf16.mxu0 0
    %208 = vmatmul.mubr.bf16.gmra.mxu0 %v128
    %v209 = vpop.f32.mrf.mxu0
    %v210 = vadd.f32 0.0, %v209
    %v211 = vpop.f32.mrf.mxu0
    %v212 = vpop.f32.mrf.mxu0
    %v213 = vadd.f32 0.0, %v212
    %v214 = vpop.f32.mrf.mxu0
    %215 = vmatprep.mubr.bf16.mxu0 0
    %216 = vmatmul.mubr.bf16.gmra.mxu0 %v131
    %v217 = vpop.f32.mrf.mxu0
    %v218 = vadd.f32 0.0, %v217
    %v219 = vpop.f32.mrf.mxu0
    %v220 = vpop.f32.mrf.mxu0
    %v221 = vadd.f32 0.0, %v220
    %v222 = vpop.f32.mrf.mxu0
    %223 = vmatprep.mubr.bf16.mxu0 0
    %224 = vmatmul.mubr.bf16.gmra.mxu0 %v134
    %v225 = vpop.f32.mrf.mxu0
    %v226 = vadd.f32 0.0, %v225
    %v227 = vpop.f32.mrf.mxu0
    %v228 = vpop.f32.mrf.mxu0
    %v229 = vadd.f32 0.0, %v228
    %v230 = vpop.f32.mrf.mxu0
    %231 = vmatprep.mubr.bf16.mxu0 0
    %232 = vmatmul.mubr.bf16.gmra.mxu0 %v137
    %v233 = vpop.f32.mrf.mxu0
    %v234 = vadd.f32 0.0, %v233
    %v235 = vpop.f32.mrf.mxu0
    %v236 = vpop.f32.mrf.mxu0
    %v237 = vadd.f32 0.0, %v236
    %v238 = vpop.f32.mrf.mxu0
    %239 = vdwg.mxu0
    %v241 = vsel %vm114, %v63, 0
    %v244 = vsel %vm114, %v64, 0
    %v247 = vsel %vm114, %v65, 0
    %v250 = vsel %vm114, %v66, 0
    %v253 = vsel %vm114, %v67, 0
    %v256 = vsel %vm114, %v68, 0
    %v259 = vsel %vm114, %v69, 0
    %v262 = vsel %vm114, %v70, 0
    %v265 = vsel %vm139, %v71, 0
    %267 = vmatprep.subr.bf16.mxu0 0
    %268 = vmatpush1.bf16.msra.mxu0 0
    %269 = vmatprep.subr.bf16.mxu0 0
    %270 = vmatpush1.bf16.msra.mxu0 0
    %271 = vmatprep.subr.bf16.mxu0 0
    %272 = vmatpush1.bf16.msra.mxu0 0
    %273 = vmatprep.subr.bf16.mxu0 0
    %274 = vmatpush1.bf16.msra.mxu0 0
    %275 = vmatprep.subr.bf16.mxu0 0
    %276 = vmatpush1.bf16.msra.mxu0 0
    %277 = vmatprep.subr.bf16.mxu0 0
    %278 = vmatpush1.bf16.msra.mxu0 0
    %279 = vmatprep.subr.bf16.mxu0 0
    %280 = vmatpush1.bf16.msra.mxu0 0
    %281 = vmatprep.subr.bf16.mxu0 0
    %282 = vmatpush1.bf16.msra.mxu0 %v265
    %283 = vmatprep.subr.bf16.mxu0 0
    %284 = vmatpush2.bf16.msra.mxu0 0
    %285 = vmatprep.subr.bf16.mxu0 0
    %286 = vmatpush2.bf16.msra.mxu0 0
    %287 = vmatprep.subr.bf16.mxu0 0
    %288 = vmatpush2.bf16.msra.mxu0 0
    %289 = vmatprep.subr.bf16.mxu0 0
    %290 = vmatpush2.bf16.msra.mxu0 0
    %291 = vmatprep.subr.bf16.mxu0 0
    %292 = vmatpush2.bf16.msra.mxu0 0
    %293 = vmatprep.subr.bf16.mxu0 0
    %294 = vmatpush2.bf16.msra.mxu0 0
    %295 = vmatprep.subr.bf16.mxu0 0
    %296 = vmatpush2.bf16.msra.mxu0 0
    %297 = vmatprep.subr.bf16.mxu0 0
    %298 = vmatpush2.bf16.msra.mxu0 0
    %299 = vmatprep.mubr.bf16.mxu0 0
    %300 = vmatmul.mubr.bf16.gmra.mxu0 %v241
    %v301 = vpop.f32.mrf.mxu0
    %v302 = vadd.f32 %v178, %v301
    %v303 = vpop.f32.mrf.mxu0
    %v304 = vpop.f32.mrf.mxu0
    %v305 = vadd.f32 %v181, %v304
    %v306 = vpop.f32.mrf.mxu0
    %307 = vmatprep.mubr.bf16.mxu0 0
    %308 = vmatmul.mubr.bf16.gmra.mxu0 %v244
    %v309 = vpop.f32.mrf.mxu0
    %v310 = vadd.f32 %v186, %v309
    %v311 = vpop.f32.mrf.mxu0
    %v312 = vpop.f32.mrf.mxu0
    %v313 = vadd.f32 %v189, %v312
    %v314 = vpop.f32.mrf.mxu0
    %315 = vmatprep.mubr.bf16.mxu0 0
    %316 = vmatmul.mubr.bf16.gmra.mxu0 %v247
    %v317 = vpop.f32.mrf.mxu0
    %v318 = vadd.f32 %v194, %v317
    %v319 = vpop.f32.mrf.mxu0
    %v320 = vpop.f32.mrf.mxu0
    %v321 = vadd.f32 %v197, %v320
    %v322 = vpop.f32.mrf.mxu0
    %323 = vmatprep.mubr.bf16.mxu0 0
    %324 = vmatmul.mubr.bf16.gmra.mxu0 %v250
    %v325 = vpop.f32.mrf.mxu0
    %v326 = vadd.f32 %v202, %v325
    %v327 = vpop.f32.mrf.mxu0
    %v328 = vpop.f32.mrf.mxu0
    %v329 = vadd.f32 %v205, %v328
    %v330 = vpop.f32.mrf.mxu0
    %331 = vmatprep.mubr.bf16.mxu0 0
    %332 = vmatmul.mubr.bf16.gmra.mxu0 %v253
    %v333 = vpop.f32.mrf.mxu0
    %v334 = vadd.f32 %v210, %v333
    %v335 = vpop.f32.mrf.mxu0
    %v336 = vpop.f32.mrf.mxu0
    %v337 = vadd.f32 %v213, %v336
    %v338 = vpop.f32.mrf.mxu0
    %339 = vmatprep.mubr.bf16.mxu0 0
    %340 = vmatmul.mubr.bf16.gmra.mxu0 %v256
    %v341 = vpop.f32.mrf.mxu0
    %v342 = vadd.f32 %v218, %v341
    %v343 = vpop.f32.mrf.mxu0
    %v344 = vpop.f32.mrf.mxu0
    %v345 = vadd.f32 %v221, %v344
    %v346 = vpop.f32.mrf.mxu0
    %347 = vmatprep.mubr.bf16.mxu0 0
    %348 = vmatmul.mubr.bf16.gmra.mxu0 %v259
    %v349 = vpop.f32.mrf.mxu0
    %v350 = vadd.f32 %v226, %v349
    %v351 = vpop.f32.mrf.mxu0
    %v352 = vpop.f32.mrf.mxu0
    %v353 = vadd.f32 %v229, %v352
    %v354 = vpop.f32.mrf.mxu0
    %355 = vmatprep.mubr.bf16.mxu0 0
    %356 = vmatmul.mubr.bf16.gmra.mxu0 %v262
    %v357 = vpop.f32.mrf.mxu0
    %v358 = vadd.f32 %v234, %v357
    %v359 = vpop.f32.mrf.mxu0
    %v360 = vpop.f32.mrf.mxu0
    %v361 = vadd.f32 %v237, %v360
    %v362 = vpop.f32.mrf.mxu0
    %363 = vdwg.mxu0
    %s364 = scalar_lea.vmem %s0, 2
    %v365 = vld [vmem:[%s364] ss:$2 sm:$0xff]
    %s366 = scalar_lea.vmem %s0, 50
    %v367 = vld [vmem:[%s366] ss:$2 sm:$0xff]
    %s368 = scalar_lea.vmem %s0, 98
    %v369 = vld [vmem:[%s368] ss:$2 sm:$0xff]
    %s370 = scalar_lea.vmem %s0, 146
    %v371 = vld [vmem:[%s370] ss:$2 sm:$0xff]
    %s372 = scalar_lea.vmem %s0, 194
    %v373 = vld [vmem:[%s372] ss:$2 sm:$0xff]
    %s374 = scalar_lea.vmem %s0, 242
    %v375 = vld [vmem:[%s374] ss:$2 sm:$0xff]
    %s376 = scalar_lea.vmem %s0, 290
    %v377 = vld [vmem:[%s376] ss:$2 sm:$0xff]
    %s378 = scalar_lea.vmem %s0, 338
    %v379 = vld [vmem:[%s378] ss:$2 sm:$0xff]
    %s380 = scalar_lea.vmem %s0, 434
    %v381 = vld [vmem:[%s380] ss:$2 sm:$0xff]
    %s382 = scalar_lea.vmem %s0, 482
    %v383 = vld [vmem:[%s382] ss:$2 sm:$0xff]
    %s384 = scalar_lea.vmem %s0, 530
    %v385 = vld [vmem:[%s384] ss:$2 sm:$0xff]
    %s386 = scalar_lea.vmem %s0, 578
    %v387 = vld [vmem:[%s386] ss:$2 sm:$0xff]
    %s388 = scalar_lea.vmem %s0, 626
    %v389 = vld [vmem:[%s388] ss:$2 sm:$0xff]
    %s390 = scalar_lea.vmem %s0, 674
    %v391 = vld [vmem:[%s390] ss:$2 sm:$0xff]
    %s392 = scalar_lea.vmem %s0, 722
    %v393 = vld [vmem:[%s392] ss:$2 sm:$0xff]
    %s394 = scalar_lea.vmem %s0, 770
    %v395 = vld [vmem:[%s394] ss:$2 sm:$0xff]
    %v396 = vpack.c.bf16 %v367, %v365
    %v397 = vpack.c.bf16 %v371, %v369
    %v398 = vpack.c.bf16 %v375, %v373
    %v399 = vpack.c.bf16 %v379, %v377
    %v400 = vpack.c.bf16 %v383, %v381
    %v401 = vpack.c.bf16 %v387, %v385
    %v402 = vpack.c.bf16 %v391, %v389
    %v403 = vpack.c.bf16 %v395, %v393
    %s404 = scalar_lea.vmem %s1, 8
    %v405 = vld [vmem:[%s404] sm:$0xf]
    %v407 = vsel %vm114, %v396, 0
    %v410 = vsel %vm114, %v397, 0
    %v413 = vsel %vm114, %v398, 0
    %v416 = vsel %vm114, %v399, 0
    %v419 = vsel %vm114, %v400, 0
    %v422 = vsel %vm114, %v401, 0
    %v425 = vsel %vm114, %v402, 0
    %v428 = vsel %vm114, %v403, 0
    %v431 = vsel %vm139, %v405, 0
    %433 = vmatprep.subr.bf16.mxu0 0
    %434 = vmatpush1.bf16.msra.mxu0 0
    %435 = vmatprep.subr.bf16.mxu0 0
    %436 = vmatpush1.bf16.msra.mxu0 0
    %437 = vmatprep.subr.bf16.mxu0 0
    %438 = vmatpush1.bf16.msra.mxu0 0
    %439 = vmatprep.subr.bf16.mxu0 0
    %440 = vmatpush1.bf16.msra.mxu0 0
    %441 = vmatprep.subr.bf16.mxu0 0
    %442 = vmatpush1.bf16.msra.mxu0 0
    %443 = vmatprep.subr.bf16.mxu0 0
    %444 = vmatpush1.bf16.msra.mxu0 0
    %445 = vmatprep.subr.bf16.mxu0 0
    %446 = vmatpush1.bf16.msra.mxu0 0
    %447 = vmatprep.subr.bf16.mxu0 0
    %448 = vmatpush1.bf16.msra.mxu0 %v431
    %449 = vmatprep.subr.bf16.mxu0 0
    %450 = vmatpush2.bf16.msra.mxu0 0
    %451 = vmatprep.subr.bf16.mxu0 0
    %452 = vmatpush2.bf16.msra.mxu0 0
    %453 = vmatprep.subr.bf16.mxu0 0
    %454 = vmatpush2.bf16.msra.mxu0 0
    %455 = vmatprep.subr.bf16.mxu0 0
    %456 = vmatpush2.bf16.msra.mxu0 0
    %457 = vmatprep.subr.bf16.mxu0 0
    %458 = vmatpush2.bf16.msra.mxu0 0
    %459 = vmatprep.subr.bf16.mxu0 0
    %460 = vmatpush2.bf16.msra.mxu0 0
    %461 = vmatprep.subr.bf16.mxu0 0
    %462 = vmatpush2.bf16.msra.mxu0 0
    %463 = vmatprep.subr.bf16.mxu0 0
    %464 = vmatpush2.bf16.msra.mxu0 0
    %465 = vmatprep.mubr.bf16.mxu0 0
    %466 = vmatmul.mubr.bf16.gmra.mxu0 %v407
    %v467 = vpop.f32.mrf.mxu0
    %v468 = vadd.f32 0.0, %v467
    %v469 = vpop.f32.mrf.mxu0
    %v470 = vpop.f32.mrf.mxu0
    %v471 = vadd.f32 0.0, %v470
    %v472 = vpop.f32.mrf.mxu0
    %473 = vmatprep.mubr.bf16.mxu0 0
    %474 = vmatmul.mubr.bf16.gmra.mxu0 %v410
    %v475 = vpop.f32.mrf.mxu0
    %v476 = vadd.f32 0.0, %v475
    %v477 = vpop.f32.mrf.mxu0
    %v478 = vpop.f32.mrf.mxu0
    %v479 = vadd.f32 0.0, %v478
    %v480 = vpop.f32.mrf.mxu0
    %481 = vmatprep.mubr.bf16.mxu0 0
    %482 = vmatmul.mubr.bf16.gmra.mxu0 %v413
    %v483 = vpop.f32.mrf.mxu0
    %v484 = vadd.f32 0.0, %v483
    %v485 = vpop.f32.mrf.mxu0
    %v486 = vpop.f32.mrf.mxu0
    %v487 = vadd.f32 0.0, %v486
    %v488 = vpop.f32.mrf.mxu0
    %489 = vmatprep.mubr.bf16.mxu0 0
    %490 = vmatmul.mubr.bf16.gmra.mxu0 %v416
    %v491 = vpop.f32.mrf.mxu0
    %v492 = vadd.f32 0.0, %v491
    %v493 = vpop.f32.mrf.mxu0
    %v494 = vpop.f32.mrf.mxu0
    %v495 = vadd.f32 0.0, %v494
    %v496 = vpop.f32.mrf.mxu0
    %497 = vmatprep.mubr.bf16.mxu0 0
    %498 = vmatmul.mubr.bf16.gmra.mxu0 %v419
    %v499 = vpop.f32.mrf.mxu0
    %v500 = vadd.f32 0.0, %v499
    %v501 = vpop.f32.mrf.mxu0
    %v502 = vpop.f32.mrf.mxu0
    %v503 = vadd.f32 0.0, %v502
    %v504 = vpop.f32.mrf.mxu0
    %505 = vmatprep.mubr.bf16.mxu0 0
    %506 = vmatmul.mubr.bf16.gmra.mxu0 %v422
    %v507 = vpop.f32.mrf.mxu0
    %v508 = vadd.f32 0.0, %v507
    %v509 = vpop.f32.mrf.mxu0
    %v510 = vpop.f32.mrf.mxu0
    %v511 = vadd.f32 0.0, %v510
    %v512 = vpop.f32.mrf.mxu0
    %513 = vmatprep.mubr.bf16.mxu0 0
    %514 = vmatmul.mubr.bf16.gmra.mxu0 %v425
    %v515 = vpop.f32.mrf.mxu0
    %v516 = vadd.f32 0.0, %v515
    %v517 = vpop.f32.mrf.mxu0
    %v518 = vpop.f32.mrf.mxu0
    %v519 = vadd.f32 0.0, %v518
    %v520 = vpop.f32.mrf.mxu0
    %521 = vmatprep.mubr.bf16.mxu0 0
    %522 = vmatmul.mubr.bf16.gmra.mxu0 %v428
    %v523 = vpop.f32.mrf.mxu0
    %v524 = vadd.f32 0.0, %v523
    %v525 = vpop.f32.mrf.mxu0
    %v526 = vpop.f32.mrf.mxu0
    %v527 = vadd.f32 0.0, %v526
    %v528 = vpop.f32.mrf.mxu0
    %529 = vdwg.mxu0
    %v530 = vadd.f32 %v302, %v468
    %v531 = vadd.f32 %v305, %v471
    %v532 = vadd.f32 %v310, %v476
    %v533 = vadd.f32 %v313, %v479
    %v534 = vadd.f32 %v318, %v484
    %v535 = vadd.f32 %v321, %v487
    %v536 = vadd.f32 %v326, %v492
    %v537 = vadd.f32 %v329, %v495
    %v538 = vadd.f32 %v334, %v500
    %v539 = vadd.f32 %v337, %v503
    %v540 = vadd.f32 %v342, %v508
    %v541 = vadd.f32 %v345, %v511
    %v542 = vadd.f32 %v350, %v516
    %v543 = vadd.f32 %v353, %v519
    %v544 = vadd.f32 %v358, %v524
    %v545 = vadd.f32 %v361, %v527
    %s546 = scalar_lea.vmem %s0, 24
    %v547 = vld [vmem:[%s546] ss:$2 sm:$0xff]
    %s548 = scalar_lea.vmem %s546, 48
    %v549 = vld [vmem:[%s548] ss:$2 sm:$0xff]
    %s550 = scalar_lea.vmem %s546, 96
    %v551 = vld [vmem:[%s550] ss:$2 sm:$0xff]
    %s552 = scalar_lea.vmem %s546, 144
    %v553 = vld [vmem:[%s552] ss:$2 sm:$0xff]
    %s554 = scalar_lea.vmem %s546, 192
    %v555 = vld [vmem:[%s554] ss:$2 sm:$0xff]
    %s556 = scalar_lea.vmem %s546, 240
    %v557 = vld [vmem:[%s556] ss:$2 sm:$0xff]
    %s558 = scalar_lea.vmem %s546, 288
    %v559 = vld [vmem:[%s558] ss:$2 sm:$0xff]
    %s560 = scalar_lea.vmem %s546, 336
    %v561 = vld [vmem:[%s560] ss:$2 sm:$0xff]
    %s562 = scalar_lea.vmem %s546, 432
    %v563 = vld [vmem:[%s562] ss:$2 sm:$0xff]
    %s564 = scalar_lea.vmem %s546, 480
    %v565 = vld [vmem:[%s564] ss:$2 sm:$0xff]
    %s566 = scalar_lea.vmem %s546, 528
    %v567 = vld [vmem:[%s566] ss:$2 sm:$0xff]
    %s568 = scalar_lea.vmem %s546, 576
    %v569 = vld [vmem:[%s568] ss:$2 sm:$0xff]
    %s570 = scalar_lea.vmem %s546, 624
    %v571 = vld [vmem:[%s570] ss:$2 sm:$0xff]
    %s572 = scalar_lea.vmem %s546, 672
    %v573 = vld [vmem:[%s572] ss:$2 sm:$0xff]
    %s574 = scalar_lea.vmem %s546, 720
    %v575 = vld [vmem:[%s574] ss:$2 sm:$0xff]
    %s576 = scalar_lea.vmem %s546, 768
    %v577 = vld [vmem:[%s576] ss:$2 sm:$0xff]
    %v578 = vpack.c.bf16 %v549, %v547
    %v579 = vpack.c.bf16 %v553, %v551
    %v580 = vpack.c.bf16 %v557, %v555
    %v581 = vpack.c.bf16 %v561, %v559
    %v582 = vpack.c.bf16 %v565, %v563
    %v583 = vpack.c.bf16 %v569, %v567
    %v584 = vpack.c.bf16 %v573, %v571
    %v585 = vpack.c.bf16 %v577, %v575
    %s586 = scalar_lea.vmem %s1, 12
    %v587 = vld [vmem:[%s586] sm:$0xf]
    %v589 = vsel %vm114, %v578, 0
    %v592 = vsel %vm114, %v579, 0
    %v595 = vsel %vm114, %v580, 0
    %v598 = vsel %vm114, %v581, 0
    %v601 = vsel %vm114, %v582, 0
    %v604 = vsel %vm114, %v583, 0
    %v607 = vsel %vm114, %v584, 0
    %v610 = vsel %vm114, %v585, 0
    %v613 = vsel %vm139, %v587, 0
    %615 = vmatprep.subr.bf16.mxu0 0
    %616 = vmatpush1.bf16.msra.mxu0 0
    %617 = vmatprep.subr.bf16.mxu0 0
    %618 = vmatpush1.bf16.msra.mxu0 0
    %619 = vmatprep.subr.bf16.mxu0 0
    %620 = vmatpush1.bf16.msra.mxu0 0
    %621 = vmatprep.subr.bf16.mxu0 0
    %622 = vmatpush1.bf16.msra.mxu0 0
    %623 = vmatprep.subr.bf16.mxu0 0
    %624 = vmatpush1.bf16.msra.mxu0 0
    %625 = vmatprep.subr.bf16.mxu0 0
    %626 = vmatpush1.bf16.msra.mxu0 0
    %627 = vmatprep.subr.bf16.mxu0 0
    %628 = vmatpush1.bf16.msra.mxu0 0
    %629 = vmatprep.subr.bf16.mxu0 0
    %630 = vmatpush1.bf16.msra.mxu0 %v613
    %631 = vmatprep.subr.bf16.mxu0 0
    %632 = vmatpush2.bf16.msra.mxu0 0
    %633 = vmatprep.subr.bf16.mxu0 0
    %634 = vmatpush2.bf16.msra.mxu0 0
    %635 = vmatprep.subr.bf16.mxu0 0
    %636 = vmatpush2.bf16.msra.mxu0 0
    %637 = vmatprep.subr.bf16.mxu0 0
    %638 = vmatpush2.bf16.msra.mxu0 0
    %639 = vmatprep.subr.bf16.mxu0 0
    %640 = vmatpush2.bf16.msra.mxu0 0
    %641 = vmatprep.subr.bf16.mxu0 0
    %642 = vmatpush2.bf16.msra.mxu0 0
    %643 = vmatprep.subr.bf16.mxu0 0
    %644 = vmatpush2.bf16.msra.mxu0 0
    %645 = vmatprep.subr.bf16.mxu0 0
    %646 = vmatpush2.bf16.msra.mxu0 0
    %647 = vmatprep.mubr.bf16.mxu0 0
    %648 = vmatmul.mubr.bf16.gmra.mxu0 %v589
    %v649 = vpop.f32.mrf.mxu0
    %v650 = vadd.f32 0.0, %v649
    %v651 = vpop.f32.mrf.mxu0
    %v652 = vpop.f32.mrf.mxu0
    %v653 = vadd.f32 0.0, %v652
    %v654 = vpop.f32.mrf.mxu0
    %655 = vmatprep.mubr.bf16.mxu0 0
    %656 = vmatmul.mubr.bf16.gmra.mxu0 %v592
    %v657 = vpop.f32.mrf.mxu0
    %v658 = vadd.f32 0.0, %v657
    %v659 = vpop.f32.mrf.mxu0
    %v660 = vpop.f32.mrf.mxu0
    %v661 = vadd.f32 0.0, %v660
    %v662 = vpop.f32.mrf.mxu0
    %663 = vmatprep.mubr.bf16.mxu0 0
    %664 = vmatmul.mubr.bf16.gmra.mxu0 %v595
    %v665 = vpop.f32.mrf.mxu0
    %v666 = vadd.f32 0.0, %v665
    %v667 = vpop.f32.mrf.mxu0
    %v668 = vpop.f32.mrf.mxu0
    %v669 = vadd.f32 0.0, %v668
    %v670 = vpop.f32.mrf.mxu0
    %671 = vmatprep.mubr.bf16.mxu0 0
    %672 = vmatmul.mubr.bf16.gmra.mxu0 %v598
    %v673 = vpop.f32.mrf.mxu0
    %v674 = vadd.f32 0.0, %v673
    %v675 = vpop.f32.mrf.mxu0
    %v676 = vpop.f32.mrf.mxu0
    %v677 = vadd.f32 0.0, %v676
    %v678 = vpop.f32.mrf.mxu0
    %679 = vmatprep.mubr.bf16.mxu0 0
    %680 = vmatmul.mubr.bf16.gmra.mxu0 %v601
    %v681 = vpop.f32.mrf.mxu0
    %v682 = vadd.f32 0.0, %v681
    %v683 = vpop.f32.mrf.mxu0
    %v684 = vpop.f32.mrf.mxu0
    %v685 = vadd.f32 0.0, %v684
    %v686 = vpop.f32.mrf.mxu0
    %687 = vmatprep.mubr.bf16.mxu0 0
    %688 = vmatmul.mubr.bf16.gmra.mxu0 %v604
    %v689 = vpop.f32.mrf.mxu0
    %v690 = vadd.f32 0.0, %v689
    %v691 = vpop.f32.mrf.mxu0
    %v692 = vpop.f32.mrf.mxu0
    %v693 = vadd.f32 0.0, %v692
    %v694 = vpop.f32.mrf.mxu0
    %695 = vmatprep.mubr.bf16.mxu0 0
    %696 = vmatmul.mubr.bf16.gmra.mxu0 %v607
    %v697 = vpop.f32.mrf.mxu0
    %v698 = vadd.f32 0.0, %v697
    %v699 = vpop.f32.mrf.mxu0
    %v700 = vpop.f32.mrf.mxu0
    %v701 = vadd.f32 0.0, %v700
    %v702 = vpop.f32.mrf.mxu0
    %703 = vmatprep.mubr.bf16.mxu0 0
    %704 = vmatmul.mubr.bf16.gmra.mxu0 %v610
    %v705 = vpop.f32.mrf.mxu0
    %v706 = vadd.f32 0.0, %v705
    %v707 = vpop.f32.mrf.mxu0
    %v708 = vpop.f32.mrf.mxu0
    %v709 = vadd.f32 0.0, %v708
    %v710 = vpop.f32.mrf.mxu0
    %711 = vdwg.mxu0
    %v712 = vadd.f32 %v530, %v650
    %v713 = vadd.f32 %v531, %v653
    %v714 = vadd.f32 %v532, %v658
    %v715 = vadd.f32 %v533, %v661
    %v716 = vadd.f32 %v534, %v666
    %v717 = vadd.f32 %v535, %v669
    %v718 = vadd.f32 %v536, %v674
    %v719 = vadd.f32 %v537, %v677
    %v720 = vadd.f32 %v538, %v682
    %v721 = vadd.f32 %v539, %v685
    %v722 = vadd.f32 %v540, %v690
    %v723 = vadd.f32 %v541, %v693
    %v724 = vadd.f32 %v542, %v698
    %v725 = vadd.f32 %v543, %v701
    %v726 = vadd.f32 %v544, %v706
    %v727 = vadd.f32 %v545, %v709
    %s728 = scalar_lea.vmem %s546, 1
    %v729 = vld [vmem:[%s728] ss:$2 sm:$0xff]
    %s730 = scalar_lea.vmem %s546, 49
    %v731 = vld [vmem:[%s730] ss:$2 sm:$0xff]
    %s732 = scalar_lea.vmem %s546, 97
    %v733 = vld [vmem:[%s732] ss:$2 sm:$0xff]
    %s734 = scalar_lea.vmem %s546, 145
    %v735 = vld [vmem:[%s734] ss:$2 sm:$0xff]
    %s736 = scalar_lea.vmem %s546, 193
    %v737 = vld [vmem:[%s736] ss:$2 sm:$0xff]
    %s738 = scalar_lea.vmem %s546, 241
    %v739 = vld [vmem:[%s738] ss:$2 sm:$0xff]
    %s740 = scalar_lea.vmem %s546, 289
    %v741 = vld [vmem:[%s740] ss:$2 sm:$0xff]
    %s742 = scalar_lea.vmem %s546, 337
    %v743 = vld [vmem:[%s742] ss:$2 sm:$0xff]
    %s744 = scalar_lea.vmem %s546, 433
    %v745 = vld [vmem:[%s744] ss:$2 sm:$0xff]
    %s746 = scalar_lea.vmem %s546, 481
    %v747 = vld [vmem:[%s746] ss:$2 sm:$0xff]
    %s748 = scalar_lea.vmem %s546, 529
    %v749 = vld [vmem:[%s748] ss:$2 sm:$0xff]
    %s750 = scalar_lea.vmem %s546, 577
    %v751 = vld [vmem:[%s750] ss:$2 sm:$0xff]
    %s752 = scalar_lea.vmem %s546, 625
    %v753 = vld [vmem:[%s752] ss:$2 sm:$0xff]
    %s754 = scalar_lea.vmem %s546, 673
    %v755 = vld [vmem:[%s754] ss:$2 sm:$0xff]
    %s756 = scalar_lea.vmem %s546, 721
    %v757 = vld [vmem:[%s756] ss:$2 sm:$0xff]
    %s758 = scalar_lea.vmem %s546, 769
    %v759 = vld [vmem:[%s758] ss:$2 sm:$0xff]
    %v760 = vpack.c.bf16 %v731, %v729
    %v761 = vpack.c.bf16 %v735, %v733
    %v762 = vpack.c.bf16 %v739, %v737
    %v763 = vpack.c.bf16 %v743, %v741
    %v764 = vpack.c.bf16 %v747, %v745
    %v765 = vpack.c.bf16 %v751, %v749
    %v766 = vpack.c.bf16 %v755, %v753
    %v767 = vpack.c.bf16 %v759, %v757
    %s768 = scalar_lea.vmem %s1, 16
    %v769 = vld [vmem:[%s768] sm:$0xf]
    %v771 = vsel %vm114, %v760, 0
    %v774 = vsel %vm114, %v761, 0
    %v777 = vsel %vm114, %v762, 0
    %v780 = vsel %vm114, %v763, 0
    %v783 = vsel %vm114, %v764, 0
    %v786 = vsel %vm114, %v765, 0
    %v789 = vsel %vm114, %v766, 0
    %v792 = vsel %vm114, %v767, 0
    %v795 = vsel %vm139, %v769, 0
    %797 = vmatprep.subr.bf16.mxu0 0
    %798 = vmatpush1.bf16.msra.mxu0 0
    %799 = vmatprep.subr.bf16.mxu0 0
    %800 = vmatpush1.bf16.msra.mxu0 0
    %801 = vmatprep.subr.bf16.mxu0 0
    %802 = vmatpush1.bf16.msra.mxu0 0
    %803 = vmatprep.subr.bf16.mxu0 0
    %804 = vmatpush1.bf16.msra.mxu0 0
    %805 = vmatprep.subr.bf16.mxu0 0
    %806 = vmatpush1.bf16.msra.mxu0 0
    %807 = vmatprep.subr.bf16.mxu0 0
    %808 = vmatpush1.bf16.msra.mxu0 0
    %809 = vmatprep.subr.bf16.mxu0 0
    %810 = vmatpush1.bf16.msra.mxu0 0
    %811 = vmatprep.subr.bf16.mxu0 0
    %812 = vmatpush1.bf16.msra.mxu0 %v795
    %813 = vmatprep.subr.bf16.mxu0 0
    %814 = vmatpush2.bf16.msra.mxu0 0
    %815 = vmatprep.subr.bf16.mxu0 0
    %816 = vmatpush2.bf16.msra.mxu0 0
    %817 = vmatprep.subr.bf16.mxu0 0
    %818 = vmatpush2.bf16.msra.mxu0 0
    %819 = vmatprep.subr.bf16.mxu0 0
    %820 = vmatpush2.bf16.msra.mxu0 0
    %821 = vmatprep.subr.bf16.mxu0 0
    %822 = vmatpush2.bf16.msra.mxu0 0
    %823 = vmatprep.subr.bf16.mxu0 0
    %824 = vmatpush2.bf16.msra.mxu0 0
    %825 = vmatprep.subr.bf16.mxu0 0
    %826 = vmatpush2.bf16.msra.mxu0 0
    %827 = vmatprep.subr.bf16.mxu0 0
    %828 = vmatpush2.bf16.msra.mxu0 0
    %829 = vmatprep.mubr.bf16.mxu0 0
    %830 = vmatmul.mubr.bf16.gmra.mxu0 %v771
    %v831 = vpop.f32.mrf.mxu0
    %v832 = vadd.f32 0.0, %v831
    %v833 = vpop.f32.mrf.mxu0
    %v834 = vpop.f32.mrf.mxu0
    %v835 = vadd.f32 0.0, %v834
    %v836 = vpop.f32.mrf.mxu0
    %837 = vmatprep.mubr.bf16.mxu0 0
    %838 = vmatmul.mubr.bf16.gmra.mxu0 %v774
    %v839 = vpop.f32.mrf.mxu0
    %v840 = vadd.f32 0.0, %v839
    %v841 = vpop.f32.mrf.mxu0
    %v842 = vpop.f32.mrf.mxu0
    %v843 = vadd.f32 0.0, %v842
    %v844 = vpop.f32.mrf.mxu0
    %845 = vmatprep.mubr.bf16.mxu0 0
    %846 = vmatmul.mubr.bf16.gmra.mxu0 %v777
    %v847 = vpop.f32.mrf.mxu0
    %v848 = vadd.f32 0.0, %v847
    %v849 = vpop.f32.mrf.mxu0
    %v850 = vpop.f32.mrf.mxu0
    %v851 = vadd.f32 0.0, %v850
    %v852 = vpop.f32.mrf.mxu0
    %853 = vmatprep.mubr.bf16.mxu0 0
    %854 = vmatmul.mubr.bf16.gmra.mxu0 %v780
    %v855 = vpop.f32.mrf.mxu0
    %v856 = vadd.f32 0.0, %v855
    %v857 = vpop.f32.mrf.mxu0
    %v858 = vpop.f32.mrf.mxu0
    %v859 = vadd.f32 0.0, %v858
    %v860 = vpop.f32.mrf.mxu0
    %861 = vmatprep.mubr.bf16.mxu0 0
    %862 = vmatmul.mubr.bf16.gmra.mxu0 %v783
    %v863 = vpop.f32.mrf.mxu0
    %v864 = vadd.f32 0.0, %v863
    %v865 = vpop.f32.mrf.mxu0
    %v866 = vpop.f32.mrf.mxu0
    %v867 = vadd.f32 0.0, %v866
    %v868 = vpop.f32.mrf.mxu0
    %869 = vmatprep.mubr.bf16.mxu0 0
    %870 = vmatmul.mubr.bf16.gmra.mxu0 %v786
    %v871 = vpop.f32.mrf.mxu0
    %v872 = vadd.f32 0.0, %v871
    %v873 = vpop.f32.mrf.mxu0
    %v874 = vpop.f32.mrf.mxu0
    %v875 = vadd.f32 0.0, %v874
    %v876 = vpop.f32.mrf.mxu0
    %877 = vmatprep.mubr.bf16.mxu0 0
    %878 = vmatmul.mubr.bf16.gmra.mxu0 %v789
    %v879 = vpop.f32.mrf.mxu0
    %v880 = vadd.f32 0.0, %v879
    %v881 = vpop.f32.mrf.mxu0
    %v882 = vpop.f32.mrf.mxu0
    %v883 = vadd.f32 0.0, %v882
    %v884 = vpop.f32.mrf.mxu0
    %885 = vmatprep.mubr.bf16.mxu0 0
    %886 = vmatmul.mubr.bf16.gmra.mxu0 %v792
    %v887 = vpop.f32.mrf.mxu0
    %v888 = vadd.f32 0.0, %v887
    %v889 = vpop.f32.mrf.mxu0
    %v890 = vpop.f32.mrf.mxu0
    %v891 = vadd.f32 0.0, %v890
    %v892 = vpop.f32.mrf.mxu0
    %893 = vdwg.mxu0
    %v894 = vadd.f32 %v712, %v832
    %v895 = vadd.f32 %v713, %v835
    %v896 = vadd.f32 %v714, %v840
    %v897 = vadd.f32 %v715, %v843
    %v898 = vadd.f32 %v716, %v848
    %v899 = vadd.f32 %v717, %v851
    %v900 = vadd.f32 %v718, %v856
    %v901 = vadd.f32 %v719, %v859
    %v902 = vadd.f32 %v720, %v864
    %v903 = vadd.f32 %v721, %v867
    %v904 = vadd.f32 %v722, %v872
    %v905 = vadd.f32 %v723, %v875
    %v906 = vadd.f32 %v724, %v880
    %v907 = vadd.f32 %v725, %v883
    %v908 = vadd.f32 %v726, %v888
    %v909 = vadd.f32 %v727, %v891
    %s910 = scalar_lea.vmem %s546, 2
    %v911 = vld [vmem:[%s910] ss:$2 sm:$0xff]
    %s912 = scalar_lea.vmem %s546, 50
    %v913 = vld [vmem:[%s912] ss:$2 sm:$0xff]
    %s914 = scalar_lea.vmem %s546, 98
    %v915 = vld [vmem:[%s914] ss:$2 sm:$0xff]
    %s916 = scalar_lea.vmem %s546, 146
    %v917 = vld [vmem:[%s916] ss:$2 sm:$0xff]
    %s918 = scalar_lea.vmem %s546, 194
    %v919 = vld [vmem:[%s918] ss:$2 sm:$0xff]
    %s920 = scalar_lea.vmem %s546, 242
    %v921 = vld [vmem:[%s920] ss:$2 sm:$0xff]
    %s922 = scalar_lea.vmem %s546, 290
    %v923 = vld [vmem:[%s922] ss:$2 sm:$0xff]
    %s924 = scalar_lea.vmem %s546, 338
    %v925 = vld [vmem:[%s924] ss:$2 sm:$0xff]
    %s926 = scalar_lea.vmem %s546, 434
    %v927 = vld [vmem:[%s926] ss:$2 sm:$0xff]
    %s928 = scalar_lea.vmem %s546, 482
    %v929 = vld [vmem:[%s928] ss:$2 sm:$0xff]
    %s930 = scalar_lea.vmem %s546, 530
    %v931 = vld [vmem:[%s930] ss:$2 sm:$0xff]
    %s932 = scalar_lea.vmem %s546, 578
    %v933 = vld [vmem:[%s932] ss:$2 sm:$0xff]
    %s934 = scalar_lea.vmem %s546, 626
    %v935 = vld [vmem:[%s934] ss:$2 sm:$0xff]
    %s936 = scalar_lea.vmem %s546, 674
    %v937 = vld [vmem:[%s936] ss:$2 sm:$0xff]
    %s938 = scalar_lea.vmem %s546, 722
    %v939 = vld [vmem:[%s938] ss:$2 sm:$0xff]
    %s940 = scalar_lea.vmem %s546, 770
    %v941 = vld [vmem:[%s940] ss:$2 sm:$0xff]
    %v942 = vpack.c.bf16 %v913, %v911
    %v943 = vpack.c.bf16 %v917, %v915
    %v944 = vpack.c.bf16 %v921, %v919
    %v945 = vpack.c.bf16 %v925, %v923
    %v946 = vpack.c.bf16 %v929, %v927
    %v947 = vpack.c.bf16 %v933, %v931
    %v948 = vpack.c.bf16 %v937, %v935
    %v949 = vpack.c.bf16 %v941, %v939
    %s950 = scalar_lea.vmem %s1, 20
    %v951 = vld [vmem:[%s950] sm:$0xf]
    %v953 = vsel %vm114, %v942, 0
    %v956 = vsel %vm114, %v943, 0
    %v959 = vsel %vm114, %v944, 0
    %v962 = vsel %vm114, %v945, 0
    %v965 = vsel %vm114, %v946, 0
    %v968 = vsel %vm114, %v947, 0
    %v971 = vsel %vm114, %v948, 0
    %v974 = vsel %vm114, %v949, 0
    %v977 = vsel %vm139, %v951, 0
    %979 = vmatprep.subr.bf16.mxu0 0
    %980 = vmatpush1.bf16.msra.mxu0 0
    %981 = vmatprep.subr.bf16.mxu0 0
    %982 = vmatpush1.bf16.msra.mxu0 0
    %983 = vmatprep.subr.bf16.mxu0 0
    %984 = vmatpush1.bf16.msra.mxu0 0
    %985 = vmatprep.subr.bf16.mxu0 0
    %986 = vmatpush1.bf16.msra.mxu0 0
    %987 = vmatprep.subr.bf16.mxu0 0
    %988 = vmatpush1.bf16.msra.mxu0 0
    %989 = vmatprep.subr.bf16.mxu0 0
    %990 = vmatpush1.bf16.msra.mxu0 0
    %991 = vmatprep.subr.bf16.mxu0 0
    %992 = vmatpush1.bf16.msra.mxu0 0
    %993 = vmatprep.subr.bf16.mxu0 0
    %994 = vmatpush1.bf16.msra.mxu0 %v977
    %995 = vmatprep.subr.bf16.mxu0 0
    %996 = vmatpush2.bf16.msra.mxu0 0
    %997 = vmatprep.subr.bf16.mxu0 0
    %998 = vmatpush2.bf16.msra.mxu0 0
    %999 = vmatprep.subr.bf16.mxu0 0
    %1000 = vmatpush2.bf16.msra.mxu0 0
    %1001 = vmatprep.subr.bf16.mxu0 0
    %1002 = vmatpush2.bf16.msra.mxu0 0
    %1003 = vmatprep.subr.bf16.mxu0 0
    %1004 = vmatpush2.bf16.msra.mxu0 0
    %1005 = vmatprep.subr.bf16.mxu0 0
    %1006 = vmatpush2.bf16.msra.mxu0 0
    %1007 = vmatprep.subr.bf16.mxu0 0
    %1008 = vmatpush2.bf16.msra.mxu0 0
    %1009 = vmatprep.subr.bf16.mxu0 0
    %1010 = vmatpush2.bf16.msra.mxu0 0
    %1011 = vmatprep.mubr.bf16.mxu0 0
    %1012 = vmatmul.mubr.bf16.gmra.mxu0 %v953
    %v1013 = vpop.f32.mrf.mxu0
    %v1014 = vadd.f32 0.0, %v1013
    %v1015 = vpop.f32.mrf.mxu0
    %v1016 = vpop.f32.mrf.mxu0
    %v1017 = vadd.f32 0.0, %v1016
    %v1018 = vpop.f32.mrf.mxu0
    %1019 = vmatprep.mubr.bf16.mxu0 0
    %1020 = vmatmul.mubr.bf16.gmra.mxu0 %v956
    %v1021 = vpop.f32.mrf.mxu0
    %v1022 = vadd.f32 0.0, %v1021
    %v1023 = vpop.f32.mrf.mxu0
    %v1024 = vpop.f32.mrf.mxu0
    %v1025 = vadd.f32 0.0, %v1024
    %v1026 = vpop.f32.mrf.mxu0
    %1027 = vmatprep.mubr.bf16.mxu0 0
    %1028 = vmatmul.mubr.bf16.gmra.mxu0 %v959
    %v1029 = vpop.f32.mrf.mxu0
    %v1030 = vadd.f32 0.0, %v1029
    %v1031 = vpop.f32.mrf.mxu0
    %v1032 = vpop.f32.mrf.mxu0
    %v1033 = vadd.f32 0.0, %v1032
    %v1034 = vpop.f32.mrf.mxu0
    %1035 = vmatprep.mubr.bf16.mxu0 0
    %1036 = vmatmul.mubr.bf16.gmra.mxu0 %v962
    %v1037 = vpop.f32.mrf.mxu0
    %v1038 = vadd.f32 0.0, %v1037
    %v1039 = vpop.f32.mrf.mxu0
    %v1040 = vpop.f32.mrf.mxu0
    %v1041 = vadd.f32 0.0, %v1040
    %v1042 = vpop.f32.mrf.mxu0
    %1043 = vmatprep.mubr.bf16.mxu0 0
    %1044 = vmatmul.mubr.bf16.gmra.mxu0 %v965
    %v1045 = vpop.f32.mrf.mxu0
    %v1046 = vadd.f32 0.0, %v1045
    %v1047 = vpop.f32.mrf.mxu0
    %v1048 = vpop.f32.mrf.mxu0
    %v1049 = vadd.f32 0.0, %v1048
    %v1050 = vpop.f32.mrf.mxu0
    %1051 = vmatprep.mubr.bf16.mxu0 0
    %1052 = vmatmul.mubr.bf16.gmra.mxu0 %v968
    %v1053 = vpop.f32.mrf.mxu0
    %v1054 = vadd.f32 0.0, %v1053
    %v1055 = vpop.f32.mrf.mxu0
    %v1056 = vpop.f32.mrf.mxu0
    %v1057 = vadd.f32 0.0, %v1056
    %v1058 = vpop.f32.mrf.mxu0
    %1059 = vmatprep.mubr.bf16.mxu0 0
    %1060 = vmatmul.mubr.bf16.gmra.mxu0 %v971
    %v1061 = vpop.f32.mrf.mxu0
    %v1062 = vadd.f32 0.0, %v1061
    %v1063 = vpop.f32.mrf.mxu0
    %v1064 = vpop.f32.mrf.mxu0
    %v1065 = vadd.f32 0.0, %v1064
    %v1066 = vpop.f32.mrf.mxu0
    %1067 = vmatprep.mubr.bf16.mxu0 0
    %1068 = vmatmul.mubr.bf16.gmra.mxu0 %v974
    %v1069 = vpop.f32.mrf.mxu0
    %v1070 = vadd.f32 0.0, %v1069
    %v1071 = vpop.f32.mrf.mxu0
    %v1072 = vpop.f32.mrf.mxu0
    %v1073 = vadd.f32 0.0, %v1072
    %v1074 = vpop.f32.mrf.mxu0
    %1075 = vdwg.mxu0
    %v1076 = vadd.f32 %v894, %v1014
    %v1077 = vadd.f32 %v895, %v1017
    %v1078 = vadd.f32 %v896, %v1022
    %v1079 = vadd.f32 %v897, %v1025
    %v1080 = vadd.f32 %v898, %v1030
    %v1081 = vadd.f32 %v899, %v1033
    %v1082 = vadd.f32 %v900, %v1038
    %v1083 = vadd.f32 %v901, %v1041
    %v1084 = vadd.f32 %v902, %v1046
    %v1085 = vadd.f32 %v903, %v1049
    %v1086 = vadd.f32 %v904, %v1054
    %v1087 = vadd.f32 %v905, %v1057
    %v1088 = vadd.f32 %v906, %v1062
    %v1089 = vadd.f32 %v907, %v1065
    %v1090 = vadd.f32 %v908, %v1070
    %v1091 = vadd.f32 %v909, %v1073
    %s1092 = scalar_lea.vmem %s0, 48
    %v1093 = vld [vmem:[%s1092] ss:$2 sm:$0xff]
    %s1094 = scalar_lea.vmem %s1092, 48
    %v1095 = vld [vmem:[%s1094] ss:$2 sm:$0xff]
    %s1096 = scalar_lea.vmem %s1092, 96
    %v1097 = vld [vmem:[%s1096] ss:$2 sm:$0xff]
    %s1098 = scalar_lea.vmem %s1092, 144
    %v1099 = vld [vmem:[%s1098] ss:$2 sm:$0xff]
    %s1100 = scalar_lea.vmem %s1092, 192
    %v1101 = vld [vmem:[%s1100] ss:$2 sm:$0xff]
    %s1102 = scalar_lea.vmem %s1092, 240
    %v1103 = vld [vmem:[%s1102] ss:$2 sm:$0xff]
    %s1104 = scalar_lea.vmem %s1092, 288
    %v1105 = vld [vmem:[%s1104] ss:$2 sm:$0xff]
    %s1106 = scalar_lea.vmem %s1092, 336
    %v1107 = vld [vmem:[%s1106] ss:$2 sm:$0xff]
    %s1108 = scalar_lea.vmem %s1092, 432
    %v1109 = vld [vmem:[%s1108] ss:$2 sm:$0xff]
    %s1110 = scalar_lea.vmem %s1092, 480
    %v1111 = vld [vmem:[%s1110] ss:$2 sm:$0xff]
    %s1112 = scalar_lea.vmem %s1092, 528
    %v1113 = vld [vmem:[%s1112] ss:$2 sm:$0xff]
    %s1114 = scalar_lea.vmem %s1092, 576
    %v1115 = vld [vmem:[%s1114] ss:$2 sm:$0xff]
    %s1116 = scalar_lea.vmem %s1092, 624
    %v1117 = vld [vmem:[%s1116] ss:$2 sm:$0xff]
    %s1118 = scalar_lea.vmem %s1092, 672
    %v1119 = vld [vmem:[%s1118] ss:$2 sm:$0xff]
    %s1120 = scalar_lea.vmem %s1092, 720
    %v1121 = vld [vmem:[%s1120] ss:$2 sm:$0xff]
    %s1122 = scalar_lea.vmem %s1092, 768
    %v1123 = vld [vmem:[%s1122] ss:$2 sm:$0xff]
    %v1124 = vpack.c.bf16 %v1095, %v1093
    %v1125 = vpack.c.bf16 %v1099, %v1097
    %v1126 = vpack.c.bf16 %v1103, %v1101
    %v1127 = vpack.c.bf16 %v1107, %v1105
    %v1128 = vpack.c.bf16 %v1111, %v1109
    %v1129 = vpack.c.bf16 %v1115, %v1113
    %v1130 = vpack.c.bf16 %v1119, %v1117
    %v1131 = vpack.c.bf16 %v1123, %v1121
    %s1132 = scalar_lea.vmem %s1, 24
    %v1133 = vld [vmem:[%s1132] sm:$0xf]
    %v1135 = vsel %vm114, %v1124, 0
    %v1138 = vsel %vm114, %v1125, 0
    %v1141 = vsel %vm114, %v1126, 0
    %v1144 = vsel %vm114, %v1127, 0
    %v1147 = vsel %vm114, %v1128, 0
    %v1150 = vsel %vm114, %v1129, 0
    %v1153 = vsel %vm114, %v1130, 0
    %v1156 = vsel %vm114, %v1131, 0
    %v1159 = vsel %vm139, %v1133, 0
    %1161 = vmatprep.subr.bf16.mxu0 0
    %1162 = vmatpush1.bf16.msra.mxu0 0
    %1163 = vmatprep.subr.bf16.mxu0 0
    %1164 = vmatpush1.bf16.msra.mxu0 0
    %1165 = vmatprep.subr.bf16.mxu0 0
    %1166 = vmatpush1.bf16.msra.mxu0 0
    %1167 = vmatprep.subr.bf16.mxu0 0
    %1168 = vmatpush1.bf16.msra.mxu0 0
    %1169 = vmatprep.subr.bf16.mxu0 0
    %1170 = vmatpush1.bf16.msra.mxu0 0
    %1171 = vmatprep.subr.bf16.mxu0 0
    %1172 = vmatpush1.bf16.msra.mxu0 0
    %1173 = vmatprep.subr.bf16.mxu0 0
    %1174 = vmatpush1.bf16.msra.mxu0 0
    %1175 = vmatprep.subr.bf16.mxu0 0
    %1176 = vmatpush1.bf16.msra.mxu0 %v1159
    %1177 = vmatprep.subr.bf16.mxu0 0
    %1178 = vmatpush2.bf16.msra.mxu0 0
    %1179 = vmatprep.subr.bf16.mxu0 0
    %1180 = vmatpush2.bf16.msra.mxu0 0
    %1181 = vmatprep.subr.bf16.mxu0 0
    %1182 = vmatpush2.bf16.msra.mxu0 0
    %1183 = vmatprep.subr.bf16.mxu0 0
    %1184 = vmatpush2.bf16.msra.mxu0 0
    %1185 = vmatprep.subr.bf16.mxu0 0
    %1186 = vmatpush2.bf16.msra.mxu0 0
    %1187 = vmatprep.subr.bf16.mxu0 0
    %1188 = vmatpush2.bf16.msra.mxu0 0
    %1189 = vmatprep.subr.bf16.mxu0 0
    %1190 = vmatpush2.bf16.msra.mxu0 0
    %1191 = vmatprep.subr.bf16.mxu0 0
    %1192 = vmatpush2.bf16.msra.mxu0 0
    %1193 = vmatprep.mubr.bf16.mxu0 0
    %1194 = vmatmul.mubr.bf16.gmra.mxu0 %v1135
    %v1195 = vpop.f32.mrf.mxu0
    %v1196 = vadd.f32 0.0, %v1195
    %v1197 = vpop.f32.mrf.mxu0
    %v1198 = vpop.f32.mrf.mxu0
    %v1199 = vadd.f32 0.0, %v1198
    %v1200 = vpop.f32.mrf.mxu0
    %1201 = vmatprep.mubr.bf16.mxu0 0
    %1202 = vmatmul.mubr.bf16.gmra.mxu0 %v1138
    %v1203 = vpop.f32.mrf.mxu0
    %v1204 = vadd.f32 0.0, %v1203
    %v1205 = vpop.f32.mrf.mxu0
    %v1206 = vpop.f32.mrf.mxu0
    %v1207 = vadd.f32 0.0, %v1206
    %v1208 = vpop.f32.mrf.mxu0
    %1209 = vmatprep.mubr.bf16.mxu0 0
    %1210 = vmatmul.mubr.bf16.gmra.mxu0 %v1141
    %v1211 = vpop.f32.mrf.mxu0
    %v1212 = vadd.f32 0.0, %v1211
    %v1213 = vpop.f32.mrf.mxu0
    %v1214 = vpop.f32.mrf.mxu0
    %v1215 = vadd.f32 0.0, %v1214
    %v1216 = vpop.f32.mrf.mxu0
    %1217 = vmatprep.mubr.bf16.mxu0 0
    %1218 = vmatmul.mubr.bf16.gmra.mxu0 %v1144
    %v1219 = vpop.f32.mrf.mxu0
    %v1220 = vadd.f32 0.0, %v1219
    %v1221 = vpop.f32.mrf.mxu0
    %v1222 = vpop.f32.mrf.mxu0
    %v1223 = vadd.f32 0.0, %v1222
    %v1224 = vpop.f32.mrf.mxu0
    %1225 = vmatprep.mubr.bf16.mxu0 0
    %1226 = vmatmul.mubr.bf16.gmra.mxu0 %v1147
    %v1227 = vpop.f32.mrf.mxu0
    %v1228 = vadd.f32 0.0, %v1227
    %v1229 = vpop.f32.mrf.mxu0
    %v1230 = vpop.f32.mrf.mxu0
    %v1231 = vadd.f32 0.0, %v1230
    %v1232 = vpop.f32.mrf.mxu0
    %1233 = vmatprep.mubr.bf16.mxu0 0
    %1234 = vmatmul.mubr.bf16.gmra.mxu0 %v1150
    %v1235 = vpop.f32.mrf.mxu0
    %v1236 = vadd.f32 0.0, %v1235
    %v1237 = vpop.f32.mrf.mxu0
    %v1238 = vpop.f32.mrf.mxu0
    %v1239 = vadd.f32 0.0, %v1238
    %v1240 = vpop.f32.mrf.mxu0
    %1241 = vmatprep.mubr.bf16.mxu0 0
    %1242 = vmatmul.mubr.bf16.gmra.mxu0 %v1153
    %v1243 = vpop.f32.mrf.mxu0
    %v1244 = vadd.f32 0.0, %v1243
    %v1245 = vpop.f32.mrf.mxu0
    %v1246 = vpop.f32.mrf.mxu0
    %v1247 = vadd.f32 0.0, %v1246
    %v1248 = vpop.f32.mrf.mxu0
    %1249 = vmatprep.mubr.bf16.mxu0 0
    %1250 = vmatmul.mubr.bf16.gmra.mxu0 %v1156
    %v1251 = vpop.f32.mrf.mxu0
    %v1252 = vadd.f32 0.0, %v1251
    %v1253 = vpop.f32.mrf.mxu0
    %v1254 = vpop.f32.mrf.mxu0
    %v1255 = vadd.f32 0.0, %v1254
    %v1256 = vpop.f32.mrf.mxu0
    %1257 = vdwg.mxu0
    %v1258 = vadd.f32 %v1076, %v1196
    %v1259 = vadd.f32 %v1077, %v1199
    %v1260 = vadd.f32 %v1078, %v1204
    %v1261 = vadd.f32 %v1079, %v1207
    %v1262 = vadd.f32 %v1080, %v1212
    %v1263 = vadd.f32 %v1081, %v1215
    %v1264 = vadd.f32 %v1082, %v1220
    %v1265 = vadd.f32 %v1083, %v1223
    %v1266 = vadd.f32 %v1084, %v1228
    %v1267 = vadd.f32 %v1085, %v1231
    %v1268 = vadd.f32 %v1086, %v1236
    %v1269 = vadd.f32 %v1087, %v1239
    %v1270 = vadd.f32 %v1088, %v1244
    %v1271 = vadd.f32 %v1089, %v1247
    %v1272 = vadd.f32 %v1090, %v1252
    %v1273 = vadd.f32 %v1091, %v1255
    %s1274 = scalar_lea.vmem %s1092, 1
    %v1275 = vld [vmem:[%s1274] ss:$2 sm:$0xff]
    %s1276 = scalar_lea.vmem %s1092, 49
    %v1277 = vld [vmem:[%s1276] ss:$2 sm:$0xff]
    %s1278 = scalar_lea.vmem %s1092, 97
    %v1279 = vld [vmem:[%s1278] ss:$2 sm:$0xff]
    %s1280 = scalar_lea.vmem %s1092, 145
    %v1281 = vld [vmem:[%s1280] ss:$2 sm:$0xff]
    %s1282 = scalar_lea.vmem %s1092, 193
    %v1283 = vld [vmem:[%s1282] ss:$2 sm:$0xff]
    %s1284 = scalar_lea.vmem %s1092, 241
    %v1285 = vld [vmem:[%s1284] ss:$2 sm:$0xff]
    %s1286 = scalar_lea.vmem %s1092, 289
    %v1287 = vld [vmem:[%s1286] ss:$2 sm:$0xff]
    %s1288 = scalar_lea.vmem %s1092, 337
    %v1289 = vld [vmem:[%s1288] ss:$2 sm:$0xff]
    %s1290 = scalar_lea.vmem %s1092, 433
    %v1291 = vld [vmem:[%s1290] ss:$2 sm:$0xff]
    %s1292 = scalar_lea.vmem %s1092, 481
    %v1293 = vld [vmem:[%s1292] ss:$2 sm:$0xff]
    %s1294 = scalar_lea.vmem %s1092, 529
    %v1295 = vld [vmem:[%s1294] ss:$2 sm:$0xff]
    %s1296 = scalar_lea.vmem %s1092, 577
    %v1297 = vld [vmem:[%s1296] ss:$2 sm:$0xff]
    %s1298 = scalar_lea.vmem %s1092, 625
    %v1299 = vld [vmem:[%s1298] ss:$2 sm:$0xff]
    %s1300 = scalar_lea.vmem %s1092, 673
    %v1301 = vld [vmem:[%s1300] ss:$2 sm:$0xff]
    %s1302 = scalar_lea.vmem %s1092, 721
    %v1303 = vld [vmem:[%s1302] ss:$2 sm:$0xff]
    %s1304 = scalar_lea.vmem %s1092, 769
    %v1305 = vld [vmem:[%s1304] ss:$2 sm:$0xff]
    %v1306 = vpack.c.bf16 %v1277, %v1275
    %v1307 = vpack.c.bf16 %v1281, %v1279
    %v1308 = vpack.c.bf16 %v1285, %v1283
    %v1309 = vpack.c.bf16 %v1289, %v1287
    %v1310 = vpack.c.bf16 %v1293, %v1291
    %v1311 = vpack.c.bf16 %v1297, %v1295
    %v1312 = vpack.c.bf16 %v1301, %v1299
    %v1313 = vpack.c.bf16 %v1305, %v1303
    %s1314 = scalar_lea.vmem %s1, 28
    %v1315 = vld [vmem:[%s1314] sm:$0xf]
    %v1317 = vsel %vm114, %v1306, 0
    %v1320 = vsel %vm114, %v1307, 0
    %v1323 = vsel %vm114, %v1308, 0
    %v1326 = vsel %vm114, %v1309, 0
    %v1329 = vsel %vm114, %v1310, 0
    %v1332 = vsel %vm114, %v1311, 0
    %v1335 = vsel %vm114, %v1312, 0
    %v1338 = vsel %vm114, %v1313, 0
    %v1341 = vsel %vm139, %v1315, 0
    %1343 = vmatprep.subr.bf16.mxu0 0
    %1344 = vmatpush1.bf16.msra.mxu0 0
    %1345 = vmatprep.subr.bf16.mxu0 0
    %1346 = vmatpush1.bf16.msra.mxu0 0
    %1347 = vmatprep.subr.bf16.mxu0 0
    %1348 = vmatpush1.bf16.msra.mxu0 0
    %1349 = vmatprep.subr.bf16.mxu0 0
    %1350 = vmatpush1.bf16.msra.mxu0 0
    %1351 = vmatprep.subr.bf16.mxu0 0
    %1352 = vmatpush1.bf16.msra.mxu0 0
    %1353 = vmatprep.subr.bf16.mxu0 0
    %1354 = vmatpush1.bf16.msra.mxu0 0
    %1355 = vmatprep.subr.bf16.mxu0 0
    %1356 = vmatpush1.bf16.msra.mxu0 0
    %1357 = vmatprep.subr.bf16.mxu0 0
    %1358 = vmatpush1.bf16.msra.mxu0 %v1341
    %1359 = vmatprep.subr.bf16.mxu0 0
    %1360 = vmatpush2.bf16.msra.mxu0 0
    %1361 = vmatprep.subr.bf16.mxu0 0
    %1362 = vmatpush2.bf16.msra.mxu0 0
    %1363 = vmatprep.subr.bf16.mxu0 0
    %1364 = vmatpush2.bf16.msra.mxu0 0
    %1365 = vmatprep.subr.bf16.mxu0 0
    %1366 = vmatpush2.bf16.msra.mxu0 0
    %1367 = vmatprep.subr.bf16.mxu0 0
    %1368 = vmatpush2.bf16.msra.mxu0 0
    %1369 = vmatprep.subr.bf16.mxu0 0
    %1370 = vmatpush2.bf16.msra.mxu0 0
    %1371 = vmatprep.subr.bf16.mxu0 0
    %1372 = vmatpush2.bf16.msra.mxu0 0
    %1373 = vmatprep.subr.bf16.mxu0 0
    %1374 = vmatpush2.bf16.msra.mxu0 0
    %1375 = vmatprep.mubr.bf16.mxu0 0
    %1376 = vmatmul.mubr.bf16.gmra.mxu0 %v1317
    %v1377 = vpop.f32.mrf.mxu0
    %v1378 = vadd.f32 0.0, %v1377
    %v1379 = vpop.f32.mrf.mxu0
    %v1380 = vpop.f32.mrf.mxu0
    %v1381 = vadd.f32 0.0, %v1380
    %v1382 = vpop.f32.mrf.mxu0
    %1383 = vmatprep.mubr.bf16.mxu0 0
    %1384 = vmatmul.mubr.bf16.gmra.mxu0 %v1320
    %v1385 = vpop.f32.mrf.mxu0
    %v1386 = vadd.f32 0.0, %v1385
    %v1387 = vpop.f32.mrf.mxu0
    %v1388 = vpop.f32.mrf.mxu0
    %v1389 = vadd.f32 0.0, %v1388
    %v1390 = vpop.f32.mrf.mxu0
    %1391 = vmatprep.mubr.bf16.mxu0 0
    %1392 = vmatmul.mubr.bf16.gmra.mxu0 %v1323
    %v1393 = vpop.f32.mrf.mxu0
    %v1394 = vadd.f32 0.0, %v1393
    %v1395 = vpop.f32.mrf.mxu0
    %v1396 = vpop.f32.mrf.mxu0
    %v1397 = vadd.f32 0.0, %v1396
    %v1398 = vpop.f32.mrf.mxu0
    %1399 = vmatprep.mubr.bf16.mxu0 0
    %1400 = vmatmul.mubr.bf16.gmra.mxu0 %v1326
    %v1401 = vpop.f32.mrf.mxu0
    %v1402 = vadd.f32 0.0, %v1401
    %v1403 = vpop.f32.mrf.mxu0
    %v1404 = vpop.f32.mrf.mxu0
    %v1405 = vadd.f32 0.0, %v1404
    %v1406 = vpop.f32.mrf.mxu0
    %1407 = vmatprep.mubr.bf16.mxu0 0
    %1408 = vmatmul.mubr.bf16.gmra.mxu0 %v1329
    %v1409 = vpop.f32.mrf.mxu0
    %v1410 = vadd.f32 0.0, %v1409
    %v1411 = vpop.f32.mrf.mxu0
    %v1412 = vpop.f32.mrf.mxu0
    %v1413 = vadd.f32 0.0, %v1412
    %v1414 = vpop.f32.mrf.mxu0
    %1415 = vmatprep.mubr.bf16.mxu0 0
    %1416 = vmatmul.mubr.bf16.gmra.mxu0 %v1332
    %v1417 = vpop.f32.mrf.mxu0
    %v1418 = vadd.f32 0.0, %v1417
    %v1419 = vpop.f32.mrf.mxu0
    %v1420 = vpop.f32.mrf.mxu0
    %v1421 = vadd.f32 0.0, %v1420
    %v1422 = vpop.f32.mrf.mxu0
    %1423 = vmatprep.mubr.bf16.mxu0 0
    %1424 = vmatmul.mubr.bf16.gmra.mxu0 %v1335
    %v1425 = vpop.f32.mrf.mxu0
    %v1426 = vadd.f32 0.0, %v1425
    %v1427 = vpop.f32.mrf.mxu0
    %v1428 = vpop.f32.mrf.mxu0
    %v1429 = vadd.f32 0.0, %v1428
    %v1430 = vpop.f32.mrf.mxu0
    %1431 = vmatprep.mubr.bf16.mxu0 0
    %1432 = vmatmul.mubr.bf16.gmra.mxu0 %v1338
    %v1433 = vpop.f32.mrf.mxu0
    %v1434 = vadd.f32 0.0, %v1433
    %v1435 = vpop.f32.mrf.mxu0
    %v1436 = vpop.f32.mrf.mxu0
    %v1437 = vadd.f32 0.0, %v1436
    %v1438 = vpop.f32.mrf.mxu0
    %1439 = vdwg.mxu0
    %v1440 = vadd.f32 %v1258, %v1378
    %v1441 = vadd.f32 %v1259, %v1381
    %v1442 = vadd.f32 %v1260, %v1386
    %v1443 = vadd.f32 %v1261, %v1389
    %v1444 = vadd.f32 %v1262, %v1394
    %v1445 = vadd.f32 %v1263, %v1397
    %v1446 = vadd.f32 %v1264, %v1402
    %v1447 = vadd.f32 %v1265, %v1405
    %v1448 = vadd.f32 %v1266, %v1410
    %v1449 = vadd.f32 %v1267, %v1413
    %v1450 = vadd.f32 %v1268, %v1418
    %v1451 = vadd.f32 %v1269, %v1421
    %v1452 = vadd.f32 %v1270, %v1426
    %v1453 = vadd.f32 %v1271, %v1429
    %v1454 = vadd.f32 %v1272, %v1434
    %v1455 = vadd.f32 %v1273, %v1437
    %s1456 = scalar_lea.vmem %s1092, 2
    %v1457 = vld [vmem:[%s1456] ss:$2 sm:$0xff]
    %s1458 = scalar_lea.vmem %s1092, 50
    %v1459 = vld [vmem:[%s1458] ss:$2 sm:$0xff]
    %s1460 = scalar_lea.vmem %s1092, 98
    %v1461 = vld [vmem:[%s1460] ss:$2 sm:$0xff]
    %s1462 = scalar_lea.vmem %s1092, 146
    %v1463 = vld [vmem:[%s1462] ss:$2 sm:$0xff]
    %s1464 = scalar_lea.vmem %s1092, 194
    %v1465 = vld [vmem:[%s1464] ss:$2 sm:$0xff]
    %s1466 = scalar_lea.vmem %s1092, 242
    %v1467 = vld [vmem:[%s1466] ss:$2 sm:$0xff]
    %s1468 = scalar_lea.vmem %s1092, 290
    %v1469 = vld [vmem:[%s1468] ss:$2 sm:$0xff]
    %s1470 = scalar_lea.vmem %s1092, 338
    %v1471 = vld [vmem:[%s1470] ss:$2 sm:$0xff]
    %s1472 = scalar_lea.vmem %s1092, 434
    %v1473 = vld [vmem:[%s1472] ss:$2 sm:$0xff]
    %s1474 = scalar_lea.vmem %s1092, 482
    %v1475 = vld [vmem:[%s1474] ss:$2 sm:$0xff]
    %s1476 = scalar_lea.vmem %s1092, 530
    %v1477 = vld [vmem:[%s1476] ss:$2 sm:$0xff]
    %s1478 = scalar_lea.vmem %s1092, 578
    %v1479 = vld [vmem:[%s1478] ss:$2 sm:$0xff]
    %s1480 = scalar_lea.vmem %s1092, 626
    %v1481 = vld [vmem:[%s1480] ss:$2 sm:$0xff]
    %s1482 = scalar_lea.vmem %s1092, 674
    %v1483 = vld [vmem:[%s1482] ss:$2 sm:$0xff]
    %s1484 = scalar_lea.vmem %s1092, 722
    %v1485 = vld [vmem:[%s1484] ss:$2 sm:$0xff]
    %s1486 = scalar_lea.vmem %s1092, 770
    %v1487 = vld [vmem:[%s1486] ss:$2 sm:$0xff]
    %v1488 = vpack.c.bf16 %v1459, %v1457
    %v1489 = vpack.c.bf16 %v1463, %v1461
    %v1490 = vpack.c.bf16 %v1467, %v1465
    %v1491 = vpack.c.bf16 %v1471, %v1469
    %v1492 = vpack.c.bf16 %v1475, %v1473
    %v1493 = vpack.c.bf16 %v1479, %v1477
    %v1494 = vpack.c.bf16 %v1483, %v1481
    %v1495 = vpack.c.bf16 %v1487, %v1485
    %s1496 = scalar_lea.vmem %s1, 32
    %v1497 = vld [vmem:[%s1496] sm:$0xf]
    %v1499 = vsel %vm114, %v1488, 0
    %v1502 = vsel %vm114, %v1489, 0
    %v1505 = vsel %vm114, %v1490, 0
    %v1508 = vsel %vm114, %v1491, 0
    %v1511 = vsel %vm114, %v1492, 0
    %v1514 = vsel %vm114, %v1493, 0
    %v1517 = vsel %vm114, %v1494, 0
    %v1520 = vsel %vm114, %v1495, 0
    %v1523 = vsel %vm139, %v1497, 0
    %1525 = vmatprep.subr.bf16.mxu0 0
    %1526 = vmatpush1.bf16.msra.mxu0 0
    %1527 = vmatprep.subr.bf16.mxu0 0
    %1528 = vmatpush1.bf16.msra.mxu0 0
    %1529 = vmatprep.subr.bf16.mxu0 0
    %1530 = vmatpush1.bf16.msra.mxu0 0
    %1531 = vmatprep.subr.bf16.mxu0 0
    %1532 = vmatpush1.bf16.msra.mxu0 0
    %1533 = vmatprep.subr.bf16.mxu0 0
    %1534 = vmatpush1.bf16.msra.mxu0 0
    %1535 = vmatprep.subr.bf16.mxu0 0
    %1536 = vmatpush1.bf16.msra.mxu0 0
    %1537 = vmatprep.subr.bf16.mxu0 0
    %1538 = vmatpush1.bf16.msra.mxu0 0
    %1539 = vmatprep.subr.bf16.mxu0 0
    %1540 = vmatpush1.bf16.msra.mxu0 %v1523
    %1541 = vmatprep.subr.bf16.mxu0 0
    %1542 = vmatpush2.bf16.msra.mxu0 0
    %1543 = vmatprep.subr.bf16.mxu0 0
    %1544 = vmatpush2.bf16.msra.mxu0 0
    %1545 = vmatprep.subr.bf16.mxu0 0
    %1546 = vmatpush2.bf16.msra.mxu0 0
    %1547 = vmatprep.subr.bf16.mxu0 0
    %1548 = vmatpush2.bf16.msra.mxu0 0
    %1549 = vmatprep.subr.bf16.mxu0 0
    %1550 = vmatpush2.bf16.msra.mxu0 0
    %1551 = vmatprep.subr.bf16.mxu0 0
    %1552 = vmatpush2.bf16.msra.mxu0 0
    %1553 = vmatprep.subr.bf16.mxu0 0
    %1554 = vmatpush2.bf16.msra.mxu0 0
    %1555 = vmatprep.subr.bf16.mxu0 0
    %1556 = vmatpush2.bf16.msra.mxu0 0
    %1557 = vmatprep.mubr.bf16.mxu0 0
    %1558 = vmatmul.mubr.bf16.gmra.mxu0 %v1499
    %v1559 = vpop.f32.mrf.mxu0
    %v1560 = vadd.f32 0.0, %v1559
    %v1561 = vpop.f32.mrf.mxu0
    %v1562 = vpop.f32.mrf.mxu0
    %v1563 = vadd.f32 0.0, %v1562
    %v1564 = vpop.f32.mrf.mxu0
    %1565 = vmatprep.mubr.bf16.mxu0 0
    %1566 = vmatmul.mubr.bf16.gmra.mxu0 %v1502
    %v1567 = vpop.f32.mrf.mxu0
    %v1568 = vadd.f32 0.0, %v1567
    %v1569 = vpop.f32.mrf.mxu0
    %v1570 = vpop.f32.mrf.mxu0
    %v1571 = vadd.f32 0.0, %v1570
    %v1572 = vpop.f32.mrf.mxu0
    %1573 = vmatprep.mubr.bf16.mxu0 0
    %1574 = vmatmul.mubr.bf16.gmra.mxu0 %v1505
    %v1575 = vpop.f32.mrf.mxu0
    %v1576 = vadd.f32 0.0, %v1575
    %v1577 = vpop.f32.mrf.mxu0
    %v1578 = vpop.f32.mrf.mxu0
    %v1579 = vadd.f32 0.0, %v1578
    %v1580 = vpop.f32.mrf.mxu0
    %1581 = vmatprep.mubr.bf16.mxu0 0
    %1582 = vmatmul.mubr.bf16.gmra.mxu0 %v1508
    %v1583 = vpop.f32.mrf.mxu0
    %v1584 = vadd.f32 0.0, %v1583
    %v1585 = vpop.f32.mrf.mxu0
    %v1586 = vpop.f32.mrf.mxu0
    %v1587 = vadd.f32 0.0, %v1586
    %v1588 = vpop.f32.mrf.mxu0
    %1589 = vmatprep.mubr.bf16.mxu0 0
    %1590 = vmatmul.mubr.bf16.gmra.mxu0 %v1511
    %v1591 = vpop.f32.mrf.mxu0
    %v1592 = vadd.f32 0.0, %v1591
    %v1593 = vpop.f32.mrf.mxu0
    %v1594 = vpop.f32.mrf.mxu0
    %v1595 = vadd.f32 0.0, %v1594
    %v1596 = vpop.f32.mrf.mxu0
    %1597 = vmatprep.mubr.bf16.mxu0 0
    %1598 = vmatmul.mubr.bf16.gmra.mxu0 %v1514
    %v1599 = vpop.f32.mrf.mxu0
    %v1600 = vadd.f32 0.0, %v1599
    %v1601 = vpop.f32.mrf.mxu0
    %v1602 = vpop.f32.mrf.mxu0
    %v1603 = vadd.f32 0.0, %v1602
    %v1604 = vpop.f32.mrf.mxu0
    %1605 = vmatprep.mubr.bf16.mxu0 0
    %1606 = vmatmul.mubr.bf16.gmra.mxu0 %v1517
    %v1607 = vpop.f32.mrf.mxu0
    %v1608 = vadd.f32 0.0, %v1607
    %v1609 = vpop.f32.mrf.mxu0
    %v1610 = vpop.f32.mrf.mxu0
    %v1611 = vadd.f32 0.0, %v1610
    %v1612 = vpop.f32.mrf.mxu0
    %1613 = vmatprep.mubr.bf16.mxu0 0
    %1614 = vmatmul.mubr.bf16.gmra.mxu0 %v1520
    %v1615 = vpop.f32.mrf.mxu0
    %v1616 = vadd.f32 0.0, %v1615
    %v1617 = vpop.f32.mrf.mxu0
    %v1618 = vpop.f32.mrf.mxu0
    %v1619 = vadd.f32 0.0, %v1618
    %v1620 = vpop.f32.mrf.mxu0
    %1621 = vdwg.mxu0
    %v1622 = vadd.f32 %v1440, %v1560
    %v1623 = vadd.f32 %v1441, %v1563
    %v1624 = vadd.f32 %v1442, %v1568
    %v1625 = vadd.f32 %v1443, %v1571
    %v1626 = vadd.f32 %v1444, %v1576
    %v1627 = vadd.f32 %v1445, %v1579
    %v1628 = vadd.f32 %v1446, %v1584
    %v1629 = vadd.f32 %v1447, %v1587
    %v1630 = vadd.f32 %v1448, %v1592
    %v1631 = vadd.f32 %v1449, %v1595
    %v1632 = vadd.f32 %v1450, %v1600
    %v1633 = vadd.f32 %v1451, %v1603
    %v1634 = vadd.f32 %v1452, %v1608
    %v1635 = vadd.f32 %v1453, %v1611
    %v1636 = vadd.f32 %v1454, %v1616
    %v1637 = vadd.f32 %v1455, %v1619
    %v1639 = vlaneseq
    %v1640 = vshrl.u32 %v1639, 7
    %v1641 = vsub.s32 0, %v1640
    %v1642 = vrot.slane %v31, %v1641
    %v1644 = vadd.f32 %v1622, %v1642
    %v1645 = vadd.f32 %v1623, %v1642
    %v1646 = vadd.f32 %v1624, %v1642
    %v1647 = vadd.f32 %v1625, %v1642
    %v1648 = vadd.f32 %v1626, %v1642
    %v1649 = vadd.f32 %v1627, %v1642
    %v1650 = vadd.f32 %v1628, %v1642
    %v1651 = vadd.f32 %v1629, %v1642
    %v1652 = vadd.f32 %v1630, %v1642
    %v1653 = vadd.f32 %v1631, %v1642
    %v1654 = vadd.f32 %v1632, %v1642
    %v1655 = vadd.f32 %v1633, %v1642
    %v1656 = vadd.f32 %v1634, %v1642
    %v1657 = vadd.f32 %v1635, %v1642
    %v1658 = vadd.f32 %v1636, %v1642
    %v1659 = vadd.f32 %v1637, %v1642
    %v1660 = vmax.f32 %v1644, 0.0
    %v1661 = vmax.f32 %v1645, 0.0
    %v1662 = vmax.f32 %v1646, 0.0
    %v1663 = vmax.f32 %v1647, 0.0
    %v1664 = vmax.f32 %v1648, 0.0
    %v1665 = vmax.f32 %v1649, 0.0
    %v1666 = vmax.f32 %v1650, 0.0
    %v1667 = vmax.f32 %v1651, 0.0
    %v1668 = vmax.f32 %v1652, 0.0
    %v1669 = vmax.f32 %v1653, 0.0
    %v1670 = vmax.f32 %v1654, 0.0
    %v1671 = vmax.f32 %v1655, 0.0
    %v1672 = vmax.f32 %v1656, 0.0
    %v1673 = vmax.f32 %v1657, 0.0
    %v1674 = vmax.f32 %v1658, 0.0
    %v1675 = vmax.f32 %v1659, 0.0
    %1676 = vst.msk [vmem:[#allocation2] sm:$0xff] %vm114, 0.0
    %1677 = vst.msk [vmem:[#allocation2 + $0x8] sm:$0xff] %vm114, 0.0
    %vm1678 = vcmask 57344
    %1679 = vst.msk [vmem:[#allocation2 + $0x10] sm:$0x1] %vm1678, 0.0
    %1680 = vst.msk [vmem:[#allocation2 + $0x18] sm:$0xff] %vm114, 0.0
    %1681 = vst.msk [vmem:[#allocation2 + $0x20] sm:$0xff] %vm114, 0.0
    %1682 = vst.msk [vmem:[#allocation2 + $0x28] sm:$0x1] %vm1678, 0.0
    %1683 = vst.msk [vmem:[#allocation2 + $0x30] sm:$0xff] %vm114, 0.0
    %1684 = vst.msk [vmem:[#allocation2 + $0x38] sm:$0xff] %vm114, 0.0
    %1685 = vst.msk [vmem:[#allocation2 + $0x40] sm:$0x1] %vm1678, 0.0
    %1686 = vst.msk [vmem:[#allocation2 + $0x48] sm:$0xff] %vm114, 0.0
    %1687 = vst.msk [vmem:[#allocation2 + $0x50] sm:$0xff] %vm114, 0.0
    %1688 = vst.msk [vmem:[#allocation2 + $0x58] sm:$0x1] %vm1678, 0.0
    %1689 = vst.msk [vmem:[#allocation2 + $0x60] sm:$0xff] %vm114, 0.0
    %1690 = vst.msk [vmem:[#allocation2 + $0x68] sm:$0xff] %vm114, 0.0
    %1691 = vst.msk [vmem:[#allocation2 + $0x70] sm:$0x1] %vm1678, 0.0
    %1692 = vst.msk [vmem:[#allocation2 + $0x78] sm:$0xff] %vm114, 0.0
    %1693 = vst.msk [vmem:[#allocation2 + $0x80] sm:$0xff] %vm114, 0.0
    %1694 = vst.msk [vmem:[#allocation2 + $0x88] sm:$0x1] %vm1678, 0.0
    %1695 = vst.msk [vmem:[#allocation2 + $0x90] sm:$0xff] %vm114, 0.0
    %1696 = vst.msk [vmem:[#allocation2 + $0x98] sm:$0xff] %vm114, 0.0
    %1697 = vst.msk [vmem:[#allocation2 + $0xa0] sm:$0x1] %vm1678, 0.0
    %1698 = vst.msk [vmem:[#allocation2 + $0xa8] sm:$0xff] %vm114, 0.0
    %1699 = vst.msk [vmem:[#allocation2 + $0xb0] sm:$0xff] %vm114, 0.0
    %1700 = vst.msk [vmem:[#allocation2 + $0xb8] sm:$0x1] %vm1678, 0.0
    %1701 = vst.msk [vmem:[#allocation2 + $0xc0] sm:$0xff] %vm114, 0.0
    %1702 = vst.msk [vmem:[#allocation2 + $0xc8] sm:$0xff] %vm114, 0.0
    %1703 = vst.msk [vmem:[#allocation2 + $0xd0] sm:$0x1] %vm1678, 0.0
    %1704 = vst.msk [vmem:[#allocation2 + $0xd8] sm:$0xff] %vm114, 0.0
    %1705 = vst.msk [vmem:[#allocation2 + $0xe0] sm:$0xff] %vm114, 0.0
    %1706 = vst.msk [vmem:[#allocation2 + $0xe8] sm:$0x1] %vm1678, 0.0
    %1707 = vst.msk [vmem:[#allocation2 + $0xf0] sm:$0xff] %vm114, 0.0
    %1708 = vst.msk [vmem:[#allocation2 + $0xf8] sm:$0xff] %vm114, 0.0
    %1709 = vst.msk [vmem:[#allocation2 + $0x100] sm:$0x1] %vm1678, 0.0
    %1710 = vst.msk [vmem:[#allocation2 + $0x108] sm:$0xff] %vm114, 0.0
    %1711 = vst.msk [vmem:[#allocation2 + $0x110] sm:$0xff] %vm114, 0.0
    %1712 = vst.msk [vmem:[#allocation2 + $0x118] sm:$0x1] %vm1678, 0.0
    %1713 = vst.msk [vmem:[#allocation2 + $0x120] sm:$0xff] %vm114, 0.0
    %1714 = vst.msk [vmem:[#allocation2 + $0x128] sm:$0xff] %vm114, 0.0
    %1715 = vst.msk [vmem:[#allocation2 + $0x130] sm:$0x1] %vm1678, 0.0
    %1716 = vst.msk [vmem:[#allocation2 + $0x138] sm:$0xff] %vm114, 0.0
    %1717 = vst.msk [vmem:[#allocation2 + $0x140] sm:$0xff] %vm114, 0.0
    %1718 = vst.msk [vmem:[#allocation2 + $0x148] sm:$0x1] %vm1678, 0.0
    %1719 = vst.msk [vmem:[#allocation2 + $0x150] sm:$0xff] %vm114, 0.0
    %1720 = vst.msk [vmem:[#allocation2 + $0x158] sm:$0xff] %vm114, 0.0
    %1721 = vst.msk [vmem:[#allocation2 + $0x160] sm:$0x1] %vm1678, 0.0
    %1722 = vst.msk [vmem:[#allocation2 + $0x168] sm:$0xff] %vm114, 0.0
    %1723 = vst.msk [vmem:[#allocation2 + $0x170] sm:$0xff] %vm114, 0.0
    %1724 = vst.msk [vmem:[#allocation2 + $0x178] sm:$0x1] %vm1678, 0.0
    %1725 = vst.msk [vmem:[#allocation2 + $0x180] sm:$0xff] %vm114, 0.0
    %1726 = vst.msk [vmem:[#allocation2 + $0x188] sm:$0xff] %vm114, 0.0
    %1727 = vst.msk [vmem:[#allocation2 + $0x190] sm:$0x1] %vm1678, 0.0
    %1728 = vst.msk [vmem:[#allocation2 + $0x198] sm:$0xff] %vm114, 0.0
    %1729 = vst.msk [vmem:[#allocation2 + $0x1a0] sm:$0xff] %vm114, 0.0
    %1730 = vst.msk [vmem:[#allocation2 + $0x1a8] sm:$0x1] %vm1678, 0.0
    %1731 = vst.msk [vmem:[#allocation2 + $0x1b0] sm:$0xff] %vm114, 0.0
    %1732 = vst.msk [vmem:[#allocation2 + $0x1b8] sm:$0xff] %vm114, 0.0
    %1733 = vst.msk [vmem:[#allocation2 + $0x1c0] sm:$0x1] %vm1678, 0.0
    %1734 = vst.msk [vmem:[#allocation2 + $0x1c8] sm:$0xff] %vm114, 0.0
    %1735 = vst.msk [vmem:[#allocation2 + $0x1d0] sm:$0xff] %vm114, 0.0
    %1736 = vst.msk [vmem:[#allocation2 + $0x1d8] sm:$0x1] %vm1678, 0.0
    %s1737 = scalar_lea.vmem [#allocation2], 24
    %1738 = vst.msk [vmem:[%s1737 + $0x1] sm:$0xff] %vm114, %v1660
    %1739 = vst.msk [vmem:[%s1737 + $0x19] sm:$0xff] %vm114, %v1661
    %1740 = vst.msk [vmem:[%s1737 + $0x31] sm:$0xff] %vm114, %v1662
    %1741 = vst.msk [vmem:[%s1737 + $0x49] sm:$0xff] %vm114, %v1663
    %1742 = vst.msk [vmem:[%s1737 + $0x61] sm:$0xff] %vm114, %v1664
    %1743 = vst.msk [vmem:[%s1737 + $0x79] sm:$0xff] %vm114, %v1665
    %1744 = vst.msk [vmem:[%s1737 + $0x91] sm:$0xff] %vm114, %v1666
    %1745 = vst.msk [vmem:[%s1737 + $0xa9] sm:$0xff] %vm114, %v1667
    %1746 = vst.msk [vmem:[%s1737 + $0xf1] sm:$0xff] %vm114, %v1668
    %1747 = vst.msk [vmem:[%s1737 + $0x109] sm:$0xff] %vm114, %v1669
    %1748 = vst.msk [vmem:[%s1737 + $0x121] sm:$0xff] %vm114, %v1670
    %1749 = vst.msk [vmem:[%s1737 + $0x139] sm:$0xff] %vm114, %v1671
    %1750 = vst.msk [vmem:[%s1737 + $0x151] sm:$0xff] %vm114, %v1672
    %1751 = vst.msk [vmem:[%s1737 + $0x169] sm:$0xff] %vm114, %v1673
    %1752 = vst.msk [vmem:[%s1737 + $0x181] sm:$0xff] %vm114, %v1674
    %1753 = vst.msk [vmem:[%s1737 + $0x199] sm:$0xff] %vm114, %v1675
    %v1754 = vld [vmem:[%s4] sm:$0x1]
    %v1755 = vld [vmem:[#allocation2] ss:$2 sm:$0xff]
    %s1756 = scalar_lea.vmem [#allocation2], 48
    %v1757 = vld [vmem:[%s1756] ss:$2 sm:$0xff]
    %s1758 = scalar_lea.vmem [#allocation2], 96
    %v1759 = vld [vmem:[%s1758] ss:$2 sm:$0xff]
    %s1760 = scalar_lea.vmem [#allocation2], 144
    %v1761 = vld [vmem:[%s1760] ss:$2 sm:$0xff]
    %s1762 = scalar_lea.vmem [#allocation2], 240
    %v1763 = vld [vmem:[%s1762] ss:$2 sm:$0xff]
    %s1764 = scalar_lea.vmem [#allocation2], 288
    %v1765 = vld [vmem:[%s1764] ss:$2 sm:$0xff]
    %s1766 = scalar_lea.vmem [#allocation2], 336
    %v1767 = vld [vmem:[%s1766] ss:$2 sm:$0xff]
    %s1768 = scalar_lea.vmem [#allocation2], 384
    %v1769 = vld [vmem:[%s1768] ss:$2 sm:$0xff]
    %v1770 = vpack.c.bf16 %v1757, %v1755
    %v1771 = vpack.c.bf16 %v1761, %v1759
    %v1772 = vpack.c.bf16 %v1765, %v1763
    %v1773 = vpack.c.bf16 %v1769, %v1767
    %v1774 = vld [vmem:[%s3] sm:$0xf]
    %s1775 = scalar_lea.vmem [#allocation2], 1
    %v1776 = vld [vmem:[%s1775] ss:$2 sm:$0xff]
    %s1777 = scalar_lea.vmem [#allocation2], 49
    %v1778 = vld [vmem:[%s1777] ss:$2 sm:$0xff]
    %s1779 = scalar_lea.vmem [#allocation2], 97
    %v1780 = vld [vmem:[%s1779] ss:$2 sm:$0xff]
    %s1781 = scalar_lea.vmem [#allocation2], 145
    %v1782 = vld [vmem:[%s1781] ss:$2 sm:$0xff]
    %s1783 = scalar_lea.vmem [#allocation2], 241
    %v1784 = vld [vmem:[%s1783] ss:$2 sm:$0xff]
    %s1785 = scalar_lea.vmem [#allocation2], 289
    %v1786 = vld [vmem:[%s1785] ss:$2 sm:$0xff]
    %s1787 = scalar_lea.vmem [#allocation2], 337
    %v1788 = vld [vmem:[%s1787] ss:$2 sm:$0xff]
    %s1789 = scalar_lea.vmem [#allocation2], 385
    %v1790 = vld [vmem:[%s1789] ss:$2 sm:$0xff]
    %v1791 = vpack.c.bf16 %v1778, %v1776
    %v1792 = vpack.c.bf16 %v1782, %v1780
    %v1793 = vpack.c.bf16 %v1786, %v1784
    %v1794 = vpack.c.bf16 %v1790, %v1788
    %s1795 = scalar_lea.vmem %s3, 4
    %v1796 = vld [vmem:[%s1795] sm:$0xf]
    %v1798 = vsel %vm114, %v1791, 0
    %v1801 = vsel %vm114, %v1792, 0
    %v1804 = vsel %vm114, %v1793, 0
    %v1807 = vsel %vm114, %v1794, 0
    %v1810 = vsel %vm139, %v1796, 0
    %1812 = vmatprep.subr.bf16.mxu0 0
    %1813 = vmatpush1.bf16.msra.mxu0 0
    %1814 = vmatprep.subr.bf16.mxu0 0
    %1815 = vmatpush1.bf16.msra.mxu0 0
    %1816 = vmatprep.subr.bf16.mxu0 0
    %1817 = vmatpush1.bf16.msra.mxu0 0
    %1818 = vmatprep.subr.bf16.mxu0 0
    %1819 = vmatpush1.bf16.msra.mxu0 0
    %1820 = vmatprep.subr.bf16.mxu0 0
    %1821 = vmatpush1.bf16.msra.mxu0 0
    %1822 = vmatprep.subr.bf16.mxu0 0
    %1823 = vmatpush1.bf16.msra.mxu0 0
    %1824 = vmatprep.subr.bf16.mxu0 0
    %1825 = vmatpush1.bf16.msra.mxu0 0
    %1826 = vmatprep.subr.bf16.mxu0 0
    %1827 = vmatpush1.bf16.msra.mxu0 %v1810
    %1828 = vmatprep.subr.bf16.mxu0 0
    %1829 = vmatpush2.bf16.msra.mxu0 0
    %1830 = vmatprep.subr.bf16.mxu0 0
    %1831 = vmatpush2.bf16.msra.mxu0 0
    %1832 = vmatprep.subr.bf16.mxu0 0
    %1833 = vmatpush2.bf16.msra.mxu0 0
    %1834 = vmatprep.subr.bf16.mxu0 0
    %1835 = vmatpush2.bf16.msra.mxu0 0
    %1836 = vmatprep.subr.bf16.mxu0 0
    %1837 = vmatpush2.bf16.msra.mxu0 0
    %1838 = vmatprep.subr.bf16.mxu0 0
    %1839 = vmatpush2.bf16.msra.mxu0 0
    %1840 = vmatprep.subr.bf16.mxu0 0
    %1841 = vmatpush2.bf16.msra.mxu0 0
    %1842 = vmatprep.subr.bf16.mxu0 0
    %1843 = vmatpush2.bf16.msra.mxu0 0
    %1844 = vmatprep.mubr.bf16.mxu0 0
    %1845 = vmatmul.mubr.bf16.gmra.mxu0 %v1798
    %v1846 = vpop.f32.mrf.mxu0
    %v1847 = vadd.f32 0.0, %v1846
    %v1848 = vpop.f32.mrf.mxu0
    %v1849 = vpop.f32.mrf.mxu0
    %v1850 = vadd.f32 0.0, %v1849
    %v1851 = vpop.f32.mrf.mxu0
    %1852 = vmatprep.mubr.bf16.mxu0 0
    %1853 = vmatmul.mubr.bf16.gmra.mxu0 %v1801
    %v1854 = vpop.f32.mrf.mxu0
    %v1855 = vadd.f32 0.0, %v1854
    %v1856 = vpop.f32.mrf.mxu0
    %v1857 = vpop.f32.mrf.mxu0
    %v1858 = vadd.f32 0.0, %v1857
    %v1859 = vpop.f32.mrf.mxu0
    %1860 = vmatprep.mubr.bf16.mxu0 0
    %1861 = vmatmul.mubr.bf16.gmra.mxu0 %v1804
    %v1862 = vpop.f32.mrf.mxu0
    %v1863 = vadd.f32 0.0, %v1862
    %v1864 = vpop.f32.mrf.mxu0
    %v1865 = vpop.f32.mrf.mxu0
    %v1866 = vadd.f32 0.0, %v1865
    %v1867 = vpop.f32.mrf.mxu0
    %1868 = vmatprep.mubr.bf16.mxu0 0
    %1869 = vmatmul.mubr.bf16.gmra.mxu0 %v1807
    %v1870 = vpop.f32.mrf.mxu0
    %v1871 = vadd.f32 0.0, %v1870
    %v1872 = vpop.f32.mrf.mxu0
    %v1873 = vpop.f32.mrf.mxu0
    %v1874 = vadd.f32 0.0, %v1873
    %v1875 = vpop.f32.mrf.mxu0
    %1876 = vdwg.mxu0
    %v1878 = vsel %vm114, %v1770, 0
    %v1881 = vsel %vm114, %v1771, 0
    %v1884 = vsel %vm114, %v1772, 0
    %v1887 = vsel %vm114, %v1773, 0
    %v1890 = vsel %vm139, %v1774, 0
    %1892 = vmatprep.subr.bf16.mxu0 0
    %1893 = vmatpush1.bf16.msra.mxu0 0
    %1894 = vmatprep.subr.bf16.mxu0 0
    %1895 = vmatpush1.bf16.msra.mxu0 0
    %1896 = vmatprep.subr.bf16.mxu0 0
    %1897 = vmatpush1.bf16.msra.mxu0 0
    %1898 = vmatprep.subr.bf16.mxu0 0
    %1899 = vmatpush1.bf16.msra.mxu0 0
    %1900 = vmatprep.subr.bf16.mxu0 0
    %1901 = vmatpush1.bf16.msra.mxu0 0
    %1902 = vmatprep.subr.bf16.mxu0 0
    %1903 = vmatpush1.bf16.msra.mxu0 0
    %1904 = vmatprep.subr.bf16.mxu0 0
    %1905 = vmatpush1.bf16.msra.mxu0 0
    %1906 = vmatprep.subr.bf16.mxu0 0
    %1907 = vmatpush1.bf16.msra.mxu0 %v1890
    %1908 = vmatprep.subr.bf16.mxu0 0
    %1909 = vmatpush2.bf16.msra.mxu0 0
    %1910 = vmatprep.subr.bf16.mxu0 0
    %1911 = vmatpush2.bf16.msra.mxu0 0
    %1912 = vmatprep.subr.bf16.mxu0 0
    %1913 = vmatpush2.bf16.msra.mxu0 0
    %1914 = vmatprep.subr.bf16.mxu0 0
    %1915 = vmatpush2.bf16.msra.mxu0 0
    %1916 = vmatprep.subr.bf16.mxu0 0
    %1917 = vmatpush2.bf16.msra.mxu0 0
    %1918 = vmatprep.subr.bf16.mxu0 0
    %1919 = vmatpush2.bf16.msra.mxu0 0
    %1920 = vmatprep.subr.bf16.mxu0 0
    %1921 = vmatpush2.bf16.msra.mxu0 0
    %1922 = vmatprep.subr.bf16.mxu0 0
    %1923 = vmatpush2.bf16.msra.mxu0 0
    %1924 = vmatprep.mubr.bf16.mxu0 0
    %1925 = vmatmul.mubr.bf16.gmra.mxu0 %v1878
    %v1926 = vpop.f32.mrf.mxu0
    %v1927 = vadd.f32 %v1847, %v1926
    %v1928 = vpop.f32.mrf.mxu0
    %v1929 = vpop.f32.mrf.mxu0
    %v1930 = vadd.f32 %v1850, %v1929
    %v1931 = vpop.f32.mrf.mxu0
    %1932 = vmatprep.mubr.bf16.mxu0 0
    %1933 = vmatmul.mubr.bf16.gmra.mxu0 %v1881
    %v1934 = vpop.f32.mrf.mxu0
    %v1935 = vadd.f32 %v1855, %v1934
    %v1936 = vpop.f32.mrf.mxu0
    %v1937 = vpop.f32.mrf.mxu0
    %v1938 = vadd.f32 %v1858, %v1937
    %v1939 = vpop.f32.mrf.mxu0
    %1940 = vmatprep.mubr.bf16.mxu0 0
    %1941 = vmatmul.mubr.bf16.gmra.mxu0 %v1884
    %v1942 = vpop.f32.mrf.mxu0
    %v1943 = vadd.f32 %v1863, %v1942
    %v1944 = vpop.f32.mrf.mxu0
    %v1945 = vpop.f32.mrf.mxu0
    %v1946 = vadd.f32 %v1866, %v1945
    %v1947 = vpop.f32.mrf.mxu0
    %1948 = vmatprep.mubr.bf16.mxu0 0
    %1949 = vmatmul.mubr.bf16.gmra.mxu0 %v1887
    %v1950 = vpop.f32.mrf.mxu0
    %v1951 = vadd.f32 %v1871, %v1950
    %v1952 = vpop.f32.mrf.mxu0
    %v1953 = vpop.f32.mrf.mxu0
    %v1954 = vadd.f32 %v1874, %v1953
    %v1955 = vpop.f32.mrf.mxu0
    %1956 = vdwg.mxu0
    %s1957 = scalar_lea.vmem [#allocation2], 2
    %v1958 = vld [vmem:[%s1957] ss:$2 sm:$0xff]
    %s1959 = scalar_lea.vmem [#allocation2], 50
    %v1960 = vld [vmem:[%s1959] ss:$2 sm:$0xff]
    %s1961 = scalar_lea.vmem [#allocation2], 98
    %v1962 = vld [vmem:[%s1961] ss:$2 sm:$0xff]
    %s1963 = scalar_lea.vmem [#allocation2], 146
    %v1964 = vld [vmem:[%s1963] ss:$2 sm:$0xff]
    %s1965 = scalar_lea.vmem [#allocation2], 242
    %v1966 = vld [vmem:[%s1965] ss:$2 sm:$0xff]
    %s1967 = scalar_lea.vmem [#allocation2], 290
    %v1968 = vld [vmem:[%s1967] ss:$2 sm:$0xff]
    %s1969 = scalar_lea.vmem [#allocation2], 338
    %v1970 = vld [vmem:[%s1969] ss:$2 sm:$0xff]
    %s1971 = scalar_lea.vmem [#allocation2], 386
    %v1972 = vld [vmem:[%s1971] ss:$2 sm:$0xff]
    %v1973 = vpack.c.bf16 %v1960, %v1958
    %v1974 = vpack.c.bf16 %v1964, %v1962
    %v1975 = vpack.c.bf16 %v1968, %v1966
    %v1976 = vpack.c.bf16 %v1972, %v1970
    %s1977 = scalar_lea.vmem %s3, 8
    %v1978 = vld [vmem:[%s1977] sm:$0xf]
    %v1980 = vsel %vm114, %v1973, 0
    %v1983 = vsel %vm114, %v1974, 0
    %v1986 = vsel %vm114, %v1975, 0
    %v1989 = vsel %vm114, %v1976, 0
    %v1992 = vsel %vm139, %v1978, 0
    %1994 = vmatprep.subr.bf16.mxu0 0
    %1995 = vmatpush1.bf16.msra.mxu0 0
    %1996 = vmatprep.subr.bf16.mxu0 0
    %1997 = vmatpush1.bf16.msra.mxu0 0
    %1998 = vmatprep.subr.bf16.mxu0 0
    %1999 = vmatpush1.bf16.msra.mxu0 0
    %2000 = vmatprep.subr.bf16.mxu0 0
    %2001 = vmatpush1.bf16.msra.mxu0 0
    %2002 = vmatprep.subr.bf16.mxu0 0
    %2003 = vmatpush1.bf16.msra.mxu0 0
    %2004 = vmatprep.subr.bf16.mxu0 0
    %2005 = vmatpush1.bf16.msra.mxu0 0
    %2006 = vmatprep.subr.bf16.mxu0 0
    %2007 = vmatpush1.bf16.msra.mxu0 0
    %2008 = vmatprep.subr.bf16.mxu0 0
    %2009 = vmatpush1.bf16.msra.mxu0 %v1992
    %2010 = vmatprep.subr.bf16.mxu0 0
    %2011 = vmatpush2.bf16.msra.mxu0 0
    %2012 = vmatprep.subr.bf16.mxu0 0
    %2013 = vmatpush2.bf16.msra.mxu0 0
    %2014 = vmatprep.subr.bf16.mxu0 0
    %2015 = vmatpush2.bf16.msra.mxu0 0
    %2016 = vmatprep.subr.bf16.mxu0 0
    %2017 = vmatpush2.bf16.msra.mxu0 0
    %2018 = vmatprep.subr.bf16.mxu0 0
    %2019 = vmatpush2.bf16.msra.mxu0 0
    %2020 = vmatprep.subr.bf16.mxu0 0
    %2021 = vmatpush2.bf16.msra.mxu0 0
    %2022 = vmatprep.subr.bf16.mxu0 0
    %2023 = vmatpush2.bf16.msra.mxu0 0
    %2024 = vmatprep.subr.bf16.mxu0 0
    %2025 = vmatpush2.bf16.msra.mxu0 0
    %2026 = vmatprep.mubr.bf16.mxu0 0
    %2027 = vmatmul.mubr.bf16.gmra.mxu0 %v1980
    %v2028 = vpop.f32.mrf.mxu0
    %v2029 = vadd.f32 0.0, %v2028
    %v2030 = vpop.f32.mrf.mxu0
    %v2031 = vpop.f32.mrf.mxu0
    %v2032 = vadd.f32 0.0, %v2031
    %v2033 = vpop.f32.mrf.mxu0
    %2034 = vmatprep.mubr.bf16.mxu0 0
    %2035 = vmatmul.mubr.bf16.gmra.mxu0 %v1983
    %v2036 = vpop.f32.mrf.mxu0
    %v2037 = vadd.f32 0.0, %v2036
    %v2038 = vpop.f32.mrf.mxu0
    %v2039 = vpop.f32.mrf.mxu0
    %v2040 = vadd.f32 0.0, %v2039
    %v2041 = vpop.f32.mrf.mxu0
    %2042 = vmatprep.mubr.bf16.mxu0 0
    %2043 = vmatmul.mubr.bf16.gmra.mxu0 %v1986
    %v2044 = vpop.f32.mrf.mxu0
    %v2045 = vadd.f32 0.0, %v2044
    %v2046 = vpop.f32.mrf.mxu0
    %v2047 = vpop.f32.mrf.mxu0
    %v2048 = vadd.f32 0.0, %v2047
    %v2049 = vpop.f32.mrf.mxu0
    %2050 = vmatprep.mubr.bf16.mxu0 0
    %2051 = vmatmul.mubr.bf16.gmra.mxu0 %v1989
    %v2052 = vpop.f32.mrf.mxu0
    %v2053 = vadd.f32 0.0, %v2052
    %v2054 = vpop.f32.mrf.mxu0
    %v2055 = vpop.f32.mrf.mxu0
    %v2056 = vadd.f32 0.0, %v2055
    %v2057 = vpop.f32.mrf.mxu0
    %2058 = vdwg.mxu0
    %v2059 = vadd.f32 %v1927, %v2029
    %v2060 = vadd.f32 %v1930, %v2032
    %v2061 = vadd.f32 %v1935, %v2037
    %v2062 = vadd.f32 %v1938, %v2040
    %v2063 = vadd.f32 %v1943, %v2045
    %v2064 = vadd.f32 %v1946, %v2048
    %v2065 = vadd.f32 %v1951, %v2053
    %v2066 = vadd.f32 %v1954, %v2056
    %v2067 = vld [vmem:[%s1737] ss:$2 sm:$0xff]
    %s2068 = scalar_lea.vmem %s1737, 48 [#allocation2]
    %v2069 = vld [vmem:[%s2068] ss:$2 sm:$0xff]
    %s2070 = scalar_lea.vmem %s1737, 96 [#allocation2]
    %v2071 = vld [vmem:[%s2070] ss:$2 sm:$0xff]
    %s2072 = scalar_lea.vmem %s1737, 144 [#allocation2]
    %v2073 = vld [vmem:[%s2072] ss:$2 sm:$0xff]
    %s2074 = scalar_lea.vmem %s1737, 240 [#allocation2]
    %v2075 = vld [vmem:[%s2074] ss:$2 sm:$0xff]
    %s2076 = scalar_lea.vmem %s1737, 288 [#allocation2]
    %v2077 = vld [vmem:[%s2076] ss:$2 sm:$0xff]
    %s2078 = scalar_lea.vmem %s1737, 336 [#allocation2]
    %v2079 = vld [vmem:[%s2078] ss:$2 sm:$0xff]
    %s2080 = scalar_lea.vmem %s1737, 384 [#allocation2]
    %v2081 = vld [vmem:[%s2080] ss:$2 sm:$0xff]
    %v2082 = vpack.c.bf16 %v2069, %v2067
    %v2083 = vpack.c.bf16 %v2073, %v2071
    %v2084 = vpack.c.bf16 %v2077, %v2075
    %v2085 = vpack.c.bf16 %v2081, %v2079
    %s2086 = scalar_lea.vmem %s3, 12
    %v2087 = vld [vmem:[%s2086] sm:$0xf]
    %v2089 = vsel %vm114, %v2082, 0
    %v2092 = vsel %vm114, %v2083, 0
    %v2095 = vsel %vm114, %v2084, 0
    %v2098 = vsel %vm114, %v2085, 0
    %v2101 = vsel %vm139, %v2087, 0
    %2103 = vmatprep.subr.bf16.mxu0 0
    %2104 = vmatpush1.bf16.msra.mxu0 0
    %2105 = vmatprep.subr.bf16.mxu0 0
    %2106 = vmatpush1.bf16.msra.mxu0 0
    %2107 = vmatprep.subr.bf16.mxu0 0
    %2108 = vmatpush1.bf16.msra.mxu0 0
    %2109 = vmatprep.subr.bf16.mxu0 0
    %2110 = vmatpush1.bf16.msra.mxu0 0
    %2111 = vmatprep.subr.bf16.mxu0 0
    %2112 = vmatpush1.bf16.msra.mxu0 0
    %2113 = vmatprep.subr.bf16.mxu0 0
    %2114 = vmatpush1.bf16.msra.mxu0 0
    %2115 = vmatprep.subr.bf16.mxu0 0
    %2116 = vmatpush1.bf16.msra.mxu0 0
    %2117 = vmatprep.subr.bf16.mxu0 0
    %2118 = vmatpush1.bf16.msra.mxu0 %v2101
    %2119 = vmatprep.subr.bf16.mxu0 0
    %2120 = vmatpush2.bf16.msra.mxu0 0
    %2121 = vmatprep.subr.bf16.mxu0 0
    %2122 = vmatpush2.bf16.msra.mxu0 0
    %2123 = vmatprep.subr.bf16.mxu0 0
    %2124 = vmatpush2.bf16.msra.mxu0 0
    %2125 = vmatprep.subr.bf16.mxu0 0
    %2126 = vmatpush2.bf16.msra.mxu0 0
    %2127 = vmatprep.subr.bf16.mxu0 0
    %2128 = vmatpush2.bf16.msra.mxu0 0
    %2129 = vmatprep.subr.bf16.mxu0 0
    %2130 = vmatpush2.bf16.msra.mxu0 0
    %2131 = vmatprep.subr.bf16.mxu0 0
    %2132 = vmatpush2.bf16.msra.mxu0 0
    %2133 = vmatprep.subr.bf16.mxu0 0
    %2134 = vmatpush2.bf16.msra.mxu0 0
    %2135 = vmatprep.mubr.bf16.mxu0 0
    %2136 = vmatmul.mubr.bf16.gmra.mxu0 %v2089
    %v2137 = vpop.f32.mrf.mxu0
    %v2138 = vadd.f32 0.0, %v2137
    %v2139 = vpop.f32.mrf.mxu0
    %v2140 = vpop.f32.mrf.mxu0
    %v2141 = vadd.f32 0.0, %v2140
    %v2142 = vpop.f32.mrf.mxu0
    %2143 = vmatprep.mubr.bf16.mxu0 0
    %2144 = vmatmul.mubr.bf16.gmra.mxu0 %v2092
    %v2145 = vpop.f32.mrf.mxu0
    %v2146 = vadd.f32 0.0, %v2145
    %v2147 = vpop.f32.mrf.mxu0
    %v2148 = vpop.f32.mrf.mxu0
    %v2149 = vadd.f32 0.0, %v2148
    %v2150 = vpop.f32.mrf.mxu0
    %2151 = vmatprep.mubr.bf16.mxu0 0
    %2152 = vmatmul.mubr.bf16.gmra.mxu0 %v2095
    %v2153 = vpop.f32.mrf.mxu0
    %v2154 = vadd.f32 0.0, %v2153
    %v2155 = vpop.f32.mrf.mxu0
    %v2156 = vpop.f32.mrf.mxu0
    %v2157 = vadd.f32 0.0, %v2156
    %v2158 = vpop.f32.mrf.mxu0
    %2159 = vmatprep.mubr.bf16.mxu0 0
    %2160 = vmatmul.mubr.bf16.gmra.mxu0 %v2098
    %v2161 = vpop.f32.mrf.mxu0
    %v2162 = vadd.f32 0.0, %v2161
    %v2163 = vpop.f32.mrf.mxu0
    %v2164 = vpop.f32.mrf.mxu0
    %v2165 = vadd.f32 0.0, %v2164
    %v2166 = vpop.f32.mrf.mxu0
    %2167 = vdwg.mxu0
    %v2168 = vadd.f32 %v2059, %v2138
    %v2169 = vadd.f32 %v2060, %v2141
    %v2170 = vadd.f32 %v2061, %v2146
    %v2171 = vadd.f32 %v2062, %v2149
    %v2172 = vadd.f32 %v2063, %v2154
    %v2173 = vadd.f32 %v2064, %v2157
    %v2174 = vadd.f32 %v2065, %v2162
    %v2175 = vadd.f32 %v2066, %v2165
    %s2176 = scalar_lea.vmem %s1737, 1 [#allocation2]
    %v2177 = vld [vmem:[%s2176] ss:$2 sm:$0xff]
    %s2178 = scalar_lea.vmem %s1737, 49 [#allocation2]
    %v2179 = vld [vmem:[%s2178] ss:$2 sm:$0xff]
    %s2180 = scalar_lea.vmem %s1737, 97 [#allocation2]
    %v2181 = vld [vmem:[%s2180] ss:$2 sm:$0xff]
    %s2182 = scalar_lea.vmem %s1737, 145 [#allocation2]
    %v2183 = vld [vmem:[%s2182] ss:$2 sm:$0xff]
    %s2184 = scalar_lea.vmem %s1737, 241 [#allocation2]
    %v2185 = vld [vmem:[%s2184] ss:$2 sm:$0xff]
    %s2186 = scalar_lea.vmem %s1737, 289 [#allocation2]
    %v2187 = vld [vmem:[%s2186] ss:$2 sm:$0xff]
    %s2188 = scalar_lea.vmem %s1737, 337 [#allocation2]
    %v2189 = vld [vmem:[%s2188] ss:$2 sm:$0xff]
    %s2190 = scalar_lea.vmem %s1737, 385 [#allocation2]
    %v2191 = vld [vmem:[%s2190] ss:$2 sm:$0xff]
    %v2192 = vpack.c.bf16 %v2179, %v2177
    %v2193 = vpack.c.bf16 %v2183, %v2181
    %v2194 = vpack.c.bf16 %v2187, %v2185
    %v2195 = vpack.c.bf16 %v2191, %v2189
    %s2196 = scalar_lea.vmem %s3, 16
    %v2197 = vld [vmem:[%s2196] sm:$0xf]
    %v2199 = vsel %vm114, %v2192, 0
    %v2202 = vsel %vm114, %v2193, 0
    %v2205 = vsel %vm114, %v2194, 0
    %v2208 = vsel %vm114, %v2195, 0
    %v2211 = vsel %vm139, %v2197, 0
    %2213 = vmatprep.subr.bf16.mxu0 0
    %2214 = vmatpush1.bf16.msra.mxu0 0
    %2215 = vmatprep.subr.bf16.mxu0 0
    %2216 = vmatpush1.bf16.msra.mxu0 0
    %2217 = vmatprep.subr.bf16.mxu0 0
    %2218 = vmatpush1.bf16.msra.mxu0 0
    %2219 = vmatprep.subr.bf16.mxu0 0
    %2220 = vmatpush1.bf16.msra.mxu0 0
    %2221 = vmatprep.subr.bf16.mxu0 0
    %2222 = vmatpush1.bf16.msra.mxu0 0
    %2223 = vmatprep.subr.bf16.mxu0 0
    %2224 = vmatpush1.bf16.msra.mxu0 0
    %2225 = vmatprep.subr.bf16.mxu0 0
    %2226 = vmatpush1.bf16.msra.mxu0 0
    %2227 = vmatprep.subr.bf16.mxu0 0
    %2228 = vmatpush1.bf16.msra.mxu0 %v2211
    %2229 = vmatprep.subr.bf16.mxu0 0
    %2230 = vmatpush2.bf16.msra.mxu0 0
    %2231 = vmatprep.subr.bf16.mxu0 0
    %2232 = vmatpush2.bf16.msra.mxu0 0
    %2233 = vmatprep.subr.bf16.mxu0 0
    %2234 = vmatpush2.bf16.msra.mxu0 0
    %2235 = vmatprep.subr.bf16.mxu0 0
    %2236 = vmatpush2.bf16.msra.mxu0 0
    %2237 = vmatprep.subr.bf16.mxu0 0
    %2238 = vmatpush2.bf16.msra.mxu0 0
    %2239 = vmatprep.subr.bf16.mxu0 0
    %2240 = vmatpush2.bf16.msra.mxu0 0
    %2241 = vmatprep.subr.bf16.mxu0 0
    %2242 = vmatpush2.bf16.msra.mxu0 0
    %2243 = vmatprep.subr.bf16.mxu0 0
    %2244 = vmatpush2.bf16.msra.mxu0 0
    %2245 = vmatprep.mubr.bf16.mxu0 0
    %2246 = vmatmul.mubr.bf16.gmra.mxu0 %v2199
    %v2247 = vpop.f32.mrf.mxu0
    %v2248 = vadd.f32 0.0, %v2247
    %v2249 = vpop.f32.mrf.mxu0
    %v2250 = vpop.f32.mrf.mxu0
    %v2251 = vadd.f32 0.0, %v2250
    %v2252 = vpop.f32.mrf.mxu0
    %2253 = vmatprep.mubr.bf16.mxu0 0
    %2254 = vmatmul.mubr.bf16.gmra.mxu0 %v2202
    %v2255 = vpop.f32.mrf.mxu0
    %v2256 = vadd.f32 0.0, %v2255
    %v2257 = vpop.f32.mrf.mxu0
    %v2258 = vpop.f32.mrf.mxu0
    %v2259 = vadd.f32 0.0, %v2258
    %v2260 = vpop.f32.mrf.mxu0
    %2261 = vmatprep.mubr.bf16.mxu0 0
    %2262 = vmatmul.mubr.bf16.gmra.mxu0 %v2205
    %v2263 = vpop.f32.mrf.mxu0
    %v2264 = vadd.f32 0.0, %v2263
    %v2265 = vpop.f32.mrf.mxu0
    %v2266 = vpop.f32.mrf.mxu0
    %v2267 = vadd.f32 0.0, %v2266
    %v2268 = vpop.f32.mrf.mxu0
    %2269 = vmatprep.mubr.bf16.mxu0 0
    %2270 = vmatmul.mubr.bf16.gmra.mxu0 %v2208
    %v2271 = vpop.f32.mrf.mxu0
    %v2272 = vadd.f32 0.0, %v2271
    %v2273 = vpop.f32.mrf.mxu0
    %v2274 = vpop.f32.mrf.mxu0
    %v2275 = vadd.f32 0.0, %v2274
    %v2276 = vpop.f32.mrf.mxu0
    %2277 = vdwg.mxu0
    %v2278 = vadd.f32 %v2168, %v2248
    %v2279 = vadd.f32 %v2169, %v2251
    %v2280 = vadd.f32 %v2170, %v2256
    %v2281 = vadd.f32 %v2171, %v2259
    %v2282 = vadd.f32 %v2172, %v2264
    %v2283 = vadd.f32 %v2173, %v2267
    %v2284 = vadd.f32 %v2174, %v2272
    %v2285 = vadd.f32 %v2175, %v2275
    %s2286 = scalar_lea.vmem %s1737, 2 [#allocation2]
    %v2287 = vld [vmem:[%s2286] ss:$2 sm:$0xff]
    %s2288 = scalar_lea.vmem %s1737, 50 [#allocation2]
    %v2289 = vld [vmem:[%s2288] ss:$2 sm:$0xff]
    %s2290 = scalar_lea.vmem %s1737, 98 [#allocation2]
    %v2291 = vld [vmem:[%s2290] ss:$2 sm:$0xff]
    %s2292 = scalar_lea.vmem %s1737, 146 [#allocation2]
    %v2293 = vld [vmem:[%s2292] ss:$2 sm:$0xff]
    %s2294 = scalar_lea.vmem %s1737, 242 [#allocation2]
    %v2295 = vld [vmem:[%s2294] ss:$2 sm:$0xff]
    %s2296 = scalar_lea.vmem %s1737, 290 [#allocation2]
    %v2297 = vld [vmem:[%s2296] ss:$2 sm:$0xff]
    %s2298 = scalar_lea.vmem %s1737, 338 [#allocation2]
    %v2299 = vld [vmem:[%s2298] ss:$2 sm:$0xff]
    %s2300 = scalar_lea.vmem %s1737, 386 [#allocation2]
    %v2301 = vld [vmem:[%s2300] ss:$2 sm:$0xff]
    %v2302 = vpack.c.bf16 %v2289, %v2287
    %v2303 = vpack.c.bf16 %v2293, %v2291
    %v2304 = vpack.c.bf16 %v2297, %v2295
    %v2305 = vpack.c.bf16 %v2301, %v2299
    %s2306 = scalar_lea.vmem %s3, 20
    %v2307 = vld [vmem:[%s2306] sm:$0xf]
    %v2309 = vsel %vm114, %v2302, 0
    %v2312 = vsel %vm114, %v2303, 0
    %v2315 = vsel %vm114, %v2304, 0
    %v2318 = vsel %vm114, %v2305, 0
    %v2321 = vsel %vm139, %v2307, 0
    %2323 = vmatprep.subr.bf16.mxu0 0
    %2324 = vmatpush1.bf16.msra.mxu0 0
    %2325 = vmatprep.subr.bf16.mxu0 0
    %2326 = vmatpush1.bf16.msra.mxu0 0
    %2327 = vmatprep.subr.bf16.mxu0 0
    %2328 = vmatpush1.bf16.msra.mxu0 0
    %2329 = vmatprep.subr.bf16.mxu0 0
    %2330 = vmatpush1.bf16.msra.mxu0 0
    %2331 = vmatprep.subr.bf16.mxu0 0
    %2332 = vmatpush1.bf16.msra.mxu0 0
    %2333 = vmatprep.subr.bf16.mxu0 0
    %2334 = vmatpush1.bf16.msra.mxu0 0
    %2335 = vmatprep.subr.bf16.mxu0 0
    %2336 = vmatpush1.bf16.msra.mxu0 0
    %2337 = vmatprep.subr.bf16.mxu0 0
    %2338 = vmatpush1.bf16.msra.mxu0 %v2321
    %2339 = vmatprep.subr.bf16.mxu0 0
    %2340 = vmatpush2.bf16.msra.mxu0 0
    %2341 = vmatprep.subr.bf16.mxu0 0
    %2342 = vmatpush2.bf16.msra.mxu0 0
    %2343 = vmatprep.subr.bf16.mxu0 0
    %2344 = vmatpush2.bf16.msra.mxu0 0
    %2345 = vmatprep.subr.bf16.mxu0 0
    %2346 = vmatpush2.bf16.msra.mxu0 0
    %2347 = vmatprep.subr.bf16.mxu0 0
    %2348 = vmatpush2.bf16.msra.mxu0 0
    %2349 = vmatprep.subr.bf16.mxu0 0
    %2350 = vmatpush2.bf16.msra.mxu0 0
    %2351 = vmatprep.subr.bf16.mxu0 0
    %2352 = vmatpush2.bf16.msra.mxu0 0
    %2353 = vmatprep.subr.bf16.mxu0 0
    %2354 = vmatpush2.bf16.msra.mxu0 0
    %2355 = vmatprep.mubr.bf16.mxu0 0
    %2356 = vmatmul.mubr.bf16.gmra.mxu0 %v2309
    %v2357 = vpop.f32.mrf.mxu0
    %v2358 = vadd.f32 0.0, %v2357
    %v2359 = vpop.f32.mrf.mxu0
    %v2360 = vpop.f32.mrf.mxu0
    %v2361 = vadd.f32 0.0, %v2360
    %v2362 = vpop.f32.mrf.mxu0
    %2363 = vmatprep.mubr.bf16.mxu0 0
    %2364 = vmatmul.mubr.bf16.gmra.mxu0 %v2312
    %v2365 = vpop.f32.mrf.mxu0
    %v2366 = vadd.f32 0.0, %v2365
    %v2367 = vpop.f32.mrf.mxu0
    %v2368 = vpop.f32.mrf.mxu0
    %v2369 = vadd.f32 0.0, %v2368
    %v2370 = vpop.f32.mrf.mxu0
    %2371 = vmatprep.mubr.bf16.mxu0 0
    %2372 = vmatmul.mubr.bf16.gmra.mxu0 %v2315
    %v2373 = vpop.f32.mrf.mxu0
    %v2374 = vadd.f32 0.0, %v2373
    %v2375 = vpop.f32.mrf.mxu0
    %v2376 = vpop.f32.mrf.mxu0
    %v2377 = vadd.f32 0.0, %v2376
    %v2378 = vpop.f32.mrf.mxu0
    %2379 = vmatprep.mubr.bf16.mxu0 0
    %2380 = vmatmul.mubr.bf16.gmra.mxu0 %v2318
    %v2381 = vpop.f32.mrf.mxu0
    %v2382 = vadd.f32 0.0, %v2381
    %v2383 = vpop.f32.mrf.mxu0
    %v2384 = vpop.f32.mrf.mxu0
    %v2385 = vadd.f32 0.0, %v2384
    %v2386 = vpop.f32.mrf.mxu0
    %2387 = vdwg.mxu0
    %v2388 = vadd.f32 %v2278, %v2358
    %v2389 = vadd.f32 %v2279, %v2361
    %v2390 = vadd.f32 %v2280, %v2366
    %v2391 = vadd.f32 %v2281, %v2369
    %v2392 = vadd.f32 %v2282, %v2374
    %v2393 = vadd.f32 %v2283, %v2377
    %v2394 = vadd.f32 %v2284, %v2382
    %v2395 = vadd.f32 %v2285, %v2385
    %s2396 = scalar_lea.vmem [#allocation2], 48
    %v2397 = vld [vmem:[%s2396] ss:$2 sm:$0xff]
    %s2398 = scalar_lea.vmem %s2396, 48 [#allocation2]
    %v2399 = vld [vmem:[%s2398] ss:$2 sm:$0xff]
    %s2400 = scalar_lea.vmem %s2396, 96 [#allocation2]
    %v2401 = vld [vmem:[%s2400] ss:$2 sm:$0xff]
    %s2402 = scalar_lea.vmem %s2396, 144 [#allocation2]
    %v2403 = vld [vmem:[%s2402] ss:$2 sm:$0xff]
    %s2404 = scalar_lea.vmem %s2396, 240 [#allocation2]
    %v2405 = vld [vmem:[%s2404] ss:$2 sm:$0xff]
    %s2406 = scalar_lea.vmem %s2396, 288 [#allocation2]
    %v2407 = vld [vmem:[%s2406] ss:$2 sm:$0xff]
    %s2408 = scalar_lea.vmem %s2396, 336 [#allocation2]
    %v2409 = vld [vmem:[%s2408] ss:$2 sm:$0xff]
    %s2410 = scalar_lea.vmem %s2396, 384 [#allocation2]
    %v2411 = vld [vmem:[%s2410] ss:$2 sm:$0xff]
    %v2412 = vpack.c.bf16 %v2399, %v2397
    %v2413 = vpack.c.bf16 %v2403, %v2401
    %v2414 = vpack.c.bf16 %v2407, %v2405
    %v2415 = vpack.c.bf16 %v2411, %v2409
    %s2416 = scalar_lea.vmem %s3, 24
    %v2417 = vld [vmem:[%s2416] sm:$0xf]
    %v2419 = vsel %vm114, %v2412, 0
    %v2422 = vsel %vm114, %v2413, 0
    %v2425 = vsel %vm114, %v2414, 0
    %v2428 = vsel %vm114, %v2415, 0
    %v2431 = vsel %vm139, %v2417, 0
    %2433 = vmatprep.subr.bf16.mxu0 0
    %2434 = vmatpush1.bf16.msra.mxu0 0
    %2435 = vmatprep.subr.bf16.mxu0 0
    %2436 = vmatpush1.bf16.msra.mxu0 0
    %2437 = vmatprep.subr.bf16.mxu0 0
    %2438 = vmatpush1.bf16.msra.mxu0 0
    %2439 = vmatprep.subr.bf16.mxu0 0
    %2440 = vmatpush1.bf16.msra.mxu0 0
    %2441 = vmatprep.subr.bf16.mxu0 0
    %2442 = vmatpush1.bf16.msra.mxu0 0
    %2443 = vmatprep.subr.bf16.mxu0 0
    %2444 = vmatpush1.bf16.msra.mxu0 0
    %2445 = vmatprep.subr.bf16.mxu0 0
    %2446 = vmatpush1.bf16.msra.mxu0 0
    %2447 = vmatprep.subr.bf16.mxu0 0
    %2448 = vmatpush1.bf16.msra.mxu0 %v2431
    %2449 = vmatprep.subr.bf16.mxu0 0
    %2450 = vmatpush2.bf16.msra.mxu0 0
    %2451 = vmatprep.subr.bf16.mxu0 0
    %2452 = vmatpush2.bf16.msra.mxu0 0
    %2453 = vmatprep.subr.bf16.mxu0 0
    %2454 = vmatpush2.bf16.msra.mxu0 0
    %2455 = vmatprep.subr.bf16.mxu0 0
    %2456 = vmatpush2.bf16.msra.mxu0 0
    %2457 = vmatprep.subr.bf16.mxu0 0
    %2458 = vmatpush2.bf16.msra.mxu0 0
    %2459 = vmatprep.subr.bf16.mxu0 0
    %2460 = vmatpush2.bf16.msra.mxu0 0
    %2461 = vmatprep.subr.bf16.mxu0 0
    %2462 = vmatpush2.bf16.msra.mxu0 0
    %2463 = vmatprep.subr.bf16.mxu0 0
    %2464 = vmatpush2.bf16.msra.mxu0 0
    %2465 = vmatprep.mubr.bf16.mxu0 0
    %2466 = vmatmul.mubr.bf16.gmra.mxu0 %v2419
    %v2467 = vpop.f32.mrf.mxu0
    %v2468 = vadd.f32 0.0, %v2467
    %v2469 = vpop.f32.mrf.mxu0
    %v2470 = vpop.f32.mrf.mxu0
    %v2471 = vadd.f32 0.0, %v2470
    %v2472 = vpop.f32.mrf.mxu0
    %2473 = vmatprep.mubr.bf16.mxu0 0
    %2474 = vmatmul.mubr.bf16.gmra.mxu0 %v2422
    %v2475 = vpop.f32.mrf.mxu0
    %v2476 = vadd.f32 0.0, %v2475
    %v2477 = vpop.f32.mrf.mxu0
    %v2478 = vpop.f32.mrf.mxu0
    %v2479 = vadd.f32 0.0, %v2478
    %v2480 = vpop.f32.mrf.mxu0
    %2481 = vmatprep.mubr.bf16.mxu0 0
    %2482 = vmatmul.mubr.bf16.gmra.mxu0 %v2425
    %v2483 = vpop.f32.mrf.mxu0
    %v2484 = vadd.f32 0.0, %v2483
    %v2485 = vpop.f32.mrf.mxu0
    %v2486 = vpop.f32.mrf.mxu0
    %v2487 = vadd.f32 0.0, %v2486
    %v2488 = vpop.f32.mrf.mxu0
    %2489 = vmatprep.mubr.bf16.mxu0 0
    %2490 = vmatmul.mubr.bf16.gmra.mxu0 %v2428
    %v2491 = vpop.f32.mrf.mxu0
    %v2492 = vadd.f32 0.0, %v2491
    %v2493 = vpop.f32.mrf.mxu0
    %v2494 = vpop.f32.mrf.mxu0
    %v2495 = vadd.f32 0.0, %v2494
    %v2496 = vpop.f32.mrf.mxu0
    %2497 = vdwg.mxu0
    %v2498 = vadd.f32 %v2388, %v2468
    %v2499 = vadd.f32 %v2389, %v2471
    %v2500 = vadd.f32 %v2390, %v2476
    %v2501 = vadd.f32 %v2391, %v2479
    %v2502 = vadd.f32 %v2392, %v2484
    %v2503 = vadd.f32 %v2393, %v2487
    %v2504 = vadd.f32 %v2394, %v2492
    %v2505 = vadd.f32 %v2395, %v2495
    %s2506 = scalar_lea.vmem %s2396, 1 [#allocation2]
    %v2507 = vld [vmem:[%s2506] ss:$2 sm:$0xff]
    %s2508 = scalar_lea.vmem %s2396, 49 [#allocation2]
    %v2509 = vld [vmem:[%s2508] ss:$2 sm:$0xff]
    %s2510 = scalar_lea.vmem %s2396, 97 [#allocation2]
    %v2511 = vld [vmem:[%s2510] ss:$2 sm:$0xff]
    %s2512 = scalar_lea.vmem %s2396, 145 [#allocation2]
    %v2513 = vld [vmem:[%s2512] ss:$2 sm:$0xff]
    %s2514 = scalar_lea.vmem %s2396, 241 [#allocation2]
    %v2515 = vld [vmem:[%s2514] ss:$2 sm:$0xff]
    %s2516 = scalar_lea.vmem %s2396, 289 [#allocation2]
    %v2517 = vld [vmem:[%s2516] ss:$2 sm:$0xff]
    %s2518 = scalar_lea.vmem %s2396, 337 [#allocation2]
    %v2519 = vld [vmem:[%s2518] ss:$2 sm:$0xff]
    %s2520 = scalar_lea.vmem %s2396, 385 [#allocation2]
    %v2521 = vld [vmem:[%s2520] ss:$2 sm:$0xff]
    %v2522 = vpack.c.bf16 %v2509, %v2507
    %v2523 = vpack.c.bf16 %v2513, %v2511
    %v2524 = vpack.c.bf16 %v2517, %v2515
    %v2525 = vpack.c.bf16 %v2521, %v2519
    %s2526 = scalar_lea.vmem %s3, 28
    %v2527 = vld [vmem:[%s2526] sm:$0xf]
    %v2529 = vsel %vm114, %v2522, 0
    %v2532 = vsel %vm114, %v2523, 0
    %v2535 = vsel %vm114, %v2524, 0
    %v2538 = vsel %vm114, %v2525, 0
    %v2541 = vsel %vm139, %v2527, 0
    %2543 = vmatprep.subr.bf16.mxu0 0
    %2544 = vmatpush1.bf16.msra.mxu0 0
    %2545 = vmatprep.subr.bf16.mxu0 0
    %2546 = vmatpush1.bf16.msra.mxu0 0
    %2547 = vmatprep.subr.bf16.mxu0 0
    %2548 = vmatpush1.bf16.msra.mxu0 0
    %2549 = vmatprep.subr.bf16.mxu0 0
    %2550 = vmatpush1.bf16.msra.mxu0 0
    %2551 = vmatprep.subr.bf16.mxu0 0
    %2552 = vmatpush1.bf16.msra.mxu0 0
    %2553 = vmatprep.subr.bf16.mxu0 0
    %2554 = vmatpush1.bf16.msra.mxu0 0
    %2555 = vmatprep.subr.bf16.mxu0 0
    %2556 = vmatpush1.bf16.msra.mxu0 0
    %2557 = vmatprep.subr.bf16.mxu0 0
    %2558 = vmatpush1.bf16.msra.mxu0 %v2541
    %2559 = vmatprep.subr.bf16.mxu0 0
    %2560 = vmatpush2.bf16.msra.mxu0 0
    %2561 = vmatprep.subr.bf16.mxu0 0
    %2562 = vmatpush2.bf16.msra.mxu0 0
    %2563 = vmatprep.subr.bf16.mxu0 0
    %2564 = vmatpush2.bf16.msra.mxu0 0
    %2565 = vmatprep.subr.bf16.mxu0 0
    %2566 = vmatpush2.bf16.msra.mxu0 0
    %2567 = vmatprep.subr.bf16.mxu0 0
    %2568 = vmatpush2.bf16.msra.mxu0 0
    %2569 = vmatprep.subr.bf16.mxu0 0
    %2570 = vmatpush2.bf16.msra.mxu0 0
    %2571 = vmatprep.subr.bf16.mxu0 0
    %2572 = vmatpush2.bf16.msra.mxu0 0
    %2573 = vmatprep.subr.bf16.mxu0 0
    %2574 = vmatpush2.bf16.msra.mxu0 0
    %2575 = vmatprep.mubr.bf16.mxu0 0
    %2576 = vmatmul.mubr.bf16.gmra.mxu0 %v2529
    %v2577 = vpop.f32.mrf.mxu0
    %v2578 = vadd.f32 0.0, %v2577
    %v2579 = vpop.f32.mrf.mxu0
    %v2580 = vpop.f32.mrf.mxu0
    %v2581 = vadd.f32 0.0, %v2580
    %v2582 = vpop.f32.mrf.mxu0
    %2583 = vmatprep.mubr.bf16.mxu0 0
    %2584 = vmatmul.mubr.bf16.gmra.mxu0 %v2532
    %v2585 = vpop.f32.mrf.mxu0
    %v2586 = vadd.f32 0.0, %v2585
    %v2587 = vpop.f32.mrf.mxu0
    %v2588 = vpop.f32.mrf.mxu0
    %v2589 = vadd.f32 0.0, %v2588
    %v2590 = vpop.f32.mrf.mxu0
    %2591 = vmatprep.mubr.bf16.mxu0 0
    %2592 = vmatmul.mubr.bf16.gmra.mxu0 %v2535
    %v2593 = vpop.f32.mrf.mxu0
    %v2594 = vadd.f32 0.0, %v2593
    %v2595 = vpop.f32.mrf.mxu0
    %v2596 = vpop.f32.mrf.mxu0
    %v2597 = vadd.f32 0.0, %v2596
    %v2598 = vpop.f32.mrf.mxu0
    %2599 = vmatprep.mubr.bf16.mxu0 0
    %2600 = vmatmul.mubr.bf16.gmra.mxu0 %v2538
    %v2601 = vpop.f32.mrf.mxu0
    %v2602 = vadd.f32 0.0, %v2601
    %v2603 = vpop.f32.mrf.mxu0
    %v2604 = vpop.f32.mrf.mxu0
    %v2605 = vadd.f32 0.0, %v2604
    %v2606 = vpop.f32.mrf.mxu0
    %2607 = vdwg.mxu0
    %v2608 = vadd.f32 %v2498, %v2578
    %v2609 = vadd.f32 %v2499, %v2581
    %v2610 = vadd.f32 %v2500, %v2586
    %v2611 = vadd.f32 %v2501, %v2589
    %v2612 = vadd.f32 %v2502, %v2594
    %v2613 = vadd.f32 %v2503, %v2597
    %v2614 = vadd.f32 %v2504, %v2602
    %v2615 = vadd.f32 %v2505, %v2605
    %s2616 = scalar_lea.vmem %s2396, 2 [#allocation2]
    %v2617 = vld [vmem:[%s2616] ss:$2 sm:$0xff]
    %s2618 = scalar_lea.vmem %s2396, 50 [#allocation2]
    %v2619 = vld [vmem:[%s2618] ss:$2 sm:$0xff]
    %s2620 = scalar_lea.vmem %s2396, 98 [#allocation2]
    %v2621 = vld [vmem:[%s2620] ss:$2 sm:$0xff]
    %s2622 = scalar_lea.vmem %s2396, 146 [#allocation2]
    %v2623 = vld [vmem:[%s2622] ss:$2 sm:$0xff]
    %s2624 = scalar_lea.vmem %s2396, 242 [#allocation2]
    %v2625 = vld [vmem:[%s2624] ss:$2 sm:$0xff]
    %s2626 = scalar_lea.vmem %s2396, 290 [#allocation2]
    %v2627 = vld [vmem:[%s2626] ss:$2 sm:$0xff]
    %s2628 = scalar_lea.vmem %s2396, 338 [#allocation2]
    %v2629 = vld [vmem:[%s2628] ss:$2 sm:$0xff]
    %s2630 = scalar_lea.vmem %s2396, 386 [#allocation2]
    %v2631 = vld [vmem:[%s2630] ss:$2 sm:$0xff]
    %v2632 = vpack.c.bf16 %v2619, %v2617
    %v2633 = vpack.c.bf16 %v2623, %v2621
    %v2634 = vpack.c.bf16 %v2627, %v2625
    %v2635 = vpack.c.bf16 %v2631, %v2629
    %s2636 = scalar_lea.vmem %s3, 32
    %v2637 = vld [vmem:[%s2636] sm:$0xf]
    %v2639 = vsel %vm114, %v2632, 0
    %v2642 = vsel %vm114, %v2633, 0
    %v2645 = vsel %vm114, %v2634, 0
    %v2648 = vsel %vm114, %v2635, 0
    %v2651 = vsel %vm139, %v2637, 0
    %2653 = vmatprep.subr.bf16.mxu0 0
    %2654 = vmatpush1.bf16.msra.mxu0 0
    %2655 = vmatprep.subr.bf16.mxu0 0
    %2656 = vmatpush1.bf16.msra.mxu0 0
    %2657 = vmatprep.subr.bf16.mxu0 0
    %2658 = vmatpush1.bf16.msra.mxu0 0
    %2659 = vmatprep.subr.bf16.mxu0 0
    %2660 = vmatpush1.bf16.msra.mxu0 0
    %2661 = vmatprep.subr.bf16.mxu0 0
    %2662 = vmatpush1.bf16.msra.mxu0 0
    %2663 = vmatprep.subr.bf16.mxu0 0
    %2664 = vmatpush1.bf16.msra.mxu0 0
    %2665 = vmatprep.subr.bf16.mxu0 0
    %2666 = vmatpush1.bf16.msra.mxu0 0
    %2667 = vmatprep.subr.bf16.mxu0 0
    %2668 = vmatpush1.bf16.msra.mxu0 %v2651
    %2669 = vmatprep.subr.bf16.mxu0 0
    %2670 = vmatpush2.bf16.msra.mxu0 0
    %2671 = vmatprep.subr.bf16.mxu0 0
    %2672 = vmatpush2.bf16.msra.mxu0 0
    %2673 = vmatprep.subr.bf16.mxu0 0
    %2674 = vmatpush2.bf16.msra.mxu0 0
    %2675 = vmatprep.subr.bf16.mxu0 0
    %2676 = vmatpush2.bf16.msra.mxu0 0
    %2677 = vmatprep.subr.bf16.mxu0 0
    %2678 = vmatpush2.bf16.msra.mxu0 0
    %2679 = vmatprep.subr.bf16.mxu0 0
    %2680 = vmatpush2.bf16.msra.mxu0 0
    %2681 = vmatprep.subr.bf16.mxu0 0
    %2682 = vmatpush2.bf16.msra.mxu0 0
    %2683 = vmatprep.subr.bf16.mxu0 0
    %2684 = vmatpush2.bf16.msra.mxu0 0
    %2685 = vmatprep.mubr.bf16.mxu0 0
    %2686 = vmatmul.mubr.bf16.gmra.mxu0 %v2639
    %v2687 = vpop.f32.mrf.mxu0
    %v2688 = vadd.f32 0.0, %v2687
    %v2689 = vpop.f32.mrf.mxu0
    %v2690 = vpop.f32.mrf.mxu0
    %v2691 = vadd.f32 0.0, %v2690
    %v2692 = vpop.f32.mrf.mxu0
    %2693 = vmatprep.mubr.bf16.mxu0 0
    %2694 = vmatmul.mubr.bf16.gmra.mxu0 %v2642
    %v2695 = vpop.f32.mrf.mxu0
    %v2696 = vadd.f32 0.0, %v2695
    %v2697 = vpop.f32.mrf.mxu0
    %v2698 = vpop.f32.mrf.mxu0
    %v2699 = vadd.f32 0.0, %v2698
    %v2700 = vpop.f32.mrf.mxu0
    %2701 = vmatprep.mubr.bf16.mxu0 0
    %2702 = vmatmul.mubr.bf16.gmra.mxu0 %v2645
    %v2703 = vpop.f32.mrf.mxu0
    %v2704 = vadd.f32 0.0, %v2703
    %v2705 = vpop.f32.mrf.mxu0
    %v2706 = vpop.f32.mrf.mxu0
    %v2707 = vadd.f32 0.0, %v2706
    %v2708 = vpop.f32.mrf.mxu0
    %2709 = vmatprep.mubr.bf16.mxu0 0
    %2710 = vmatmul.mubr.bf16.gmra.mxu0 %v2648
    %v2711 = vpop.f32.mrf.mxu0
    %v2712 = vadd.f32 0.0, %v2711
    %v2713 = vpop.f32.mrf.mxu0
    %v2714 = vpop.f32.mrf.mxu0
    %v2715 = vadd.f32 0.0, %v2714
    %v2716 = vpop.f32.mrf.mxu0
    %2717 = vdwg.mxu0
    %v2718 = vadd.f32 %v2608, %v2688
    %v2719 = vadd.f32 %v2609, %v2691
    %v2720 = vadd.f32 %v2610, %v2696
    %v2721 = vadd.f32 %v2611, %v2699
    %v2722 = vadd.f32 %v2612, %v2704
    %v2723 = vadd.f32 %v2613, %v2707
    %v2724 = vadd.f32 %v2614, %v2712
    %v2725 = vadd.f32 %v2615, %v2715
    %v2727 = vlaneseq
    %v2728 = vshrl.u32 %v2727, 7
    %v2729 = vsub.s32 0, %v2728
    %v2730 = vrot.slane %v1754, %v2729
    %v2732 = vadd.f32 %v2718, %v2730
    %v2733 = vadd.f32 %v2719, %v2730
    %v2734 = vadd.f32 %v2720, %v2730
    %v2735 = vadd.f32 %v2721, %v2730
    %v2736 = vadd.f32 %v2722, %v2730
    %v2737 = vadd.f32 %v2723, %v2730
    %v2738 = vadd.f32 %v2724, %v2730
    %v2739 = vadd.f32 %v2725, %v2730
    %v2740 = vmax.f32 %v2732, 0.0
    %v2741 = vmax.f32 %v2733, 0.0
    %v2742 = vmax.f32 %v2734, 0.0
    %v2743 = vmax.f32 %v2735, 0.0
    %v2744 = vmax.f32 %v2736, 0.0
    %v2745 = vmax.f32 %v2737, 0.0
    %v2746 = vmax.f32 %v2738, 0.0
    %v2747 = vmax.f32 %v2739, 0.0
    %v2748 = vpack.c.bf16 %v2740, %v2740
    %v2749 = vpack.c.bf16 %v2741, %v2741
    %v2750 = vpack.c.bf16 %v2742, %v2742
    %v2751 = vpack.c.bf16 %v2743, %v2743
    %v2752 = vpack.c.bf16 %v2744, %v2744
    %v2753 = vpack.c.bf16 %v2745, %v2745
    %v2754 = vpack.c.bf16 %v2746, %v2746
    %v2755 = vpack.c.bf16 %v2747, %v2747
    %v2756 = vld [vmem:[%s5] sm:$0xf]
    %v2757 = vld [vmem:[%s5 + $0x4] sm:$0xf]
    %s2758 = scalar_lea.vmem %s5, 8
    %v2759 = vld [vmem:[%s2758] sm:$0xf]
    %v2760 = vld [vmem:[%s2758 + $0x4] sm:$0xf]
    %v2763 = vunpack.c.l.b16 %v2748
    %v2764 = vunpack.c.l.b16 %v2752
    %v2765 = vrot.slane %v2763, 1
    %vm2766 = vcmask 1041409
    %v2767 = vsel %vm2766, %v2764, %v2765
    %v2768 = vpack.c.b16 %v2767, %v2767
    %v2771 = vunpack.c.l.b16 %v2759
    %v2772 = vunpack.c.l.b16 %v2760
    %v2773 = vpack.c.b16 %v2772, %v2771
    %vm2775 = vcmask 130048
    %v2777 = vsel %vm2775, %v2768, 0
    %2779 = vmatprep.subr.bf16.mxu0 0
    %2780 = vmatpush1.bf16.msra.mxu0 0
    %2781 = vmatprep.subr.bf16.mxu0 0
    %2782 = vmatpush1.bf16.msra.mxu0 0
    %2783 = vmatprep.subr.bf16.mxu0 0
    %2784 = vmatpush1.bf16.msra.mxu0 0
    %2785 = vmatprep.subr.bf16.mxu0 0
    %2786 = vmatpush1.bf16.msra.mxu0 0
    %2787 = vmatprep.subr.bf16.mxu0 0
    %2788 = vmatpush1.bf16.msra.mxu0 0
    %2789 = vmatprep.subr.bf16.mxu0 0
    %2790 = vmatpush1.bf16.msra.mxu0 0
    %2791 = vmatprep.subr.bf16.mxu0 0
    %2792 = vmatpush1.bf16.msra.mxu0 0
    %2793 = vmatprep.subr.bf16.mxu0 0
    %2794 = vmatpush1.bf16.msra.mxu0 %v2773
    %2795 = vmatprep.subr.bf16.mxu0 0
    %2796 = vmatpush2.bf16.msra.mxu0 0
    %2797 = vmatprep.subr.bf16.mxu0 0
    %2798 = vmatpush2.bf16.msra.mxu0 0
    %2799 = vmatprep.subr.bf16.mxu0 0
    %2800 = vmatpush2.bf16.msra.mxu0 0
    %2801 = vmatprep.subr.bf16.mxu0 0
    %2802 = vmatpush2.bf16.msra.mxu0 0
    %2803 = vmatprep.subr.bf16.mxu0 0
    %2804 = vmatpush2.bf16.msra.mxu0 0
    %2805 = vmatprep.subr.bf16.mxu0 0
    %2806 = vmatpush2.bf16.msra.mxu0 0
    %2807 = vmatprep.subr.bf16.mxu0 0
    %2808 = vmatpush2.bf16.msra.mxu0 0
    %2809 = vmatprep.subr.bf16.mxu0 0
    %2810 = vmatpush2.bf16.msra.mxu0 0
    %2811 = vmatprep.mubr.bf16.mxu0 0
    %2812 = vmatmul.mubr.bf16.gmra.mxu0 %v2777
    %v2813 = vpop.f32.mrf.mxu0
    %v2814 = vadd.f32 0.0, %v2813
    %v2815 = vpop.f32.mrf.mxu0
    %v2816 = vpop.f32.mrf.mxu0
    %v2817 = vpop.f32.mrf.mxu0
    %2818 = vdwg.mxu0
    %v2819 = vrot.slane %v2764, 7
    %v2820 = vsel %vm2766, %v2819, %v2763
    %v2821 = vpack.c.b16 %v2820, %v2820
    %v2824 = vunpack.c.l.b16 %v2756
    %v2825 = vunpack.c.l.b16 %v2757
    %v2826 = vpack.c.b16 %v2825, %v2824
    %v2829 = vsel %vm2775, %v2821, 0
    %2831 = vmatprep.subr.bf16.mxu0 0
    %2832 = vmatpush1.bf16.msra.mxu0 0
    %2833 = vmatprep.subr.bf16.mxu0 0
    %2834 = vmatpush1.bf16.msra.mxu0 0
    %2835 = vmatprep.subr.bf16.mxu0 0
    %2836 = vmatpush1.bf16.msra.mxu0 0
    %2837 = vmatprep.subr.bf16.mxu0 0
    %2838 = vmatpush1.bf16.msra.mxu0 0
    %2839 = vmatprep.subr.bf16.mxu0 0
    %2840 = vmatpush1.bf16.msra.mxu0 0
    %2841 = vmatprep.subr.bf16.mxu0 0
    %2842 = vmatpush1.bf16.msra.mxu0 0
    %2843 = vmatprep.subr.bf16.mxu0 0
    %2844 = vmatpush1.bf16.msra.mxu0 0
    %2845 = vmatprep.subr.bf16.mxu0 0
    %2846 = vmatpush1.bf16.msra.mxu0 %v2826
    %2847 = vmatprep.subr.bf16.mxu0 0
    %2848 = vmatpush2.bf16.msra.mxu0 0
    %2849 = vmatprep.subr.bf16.mxu0 0
    %2850 = vmatpush2.bf16.msra.mxu0 0
    %2851 = vmatprep.subr.bf16.mxu0 0
    %2852 = vmatpush2.bf16.msra.mxu0 0
    %2853 = vmatprep.subr.bf16.mxu0 0
    %2854 = vmatpush2.bf16.msra.mxu0 0
    %2855 = vmatprep.subr.bf16.mxu0 0
    %2856 = vmatpush2.bf16.msra.mxu0 0
    %2857 = vmatprep.subr.bf16.mxu0 0
    %2858 = vmatpush2.bf16.msra.mxu0 0
    %2859 = vmatprep.subr.bf16.mxu0 0
    %2860 = vmatpush2.bf16.msra.mxu0 0
    %2861 = vmatprep.subr.bf16.mxu0 0
    %2862 = vmatpush2.bf16.msra.mxu0 0
    %2863 = vmatprep.mubr.bf16.mxu0 0
    %2864 = vmatmul.mubr.bf16.gmra.mxu0 %v2829
    %v2865 = vpop.f32.mrf.mxu0
    %v2866 = vadd.f32 %v2814, %v2865
    %v2867 = vpop.f32.mrf.mxu0
    %v2868 = vpop.f32.mrf.mxu0
    %v2869 = vpop.f32.mrf.mxu0
    %2870 = vdwg.mxu0
    %s2871 = scalar_lea.vmem %s5, 16
    %v2872 = vld [vmem:[%s2871] sm:$0xf]
    %v2873 = vld [vmem:[%s2871 + $0x4] sm:$0xf]
    %v2874 = vrot.slane %v2763, 2
    %v2875 = vrot.slane %v2764, 1
    %v2876 = vsel %vm2766, %v2875, %v2874
    %v2877 = vpack.c.b16 %v2876, %v2876
    %v2880 = vunpack.c.l.b16 %v2872
    %v2881 = vunpack.c.l.b16 %v2873
    %v2882 = vpack.c.b16 %v2881, %v2880
    %v2885 = vsel %vm2775, %v2877, 0
    %2887 = vmatprep.subr.bf16.mxu0 0
    %2888 = vmatpush1.bf16.msra.mxu0 0
    %2889 = vmatprep.subr.bf16.mxu0 0
    %2890 = vmatpush1.bf16.msra.mxu0 0
    %2891 = vmatprep.subr.bf16.mxu0 0
    %2892 = vmatpush1.bf16.msra.mxu0 0
    %2893 = vmatprep.subr.bf16.mxu0 0
    %2894 = vmatpush1.bf16.msra.mxu0 0
    %2895 = vmatprep.subr.bf16.mxu0 0
    %2896 = vmatpush1.bf16.msra.mxu0 0
    %2897 = vmatprep.subr.bf16.mxu0 0
    %2898 = vmatpush1.bf16.msra.mxu0 0
    %2899 = vmatprep.subr.bf16.mxu0 0
    %2900 = vmatpush1.bf16.msra.mxu0 0
    %2901 = vmatprep.subr.bf16.mxu0 0
    %2902 = vmatpush1.bf16.msra.mxu0 %v2882
    %2903 = vmatprep.subr.bf16.mxu0 0
    %2904 = vmatpush2.bf16.msra.mxu0 0
    %2905 = vmatprep.subr.bf16.mxu0 0
    %2906 = vmatpush2.bf16.msra.mxu0 0
    %2907 = vmatprep.subr.bf16.mxu0 0
    %2908 = vmatpush2.bf16.msra.mxu0 0
    %2909 = vmatprep.subr.bf16.mxu0 0
    %2910 = vmatpush2.bf16.msra.mxu0 0
    %2911 = vmatprep.subr.bf16.mxu0 0
    %2912 = vmatpush2.bf16.msra.mxu0 0
    %2913 = vmatprep.subr.bf16.mxu0 0
    %2914 = vmatpush2.bf16.msra.mxu0 0
    %2915 = vmatprep.subr.bf16.mxu0 0
    %2916 = vmatpush2.bf16.msra.mxu0 0
    %2917 = vmatprep.subr.bf16.mxu0 0
    %2918 = vmatpush2.bf16.msra.mxu0 0
    %2919 = vmatprep.mubr.bf16.mxu0 0
    %2920 = vmatmul.mubr.bf16.gmra.mxu0 %v2885
    %v2921 = vpop.f32.mrf.mxu0
    %v2922 = vadd.f32 0.0, %v2921
    %v2923 = vpop.f32.mrf.mxu0
    %v2924 = vpop.f32.mrf.mxu0
    %v2925 = vpop.f32.mrf.mxu0
    %2926 = vdwg.mxu0
    %v2927 = vadd.f32 %v2866, %v2922
    %s2928 = scalar_lea.vmem %s5, 24
    %v2929 = vld [vmem:[%s2928] sm:$0xf]
    %v2930 = vld [vmem:[%s2928 + $0x4] sm:$0xf]
    %v2931 = vrot.slane %v2763, 3
    %v2932 = vrot.slane %v2764, 2
    %v2933 = vsel %vm2766, %v2932, %v2931
    %v2934 = vpack.c.b16 %v2933, %v2933
    %v2937 = vunpack.c.l.b16 %v2929
    %v2938 = vunpack.c.l.b16 %v2930
    %v2939 = vpack.c.b16 %v2938, %v2937
    %v2942 = vsel %vm2775, %v2934, 0
    %2944 = vmatprep.subr.bf16.mxu0 0
    %2945 = vmatpush1.bf16.msra.mxu0 0
    %2946 = vmatprep.subr.bf16.mxu0 0
    %2947 = vmatpush1.bf16.msra.mxu0 0
    %2948 = vmatprep.subr.bf16.mxu0 0
    %2949 = vmatpush1.bf16.msra.mxu0 0
    %2950 = vmatprep.subr.bf16.mxu0 0
    %2951 = vmatpush1.bf16.msra.mxu0 0
    %2952 = vmatprep.subr.bf16.mxu0 0
    %2953 = vmatpush1.bf16.msra.mxu0 0
    %2954 = vmatprep.subr.bf16.mxu0 0
    %2955 = vmatpush1.bf16.msra.mxu0 0
    %2956 = vmatprep.subr.bf16.mxu0 0
    %2957 = vmatpush1.bf16.msra.mxu0 0
    %2958 = vmatprep.subr.bf16.mxu0 0
    %2959 = vmatpush1.bf16.msra.mxu0 %v2939
    %2960 = vmatprep.subr.bf16.mxu0 0
    %2961 = vmatpush2.bf16.msra.mxu0 0
    %2962 = vmatprep.subr.bf16.mxu0 0
    %2963 = vmatpush2.bf16.msra.mxu0 0
    %2964 = vmatprep.subr.bf16.mxu0 0
    %2965 = vmatpush2.bf16.msra.mxu0 0
    %2966 = vmatprep.subr.bf16.mxu0 0
    %2967 = vmatpush2.bf16.msra.mxu0 0
    %2968 = vmatprep.subr.bf16.mxu0 0
    %2969 = vmatpush2.bf16.msra.mxu0 0
    %2970 = vmatprep.subr.bf16.mxu0 0
    %2971 = vmatpush2.bf16.msra.mxu0 0
    %2972 = vmatprep.subr.bf16.mxu0 0
    %2973 = vmatpush2.bf16.msra.mxu0 0
    %2974 = vmatprep.subr.bf16.mxu0 0
    %2975 = vmatpush2.bf16.msra.mxu0 0
    %2976 = vmatprep.mubr.bf16.mxu0 0
    %2977 = vmatmul.mubr.bf16.gmra.mxu0 %v2942
    %v2978 = vpop.f32.mrf.mxu0
    %v2979 = vadd.f32 0.0, %v2978
    %v2980 = vpop.f32.mrf.mxu0
    %v2981 = vpop.f32.mrf.mxu0
    %v2982 = vpop.f32.mrf.mxu0
    %2983 = vdwg.mxu0
    %v2984 = vadd.f32 %v2927, %v2979
    %s2985 = scalar_lea.vmem %s5, 32
    %v2986 = vld [vmem:[%s2985] sm:$0xf]
    %v2987 = vld [vmem:[%s2985 + $0x4] sm:$0xf]
    %v2990 = vunpack.c.l.b16 %v2749
    %v2991 = vunpack.c.l.b16 %v2753
    %v2992 = vrot.slane %v2991, 7
    %v2993 = vsel %vm2766, %v2992, %v2990
    %v2994 = vpack.c.b16 %v2993, %v2993
    %v2997 = vunpack.c.l.b16 %v2986
    %v2998 = vunpack.c.l.b16 %v2987
    %v2999 = vpack.c.b16 %v2998, %v2997
    %v3002 = vsel %vm2775, %v2994, 0
    %3004 = vmatprep.subr.bf16.mxu0 0
    %3005 = vmatpush1.bf16.msra.mxu0 0
    %3006 = vmatprep.subr.bf16.mxu0 0
    %3007 = vmatpush1.bf16.msra.mxu0 0
    %3008 = vmatprep.subr.bf16.mxu0 0
    %3009 = vmatpush1.bf16.msra.mxu0 0
    %3010 = vmatprep.subr.bf16.mxu0 0
    %3011 = vmatpush1.bf16.msra.mxu0 0
    %3012 = vmatprep.subr.bf16.mxu0 0
    %3013 = vmatpush1.bf16.msra.mxu0 0
    %3014 = vmatprep.subr.bf16.mxu0 0
    %3015 = vmatpush1.bf16.msra.mxu0 0
    %3016 = vmatprep.subr.bf16.mxu0 0
    %3017 = vmatpush1.bf16.msra.mxu0 0
    %3018 = vmatprep.subr.bf16.mxu0 0
    %3019 = vmatpush1.bf16.msra.mxu0 %v2999
    %3020 = vmatprep.subr.bf16.mxu0 0
    %3021 = vmatpush2.bf16.msra.mxu0 0
    %3022 = vmatprep.subr.bf16.mxu0 0
    %3023 = vmatpush2.bf16.msra.mxu0 0
    %3024 = vmatprep.subr.bf16.mxu0 0
    %3025 = vmatpush2.bf16.msra.mxu0 0
    %3026 = vmatprep.subr.bf16.mxu0 0
    %3027 = vmatpush2.bf16.msra.mxu0 0
    %3028 = vmatprep.subr.bf16.mxu0 0
    %3029 = vmatpush2.bf16.msra.mxu0 0
    %3030 = vmatprep.subr.bf16.mxu0 0
    %3031 = vmatpush2.bf16.msra.mxu0 0
    %3032 = vmatprep.subr.bf16.mxu0 0
    %3033 = vmatpush2.bf16.msra.mxu0 0
    %3034 = vmatprep.subr.bf16.mxu0 0
    %3035 = vmatpush2.bf16.msra.mxu0 0
    %3036 = vmatprep.mubr.bf16.mxu0 0
    %3037 = vmatmul.mubr.bf16.gmra.mxu0 %v3002
    %v3038 = vpop.f32.mrf.mxu0
    %v3039 = vadd.f32 0.0, %v3038
    %v3040 = vpop.f32.mrf.mxu0
    %v3041 = vpop.f32.mrf.mxu0
    %v3042 = vpop.f32.mrf.mxu0
    %3043 = vdwg.mxu0
    %v3044 = vadd.f32 %v2984, %v3039
    %s3045 = scalar_lea.vmem %s5, 40
    %v3046 = vld [vmem:[%s3045] sm:$0xf]
    %v3047 = vld [vmem:[%s3045 + $0x4] sm:$0xf]
    %v3048 = vrot.slane %v2990, 1
    %v3049 = vsel %vm2766, %v2991, %v3048
    %v3050 = vpack.c.b16 %v3049, %v3049
    %v3053 = vunpack.c.l.b16 %v3046
    %v3054 = vunpack.c.l.b16 %v3047
    %v3055 = vpack.c.b16 %v3054, %v3053
    %v3058 = vsel %vm2775, %v3050, 0
    %3060 = vmatprep.subr.bf16.mxu0 0
    %3061 = vmatpush1.bf16.msra.mxu0 0
    %3062 = vmatprep.subr.bf16.mxu0 0
    %3063 = vmatpush1.bf16.msra.mxu0 0
    %3064 = vmatprep.subr.bf16.mxu0 0
    %3065 = vmatpush1.bf16.msra.mxu0 0
    %3066 = vmatprep.subr.bf16.mxu0 0
    %3067 = vmatpush1.bf16.msra.mxu0 0
    %3068 = vmatprep.subr.bf16.mxu0 0
    %3069 = vmatpush1.bf16.msra.mxu0 0
    %3070 = vmatprep.subr.bf16.mxu0 0
    %3071 = vmatpush1.bf16.msra.mxu0 0
    %3072 = vmatprep.subr.bf16.mxu0 0
    %3073 = vmatpush1.bf16.msra.mxu0 0
    %3074 = vmatprep.subr.bf16.mxu0 0
    %3075 = vmatpush1.bf16.msra.mxu0 %v3055
    %3076 = vmatprep.subr.bf16.mxu0 0
    %3077 = vmatpush2.bf16.msra.mxu0 0
    %3078 = vmatprep.subr.bf16.mxu0 0
    %3079 = vmatpush2.bf16.msra.mxu0 0
    %3080 = vmatprep.subr.bf16.mxu0 0
    %3081 = vmatpush2.bf16.msra.mxu0 0
    %3082 = vmatprep.subr.bf16.mxu0 0
    %3083 = vmatpush2.bf16.msra.mxu0 0
    %3084 = vmatprep.subr.bf16.mxu0 0
    %3085 = vmatpush2.bf16.msra.mxu0 0
    %3086 = vmatprep.subr.bf16.mxu0 0
    %3087 = vmatpush2.bf16.msra.mxu0 0
    %3088 = vmatprep.subr.bf16.mxu0 0
    %3089 = vmatpush2.bf16.msra.mxu0 0
    %3090 = vmatprep.subr.bf16.mxu0 0
    %3091 = vmatpush2.bf16.msra.mxu0 0
    %3092 = vmatprep.mubr.bf16.mxu0 0
    %3093 = vmatmul.mubr.bf16.gmra.mxu0 %v3058
    %v3094 = vpop.f32.mrf.mxu0
    %v3095 = vadd.f32 0.0, %v3094
    %v3096 = vpop.f32.mrf.mxu0
    %v3097 = vpop.f32.mrf.mxu0
    %v3098 = vpop.f32.mrf.mxu0
    %3099 = vdwg.mxu0
    %v3100 = vadd.f32 %v3044, %v3095
    %s3101 = scalar_lea.vmem %s5, 48
    %v3102 = vld [vmem:[%s3101] sm:$0xf]
    %v3103 = vld [vmem:[%s3101 + $0x4] sm:$0xf]
    %v3104 = vrot.slane %v2990, 2
    %v3105 = vrot.slane %v2991, 1
    %v3106 = vsel %vm2766, %v3105, %v3104
    %v3107 = vpack.c.b16 %v3106, %v3106
    %v3110 = vunpack.c.l.b16 %v3102
    %v3111 = vunpack.c.l.b16 %v3103
    %v3112 = vpack.c.b16 %v3111, %v3110
    %v3115 = vsel %vm2775, %v3107, 0
    %3117 = vmatprep.subr.bf16.mxu0 0
    %3118 = vmatpush1.bf16.msra.mxu0 0
    %3119 = vmatprep.subr.bf16.mxu0 0
    %3120 = vmatpush1.bf16.msra.mxu0 0
    %3121 = vmatprep.subr.bf16.mxu0 0
    %3122 = vmatpush1.bf16.msra.mxu0 0
    %3123 = vmatprep.subr.bf16.mxu0 0
    %3124 = vmatpush1.bf16.msra.mxu0 0
    %3125 = vmatprep.subr.bf16.mxu0 0
    %3126 = vmatpush1.bf16.msra.mxu0 0
    %3127 = vmatprep.subr.bf16.mxu0 0
    %3128 = vmatpush1.bf16.msra.mxu0 0
    %3129 = vmatprep.subr.bf16.mxu0 0
    %3130 = vmatpush1.bf16.msra.mxu0 0
    %3131 = vmatprep.subr.bf16.mxu0 0
    %3132 = vmatpush1.bf16.msra.mxu0 %v3112
    %3133 = vmatprep.subr.bf16.mxu0 0
    %3134 = vmatpush2.bf16.msra.mxu0 0
    %3135 = vmatprep.subr.bf16.mxu0 0
    %3136 = vmatpush2.bf16.msra.mxu0 0
    %3137 = vmatprep.subr.bf16.mxu0 0
    %3138 = vmatpush2.bf16.msra.mxu0 0
    %3139 = vmatprep.subr.bf16.mxu0 0
    %3140 = vmatpush2.bf16.msra.mxu0 0
    %3141 = vmatprep.subr.bf16.mxu0 0
    %3142 = vmatpush2.bf16.msra.mxu0 0
    %3143 = vmatprep.subr.bf16.mxu0 0
    %3144 = vmatpush2.bf16.msra.mxu0 0
    %3145 = vmatprep.subr.bf16.mxu0 0
    %3146 = vmatpush2.bf16.msra.mxu0 0
    %3147 = vmatprep.subr.bf16.mxu0 0
    %3148 = vmatpush2.bf16.msra.mxu0 0
    %3149 = vmatprep.mubr.bf16.mxu0 0
    %3150 = vmatmul.mubr.bf16.gmra.mxu0 %v3115
    %v3151 = vpop.f32.mrf.mxu0
    %v3152 = vadd.f32 0.0, %v3151
    %v3153 = vpop.f32.mrf.mxu0
    %v3154 = vpop.f32.mrf.mxu0
    %v3155 = vpop.f32.mrf.mxu0
    %3156 = vdwg.mxu0
    %v3157 = vadd.f32 %v3100, %v3152
    %s3158 = scalar_lea.vmem %s5, 56
    %v3159 = vld [vmem:[%s3158] sm:$0xf]
    %v3160 = vld [vmem:[%s3158 + $0x4] sm:$0xf]
    %v3161 = vrot.slane %v2990, 3
    %v3162 = vrot.slane %v2991, 2
    %v3163 = vsel %vm2766, %v3162, %v3161
    %v3164 = vpack.c.b16 %v3163, %v3163
    %v3167 = vunpack.c.l.b16 %v3159
    %v3168 = vunpack.c.l.b16 %v3160
    %v3169 = vpack.c.b16 %v3168, %v3167
    %v3172 = vsel %vm2775, %v3164, 0
    %3174 = vmatprep.subr.bf16.mxu0 0
    %3175 = vmatpush1.bf16.msra.mxu0 0
    %3176 = vmatprep.subr.bf16.mxu0 0
    %3177 = vmatpush1.bf16.msra.mxu0 0
    %3178 = vmatprep.subr.bf16.mxu0 0
    %3179 = vmatpush1.bf16.msra.mxu0 0
    %3180 = vmatprep.subr.bf16.mxu0 0
    %3181 = vmatpush1.bf16.msra.mxu0 0
    %3182 = vmatprep.subr.bf16.mxu0 0
    %3183 = vmatpush1.bf16.msra.mxu0 0
    %3184 = vmatprep.subr.bf16.mxu0 0
    %3185 = vmatpush1.bf16.msra.mxu0 0
    %3186 = vmatprep.subr.bf16.mxu0 0
    %3187 = vmatpush1.bf16.msra.mxu0 0
    %3188 = vmatprep.subr.bf16.mxu0 0
    %3189 = vmatpush1.bf16.msra.mxu0 %v3169
    %3190 = vmatprep.subr.bf16.mxu0 0
    %3191 = vmatpush2.bf16.msra.mxu0 0
    %3192 = vmatprep.subr.bf16.mxu0 0
    %3193 = vmatpush2.bf16.msra.mxu0 0
    %3194 = vmatprep.subr.bf16.mxu0 0
    %3195 = vmatpush2.bf16.msra.mxu0 0
    %3196 = vmatprep.subr.bf16.mxu0 0
    %3197 = vmatpush2.bf16.msra.mxu0 0
    %3198 = vmatprep.subr.bf16.mxu0 0
    %3199 = vmatpush2.bf16.msra.mxu0 0
    %3200 = vmatprep.subr.bf16.mxu0 0
    %3201 = vmatpush2.bf16.msra.mxu0 0
    %3202 = vmatprep.subr.bf16.mxu0 0
    %3203 = vmatpush2.bf16.msra.mxu0 0
    %3204 = vmatprep.subr.bf16.mxu0 0
    %3205 = vmatpush2.bf16.msra.mxu0 0
    %3206 = vmatprep.mubr.bf16.mxu0 0
    %3207 = vmatmul.mubr.bf16.gmra.mxu0 %v3172
    %v3208 = vpop.f32.mrf.mxu0
    %v3209 = vadd.f32 0.0, %v3208
    %v3210 = vpop.f32.mrf.mxu0
    %v3211 = vpop.f32.mrf.mxu0
    %v3212 = vpop.f32.mrf.mxu0
    %3213 = vdwg.mxu0
    %v3214 = vadd.f32 %v3157, %v3209
    %s3215 = scalar_lea.vmem %s5, 64
    %v3216 = vld [vmem:[%s3215] sm:$0xf]
    %v3217 = vld [vmem:[%s3215 + $0x4] sm:$0xf]
    %v3220 = vunpack.c.l.b16 %v2750
    %v3221 = vunpack.c.l.b16 %v2754
    %v3222 = vrot.slane %v3221, 7
    %v3223 = vsel %vm2766, %v3222, %v3220
    %v3224 = vpack.c.b16 %v3223, %v3223
    %v3227 = vunpack.c.l.b16 %v3216
    %v3228 = vunpack.c.l.b16 %v3217
    %v3229 = vpack.c.b16 %v3228, %v3227
    %v3232 = vsel %vm2775, %v3224, 0
    %3234 = vmatprep.subr.bf16.mxu0 0
    %3235 = vmatpush1.bf16.msra.mxu0 0
    %3236 = vmatprep.subr.bf16.mxu0 0
    %3237 = vmatpush1.bf16.msra.mxu0 0
    %3238 = vmatprep.subr.bf16.mxu0 0
    %3239 = vmatpush1.bf16.msra.mxu0 0
    %3240 = vmatprep.subr.bf16.mxu0 0
    %3241 = vmatpush1.bf16.msra.mxu0 0
    %3242 = vmatprep.subr.bf16.mxu0 0
    %3243 = vmatpush1.bf16.msra.mxu0 0
    %3244 = vmatprep.subr.bf16.mxu0 0
    %3245 = vmatpush1.bf16.msra.mxu0 0
    %3246 = vmatprep.subr.bf16.mxu0 0
    %3247 = vmatpush1.bf16.msra.mxu0 0
    %3248 = vmatprep.subr.bf16.mxu0 0
    %3249 = vmatpush1.bf16.msra.mxu0 %v3229
    %3250 = vmatprep.subr.bf16.mxu0 0
    %3251 = vmatpush2.bf16.msra.mxu0 0
    %3252 = vmatprep.subr.bf16.mxu0 0
    %3253 = vmatpush2.bf16.msra.mxu0 0
    %3254 = vmatprep.subr.bf16.mxu0 0
    %3255 = vmatpush2.bf16.msra.mxu0 0
    %3256 = vmatprep.subr.bf16.mxu0 0
    %3257 = vmatpush2.bf16.msra.mxu0 0
    %3258 = vmatprep.subr.bf16.mxu0 0
    %3259 = vmatpush2.bf16.msra.mxu0 0
    %3260 = vmatprep.subr.bf16.mxu0 0
    %3261 = vmatpush2.bf16.msra.mxu0 0
    %3262 = vmatprep.subr.bf16.mxu0 0
    %3263 = vmatpush2.bf16.msra.mxu0 0
    %3264 = vmatprep.subr.bf16.mxu0 0
    %3265 = vmatpush2.bf16.msra.mxu0 0
    %3266 = vmatprep.mubr.bf16.mxu0 0
    %3267 = vmatmul.mubr.bf16.gmra.mxu0 %v3232
    %v3268 = vpop.f32.mrf.mxu0
    %v3269 = vadd.f32 0.0, %v3268
    %v3270 = vpop.f32.mrf.mxu0
    %v3271 = vpop.f32.mrf.mxu0
    %v3272 = vpop.f32.mrf.mxu0
    %3273 = vdwg.mxu0
    %v3274 = vadd.f32 %v3214, %v3269
    %s3275 = scalar_lea.vmem %s5, 72
    %v3276 = vld [vmem:[%s3275] sm:$0xf]
    %v3277 = vld [vmem:[%s3275 + $0x4] sm:$0xf]
    %v3278 = vrot.slane %v3220, 1
    %v3279 = vsel %vm2766, %v3221, %v3278
    %v3280 = vpack.c.b16 %v3279, %v3279
    %v3283 = vunpack.c.l.b16 %v3276
    %v3284 = vunpack.c.l.b16 %v3277
    %v3285 = vpack.c.b16 %v3284, %v3283
    %v3288 = vsel %vm2775, %v3280, 0
    %3290 = vmatprep.subr.bf16.mxu0 0
    %3291 = vmatpush1.bf16.msra.mxu0 0
    %3292 = vmatprep.subr.bf16.mxu0 0
    %3293 = vmatpush1.bf16.msra.mxu0 0
    %3294 = vmatprep.subr.bf16.mxu0 0
    %3295 = vmatpush1.bf16.msra.mxu0 0
    %3296 = vmatprep.subr.bf16.mxu0 0
    %3297 = vmatpush1.bf16.msra.mxu0 0
    %3298 = vmatprep.subr.bf16.mxu0 0
    %3299 = vmatpush1.bf16.msra.mxu0 0
    %3300 = vmatprep.subr.bf16.mxu0 0
    %3301 = vmatpush1.bf16.msra.mxu0 0
    %3302 = vmatprep.subr.bf16.mxu0 0
    %3303 = vmatpush1.bf16.msra.mxu0 0
    %3304 = vmatprep.subr.bf16.mxu0 0
    %3305 = vmatpush1.bf16.msra.mxu0 %v3285
    %3306 = vmatprep.subr.bf16.mxu0 0
    %3307 = vmatpush2.bf16.msra.mxu0 0
    %3308 = vmatprep.subr.bf16.mxu0 0
    %3309 = vmatpush2.bf16.msra.mxu0 0
    %3310 = vmatprep.subr.bf16.mxu0 0
    %3311 = vmatpush2.bf16.msra.mxu0 0
    %3312 = vmatprep.subr.bf16.mxu0 0
    %3313 = vmatpush2.bf16.msra.mxu0 0
    %3314 = vmatprep.subr.bf16.mxu0 0
    %3315 = vmatpush2.bf16.msra.mxu0 0
    %3316 = vmatprep.subr.bf16.mxu0 0
    %3317 = vmatpush2.bf16.msra.mxu0 0
    %3318 = vmatprep.subr.bf16.mxu0 0
    %3319 = vmatpush2.bf16.msra.mxu0 0
    %3320 = vmatprep.subr.bf16.mxu0 0
    %3321 = vmatpush2.bf16.msra.mxu0 0
    %3322 = vmatprep.mubr.bf16.mxu0 0
    %3323 = vmatmul.mubr.bf16.gmra.mxu0 %v3288
    %v3324 = vpop.f32.mrf.mxu0
    %v3325 = vadd.f32 0.0, %v3324
    %v3326 = vpop.f32.mrf.mxu0
    %v3327 = vpop.f32.mrf.mxu0
    %v3328 = vpop.f32.mrf.mxu0
    %3329 = vdwg.mxu0
    %v3330 = vadd.f32 %v3274, %v3325
    %s3331 = scalar_lea.vmem %s5, 80
    %v3332 = vld [vmem:[%s3331] sm:$0xf]
    %v3333 = vld [vmem:[%s3331 + $0x4] sm:$0xf]
    %v3334 = vrot.slane %v3220, 2
    %v3335 = vrot.slane %v3221, 1
    %v3336 = vsel %vm2766, %v3335, %v3334
    %v3337 = vpack.c.b16 %v3336, %v3336
    %v3340 = vunpack.c.l.b16 %v3332
    %v3341 = vunpack.c.l.b16 %v3333
    %v3342 = vpack.c.b16 %v3341, %v3340
    %v3345 = vsel %vm2775, %v3337, 0
    %3347 = vmatprep.subr.bf16.mxu0 0
    %3348 = vmatpush1.bf16.msra.mxu0 0
    %3349 = vmatprep.subr.bf16.mxu0 0
    %3350 = vmatpush1.bf16.msra.mxu0 0
    %3351 = vmatprep.subr.bf16.mxu0 0
    %3352 = vmatpush1.bf16.msra.mxu0 0
    %3353 = vmatprep.subr.bf16.mxu0 0
    %3354 = vmatpush1.bf16.msra.mxu0 0
    %3355 = vmatprep.subr.bf16.mxu0 0
    %3356 = vmatpush1.bf16.msra.mxu0 0
    %3357 = vmatprep.subr.bf16.mxu0 0
    %3358 = vmatpush1.bf16.msra.mxu0 0
    %3359 = vmatprep.subr.bf16.mxu0 0
    %3360 = vmatpush1.bf16.msra.mxu0 0
    %3361 = vmatprep.subr.bf16.mxu0 0
    %3362 = vmatpush1.bf16.msra.mxu0 %v3342
    %3363 = vmatprep.subr.bf16.mxu0 0
    %3364 = vmatpush2.bf16.msra.mxu0 0
    %3365 = vmatprep.subr.bf16.mxu0 0
    %3366 = vmatpush2.bf16.msra.mxu0 0
    %3367 = vmatprep.subr.bf16.mxu0 0
    %3368 = vmatpush2.bf16.msra.mxu0 0
    %3369 = vmatprep.subr.bf16.mxu0 0
    %3370 = vmatpush2.bf16.msra.mxu0 0
    %3371 = vmatprep.subr.bf16.mxu0 0
    %3372 = vmatpush2.bf16.msra.mxu0 0
    %3373 = vmatprep.subr.bf16.mxu0 0
    %3374 = vmatpush2.bf16.msra.mxu0 0
    %3375 = vmatprep.subr.bf16.mxu0 0
    %3376 = vmatpush2.bf16.msra.mxu0 0
    %3377 = vmatprep.subr.bf16.mxu0 0
    %3378 = vmatpush2.bf16.msra.mxu0 0
    %3379 = vmatprep.mubr.bf16.mxu0 0
    %3380 = vmatmul.mubr.bf16.gmra.mxu0 %v3345
    %v3381 = vpop.f32.mrf.mxu0
    %v3382 = vadd.f32 0.0, %v3381
    %v3383 = vpop.f32.mrf.mxu0
    %v3384 = vpop.f32.mrf.mxu0
    %v3385 = vpop.f32.mrf.mxu0
    %3386 = vdwg.mxu0
    %v3387 = vadd.f32 %v3330, %v3382
    %s3388 = scalar_lea.vmem %s5, 88
    %v3389 = vld [vmem:[%s3388] sm:$0xf]
    %v3390 = vld [vmem:[%s3388 + $0x4] sm:$0xf]
    %v3391 = vrot.slane %v3220, 3
    %v3392 = vrot.slane %v3221, 2
    %v3393 = vsel %vm2766, %v3392, %v3391
    %v3394 = vpack.c.b16 %v3393, %v3393
    %v3397 = vunpack.c.l.b16 %v3389
    %v3398 = vunpack.c.l.b16 %v3390
    %v3399 = vpack.c.b16 %v3398, %v3397
    %v3402 = vsel %vm2775, %v3394, 0
    %3404 = vmatprep.subr.bf16.mxu0 0
    %3405 = vmatpush1.bf16.msra.mxu0 0
    %3406 = vmatprep.subr.bf16.mxu0 0
    %3407 = vmatpush1.bf16.msra.mxu0 0
    %3408 = vmatprep.subr.bf16.mxu0 0
    %3409 = vmatpush1.bf16.msra.mxu0 0
    %3410 = vmatprep.subr.bf16.mxu0 0
    %3411 = vmatpush1.bf16.msra.mxu0 0
    %3412 = vmatprep.subr.bf16.mxu0 0
    %3413 = vmatpush1.bf16.msra.mxu0 0
    %3414 = vmatprep.subr.bf16.mxu0 0
    %3415 = vmatpush1.bf16.msra.mxu0 0
    %3416 = vmatprep.subr.bf16.mxu0 0
    %3417 = vmatpush1.bf16.msra.mxu0 0
    %3418 = vmatprep.subr.bf16.mxu0 0
    %3419 = vmatpush1.bf16.msra.mxu0 %v3399
    %3420 = vmatprep.subr.bf16.mxu0 0
    %3421 = vmatpush2.bf16.msra.mxu0 0
    %3422 = vmatprep.subr.bf16.mxu0 0
    %3423 = vmatpush2.bf16.msra.mxu0 0
    %3424 = vmatprep.subr.bf16.mxu0 0
    %3425 = vmatpush2.bf16.msra.mxu0 0
    %3426 = vmatprep.subr.bf16.mxu0 0
    %3427 = vmatpush2.bf16.msra.mxu0 0
    %3428 = vmatprep.subr.bf16.mxu0 0
    %3429 = vmatpush2.bf16.msra.mxu0 0
    %3430 = vmatprep.subr.bf16.mxu0 0
    %3431 = vmatpush2.bf16.msra.mxu0 0
    %3432 = vmatprep.subr.bf16.mxu0 0
    %3433 = vmatpush2.bf16.msra.mxu0 0
    %3434 = vmatprep.subr.bf16.mxu0 0
    %3435 = vmatpush2.bf16.msra.mxu0 0
    %3436 = vmatprep.mubr.bf16.mxu0 0
    %3437 = vmatmul.mubr.bf16.gmra.mxu0 %v3402
    %v3438 = vpop.f32.mrf.mxu0
    %v3439 = vadd.f32 0.0, %v3438
    %v3440 = vpop.f32.mrf.mxu0
    %v3441 = vpop.f32.mrf.mxu0
    %v3442 = vpop.f32.mrf.mxu0
    %3443 = vdwg.mxu0
    %v3444 = vadd.f32 %v3387, %v3439
    %s3445 = scalar_lea.vmem %s5, 96
    %v3446 = vld [vmem:[%s3445] sm:$0xf]
    %v3447 = vld [vmem:[%s3445 + $0x4] sm:$0xf]
    %v3450 = vunpack.c.l.b16 %v2751
    %v3451 = vunpack.c.l.b16 %v2755
    %v3452 = vrot.slane %v3451, 7
    %v3453 = vsel %vm2766, %v3452, %v3450
    %v3454 = vpack.c.b16 %v3453, %v3453
    %v3457 = vunpack.c.l.b16 %v3446
    %v3458 = vunpack.c.l.b16 %v3447
    %v3459 = vpack.c.b16 %v3458, %v3457
    %v3462 = vsel %vm2775, %v3454, 0
    %3464 = vmatprep.subr.bf16.mxu0 0
    %3465 = vmatpush1.bf16.msra.mxu0 0
    %3466 = vmatprep.subr.bf16.mxu0 0
    %3467 = vmatpush1.bf16.msra.mxu0 0
    %3468 = vmatprep.subr.bf16.mxu0 0
    %3469 = vmatpush1.bf16.msra.mxu0 0
    %3470 = vmatprep.subr.bf16.mxu0 0
    %3471 = vmatpush1.bf16.msra.mxu0 0
    %3472 = vmatprep.subr.bf16.mxu0 0
    %3473 = vmatpush1.bf16.msra.mxu0 0
    %3474 = vmatprep.subr.bf16.mxu0 0
    %3475 = vmatpush1.bf16.msra.mxu0 0
    %3476 = vmatprep.subr.bf16.mxu0 0
    %3477 = vmatpush1.bf16.msra.mxu0 0
    %3478 = vmatprep.subr.bf16.mxu0 0
    %3479 = vmatpush1.bf16.msra.mxu0 %v3459
    %3480 = vmatprep.subr.bf16.mxu0 0
    %3481 = vmatpush2.bf16.msra.mxu0 0
    %3482 = vmatprep.subr.bf16.mxu0 0
    %3483 = vmatpush2.bf16.msra.mxu0 0
    %3484 = vmatprep.subr.bf16.mxu0 0
    %3485 = vmatpush2.bf16.msra.mxu0 0
    %3486 = vmatprep.subr.bf16.mxu0 0
    %3487 = vmatpush2.bf16.msra.mxu0 0
    %3488 = vmatprep.subr.bf16.mxu0 0
    %3489 = vmatpush2.bf16.msra.mxu0 0
    %3490 = vmatprep.subr.bf16.mxu0 0
    %3491 = vmatpush2.bf16.msra.mxu0 0
    %3492 = vmatprep.subr.bf16.mxu0 0
    %3493 = vmatpush2.bf16.msra.mxu0 0
    %3494 = vmatprep.subr.bf16.mxu0 0
    %3495 = vmatpush2.bf16.msra.mxu0 0
    %3496 = vmatprep.mubr.bf16.mxu0 0
    %3497 = vmatmul.mubr.bf16.gmra.mxu0 %v3462
    %v3498 = vpop.f32.mrf.mxu0
    %v3499 = vadd.f32 0.0, %v3498
    %v3500 = vpop.f32.mrf.mxu0
    %v3501 = vpop.f32.mrf.mxu0
    %v3502 = vpop.f32.mrf.mxu0
    %3503 = vdwg.mxu0
    %v3504 = vadd.f32 %v3444, %v3499
    %s3505 = scalar_lea.vmem %s5, 104
    %v3506 = vld [vmem:[%s3505] sm:$0xf]
    %v3507 = vld [vmem:[%s3505 + $0x4] sm:$0xf]
    %v3508 = vrot.slane %v3450, 1
    %v3509 = vsel %vm2766, %v3451, %v3508
    %v3510 = vpack.c.b16 %v3509, %v3509
    %v3513 = vunpack.c.l.b16 %v3506
    %v3514 = vunpack.c.l.b16 %v3507
    %v3515 = vpack.c.b16 %v3514, %v3513
    %v3518 = vsel %vm2775, %v3510, 0
    %3520 = vmatprep.subr.bf16.mxu0 0
    %3521 = vmatpush1.bf16.msra.mxu0 0
    %3522 = vmatprep.subr.bf16.mxu0 0
    %3523 = vmatpush1.bf16.msra.mxu0 0
    %3524 = vmatprep.subr.bf16.mxu0 0
    %3525 = vmatpush1.bf16.msra.mxu0 0
    %3526 = vmatprep.subr.bf16.mxu0 0
    %3527 = vmatpush1.bf16.msra.mxu0 0
    %3528 = vmatprep.subr.bf16.mxu0 0
    %3529 = vmatpush1.bf16.msra.mxu0 0
    %3530 = vmatprep.subr.bf16.mxu0 0
    %3531 = vmatpush1.bf16.msra.mxu0 0
    %3532 = vmatprep.subr.bf16.mxu0 0
    %3533 = vmatpush1.bf16.msra.mxu0 0
    %3534 = vmatprep.subr.bf16.mxu0 0
    %3535 = vmatpush1.bf16.msra.mxu0 %v3515
    %3536 = vmatprep.subr.bf16.mxu0 0
    %3537 = vmatpush2.bf16.msra.mxu0 0
    %3538 = vmatprep.subr.bf16.mxu0 0
    %3539 = vmatpush2.bf16.msra.mxu0 0
    %3540 = vmatprep.subr.bf16.mxu0 0
    %3541 = vmatpush2.bf16.msra.mxu0 0
    %3542 = vmatprep.subr.bf16.mxu0 0
    %3543 = vmatpush2.bf16.msra.mxu0 0
    %3544 = vmatprep.subr.bf16.mxu0 0
    %3545 = vmatpush2.bf16.msra.mxu0 0
    %3546 = vmatprep.subr.bf16.mxu0 0
    %3547 = vmatpush2.bf16.msra.mxu0 0
    %3548 = vmatprep.subr.bf16.mxu0 0
    %3549 = vmatpush2.bf16.msra.mxu0 0
    %3550 = vmatprep.subr.bf16.mxu0 0
    %3551 = vmatpush2.bf16.msra.mxu0 0
    %3552 = vmatprep.mubr.bf16.mxu0 0
    %3553 = vmatmul.mubr.bf16.gmra.mxu0 %v3518
    %v3554 = vpop.f32.mrf.mxu0
    %v3555 = vadd.f32 0.0, %v3554
    %v3556 = vpop.f32.mrf.mxu0
    %v3557 = vpop.f32.mrf.mxu0
    %v3558 = vpop.f32.mrf.mxu0
    %3559 = vdwg.mxu0
    %v3560 = vadd.f32 %v3504, %v3555
    %s3561 = scalar_lea.vmem %s5, 112
    %v3562 = vld [vmem:[%s3561] sm:$0xf]
    %v3563 = vld [vmem:[%s3561 + $0x4] sm:$0xf]
    %v3564 = vrot.slane %v3450, 2
    %v3565 = vrot.slane %v3451, 1
    %v3566 = vsel %vm2766, %v3565, %v3564
    %v3567 = vpack.c.b16 %v3566, %v3566
    %v3570 = vunpack.c.l.b16 %v3562
    %v3571 = vunpack.c.l.b16 %v3563
    %v3572 = vpack.c.b16 %v3571, %v3570
    %v3575 = vsel %vm2775, %v3567, 0
    %3577 = vmatprep.subr.bf16.mxu0 0
    %3578 = vmatpush1.bf16.msra.mxu0 0
    %3579 = vmatprep.subr.bf16.mxu0 0
    %3580 = vmatpush1.bf16.msra.mxu0 0
    %3581 = vmatprep.subr.bf16.mxu0 0
    %3582 = vmatpush1.bf16.msra.mxu0 0
    %3583 = vmatprep.subr.bf16.mxu0 0
    %3584 = vmatpush1.bf16.msra.mxu0 0
    %3585 = vmatprep.subr.bf16.mxu0 0
    %3586 = vmatpush1.bf16.msra.mxu0 0
    %3587 = vmatprep.subr.bf16.mxu0 0
    %3588 = vmatpush1.bf16.msra.mxu0 0
    %3589 = vmatprep.subr.bf16.mxu0 0
    %3590 = vmatpush1.bf16.msra.mxu0 0
    %3591 = vmatprep.subr.bf16.mxu0 0
    %3592 = vmatpush1.bf16.msra.mxu0 %v3572
    %3593 = vmatprep.subr.bf16.mxu0 0
    %3594 = vmatpush2.bf16.msra.mxu0 0
    %3595 = vmatprep.subr.bf16.mxu0 0
    %3596 = vmatpush2.bf16.msra.mxu0 0
    %3597 = vmatprep.subr.bf16.mxu0 0
    %3598 = vmatpush2.bf16.msra.mxu0 0
    %3599 = vmatprep.subr.bf16.mxu0 0
    %3600 = vmatpush2.bf16.msra.mxu0 0
    %3601 = vmatprep.subr.bf16.mxu0 0
    %3602 = vmatpush2.bf16.msra.mxu0 0
    %3603 = vmatprep.subr.bf16.mxu0 0
    %3604 = vmatpush2.bf16.msra.mxu0 0
    %3605 = vmatprep.subr.bf16.mxu0 0
    %3606 = vmatpush2.bf16.msra.mxu0 0
    %3607 = vmatprep.subr.bf16.mxu0 0
    %3608 = vmatpush2.bf16.msra.mxu0 0
    %3609 = vmatprep.mubr.bf16.mxu0 0
    %3610 = vmatmul.mubr.bf16.gmra.mxu0 %v3575
    %v3611 = vpop.f32.mrf.mxu0
    %v3612 = vadd.f32 0.0, %v3611
    %v3613 = vpop.f32.mrf.mxu0
    %v3614 = vpop.f32.mrf.mxu0
    %v3615 = vpop.f32.mrf.mxu0
    %3616 = vdwg.mxu0
    %v3617 = vadd.f32 %v3560, %v3612
    %s3618 = scalar_lea.vmem %s5, 120
    %v3619 = vld [vmem:[%s3618] sm:$0xf]
    %v3620 = vld [vmem:[%s3618 + $0x4] sm:$0xf]
    %v3621 = vrot.slane %v3450, 3
    %v3622 = vrot.slane %v3451, 2
    %v3623 = vsel %vm2766, %v3622, %v3621
    %v3624 = vpack.c.b16 %v3623, %v3623
    %v3627 = vunpack.c.l.b16 %v3619
    %v3628 = vunpack.c.l.b16 %v3620
    %v3629 = vpack.c.b16 %v3628, %v3627
    %v3632 = vsel %vm2775, %v3624, 0
    %3634 = vmatprep.subr.bf16.mxu0 0
    %3635 = vmatpush1.bf16.msra.mxu0 0
    %3636 = vmatprep.subr.bf16.mxu0 0
    %3637 = vmatpush1.bf16.msra.mxu0 0
    %3638 = vmatprep.subr.bf16.mxu0 0
    %3639 = vmatpush1.bf16.msra.mxu0 0
    %3640 = vmatprep.subr.bf16.mxu0 0
    %3641 = vmatpush1.bf16.msra.mxu0 0
    %3642 = vmatprep.subr.bf16.mxu0 0
    %3643 = vmatpush1.bf16.msra.mxu0 0
    %3644 = vmatprep.subr.bf16.mxu0 0
    %3645 = vmatpush1.bf16.msra.mxu0 0
    %3646 = vmatprep.subr.bf16.mxu0 0
    %3647 = vmatpush1.bf16.msra.mxu0 0
    %3648 = vmatprep.subr.bf16.mxu0 0
    %3649 = vmatpush1.bf16.msra.mxu0 %v3629
    %3650 = vmatprep.subr.bf16.mxu0 0
    %3651 = vmatpush2.bf16.msra.mxu0 0
    %3652 = vmatprep.subr.bf16.mxu0 0
    %3653 = vmatpush2.bf16.msra.mxu0 0
    %3654 = vmatprep.subr.bf16.mxu0 0
    %3655 = vmatpush2.bf16.msra.mxu0 0
    %3656 = vmatprep.subr.bf16.mxu0 0
    %3657 = vmatpush2.bf16.msra.mxu0 0
    %3658 = vmatprep.subr.bf16.mxu0 0
    %3659 = vmatpush2.bf16.msra.mxu0 0
    %3660 = vmatprep.subr.bf16.mxu0 0
    %3661 = vmatpush2.bf16.msra.mxu0 0
    %3662 = vmatprep.subr.bf16.mxu0 0
    %3663 = vmatpush2.bf16.msra.mxu0 0
    %3664 = vmatprep.subr.bf16.mxu0 0
    %3665 = vmatpush2.bf16.msra.mxu0 0
    %3666 = vmatprep.mubr.bf16.mxu0 0
    %3667 = vmatmul.mubr.bf16.gmra.mxu0 %v3632
    %v3668 = vpop.f32.mrf.mxu0
    %v3669 = vadd.f32 0.0, %v3668
    %v3670 = vpop.f32.mrf.mxu0
    %v3671 = vpop.f32.mrf.mxu0
    %v3672 = vpop.f32.mrf.mxu0
    %3673 = vdwg.mxu0
    %v3674 = vadd.f32 %v3617, %v3669
    %v3675 = vld [vmem:[%s6] sm:$0x1]
    %v3677 = vlaneseq
    %v3678 = vshrl.u32 %v3677, 7
    %v3679 = vsub.s32 0, %v3678
    %v3680 = vrot.slane %v3675, %v3679
    %v3682 = vadd.f32 %v3674, %v3680
    %vm3683 = vcmask 254976
    %3684 = vst.msk [vmem:[#allocation3] sm:$0x3] %vm3683, %v3682
    %v3685 = vmax.f32 %v3682, 0.0
    %vm3686 = vcmp.ne.f32.partialorder %v3682, %v3682
    %v3687 = vadd.f32 %v3682, 0.0
    %v3688 = vand.u32 2147483647, %v3682
    %v3689 = vsub.f32 0.0, %v3688
    %v3690 = vmul.f32 %v3689, 1.442695
    %v3691 = vpow.pop %v3690
    %v3692 = vadd.f32 %v3691, 1.0
    %v3693 = vlog2.pop %v3692
    %v3694 = vmul.f32 %v3693, 0.6931472
    %v3695 = vmul.f32 -0.5, %v3691
    %v3696 = vadd.f32 %v3695, 1.0
    %v3697 = vmul.f32 %v3696, %v3691
    %v3698 = vand.u32 2147483647, %v3691
    %vm3699 = vcmp.lt.f32.partialorder %v3698, 0.0004427343
    %v3700 = vsel %vm3699, %v3697, %v3694
    %v3701 = vadd.f32 %v3685, %v3700
    %v3702 = vsel %vm3686, %v3687, %v3701
    %3704 = vrot.lane.b32.xlu0 %v3702, 96
    %v3705 = vpop.permute.xlu0 %3704
    %3707 = vst.msk [vmem:[#allocation5] sm:$0x3] %vm3683, %v3705
    // Predicated region
    $region30: #{forward.1} parent=1 // pred_check
      _
    $region31: #{forward.1} parent=1 // pred_check_branch
      %3709 = sbr.rel (0) target = $region33
    $region32: #{forward.1} parent=1 // pred_region
      %s3711 = ssub.s32 32, 32
      %3712 = vsyncadd [#allocation4], %s3711
      %s3714 = sshll.u32 [#allocation3], 4
      %s3715 = int_to_ptr.vmem [resolvable:$true] %s3714
      %3717 = dma.vmem_to_hbm [thread:$0]  %s3715, 32, %s7, [#allocation4]
    $region33: #{forward.1} parent=1 // pred_fallthru
      _
    // Predicated region
    $region34: #{forward.1} parent=1 // pred_check
      _
    $region35: #{forward.1} parent=1 // pred_check_branch
      %3719 = sbr.rel (0) target = $region37
    $region36: #{forward.1} parent=1 // pred_region
      %s3721 = ssub.s32 32, 32
      %3722 = vsyncadd [#allocation6], %s3721
      %s3724 = sshll.u32 [#allocation5], 4
      %s3725 = int_to_ptr.vmem [resolvable:$true] %s3724
      %3727 = dma.vmem_to_hbm [thread:$0]  %s3725, 32, %s8, [#allocation6]
    $region37: #{forward.1} parent=1 // pred_fallthru
      _
    // Predicated region
    $region38: #{forward.1} parent=1 // pred_check
      _
    $region39: #{forward.1} parent=1 // pred_check_branch
      %3729 = sbr.rel (0) target = $region41
    $region40: #{forward.1} parent=1 // pred_region
      %3730 = dma.done [#allocation4], 32
    $region41: #{forward.1} parent=1 // pred_fallthru
      _
    // Predicated region
    $region42: #{forward.1} parent=1 // pred_check
      _
    $region43: #{forward.1} parent=1 // pred_check_branch
      %3732 = sbr.rel (0) target = $region45
    $region44: #{forward.1} parent=1 // pred_region
      %3733 = dma.done [#allocation6], 32
    $region45: #{forward.1} parent=1 // pred_fallthru
      _
    %3734 = vsyncpa [#allocation4], 1
    %3735 = vsyncpa [#allocation6], 1

</llo_original>
